<compile_context>
chip_gen: v7x
topology: tpu7x:2x2x1
jax: 0.10.0
libtpu: 0.0.40
codegen_flags: <defaults>
</compile_context>

<pallas_src>
import jax
import jax.numpy as jnp
from jax import lax
from jax.experimental import pallas as pl
from jax.experimental.pallas import tpu as pltpu

F32 = jnp.float32


def _vmem():
    return pl.BlockSpec(memory_space=pltpu.MemorySpace.VMEM)


def _lstm_cell(gates, c, hid):
    # PyTorch gate order: i, f, g, o.
    i = jax.nn.sigmoid(gates[:, 0 * hid:1 * hid])
    f = jax.nn.sigmoid(gates[:, 1 * hid:2 * hid])
    g = jnp.tanh(gates[:, 2 * hid:3 * hid])
    o = jax.nn.sigmoid(gates[:, 3 * hid:4 * hid])
    c_new = f * c + i * g
    h_new = o * jnp.tanh(c_new)
    return h_new, c_new


# ---------------------------------------------------------------- kernels ---

def _encode_kernel(we_ref, pe_ref, tt_ref, g_ref, b_ref, wh_ref, bh_ref, out_ref):
    """Embeddings + LayerNorm + mean-pool + fused classifier/hidden heads."""
    e = we_ref[...] + pe_ref[...][None, :, :] + tt_ref[...][None, :, :]
    mean = jnp.mean(e, axis=-1, keepdims=True)
    var = jnp.mean((e - mean) ** 2, axis=-1, keepdims=True)
    h = ((e - mean) * lax.rsqrt(var + 1e-12)) * g_ref[...][None, :, :] + b_ref[...][None, :, :]
    pooled = jnp.mean(h, axis=1)                                   # (Bs, H)
    out_ref[...] = (jnp.dot(pooled, wh_ref[...], preferred_element_type=F32)
                    + bh_ref[...])                                 # (Bs, C+Z)


def _vae_head_kernel(hc_ref, w_ref, b_ref, noise_ref, y_ref, wz_ref, wy_ref,
                     b1_ref, kld_ref, zy_ref):
    """Fused mu/logvar, KLD, gaussian reparam and generator constant-gates."""
    ml = jnp.dot(hc_ref[...], w_ref[...], preferred_element_type=F32) + b_ref[...]
    z_dim = ml.shape[-1] // 2
    mu = ml[:, :z_dim]
    lv = ml[:, z_dim:]
    term = lv - mu * mu - jnp.exp(lv) + 1.0
    kld_ref[...] = jnp.broadcast_to(-0.5 * jnp.sum(term) / mu.shape[0], (1, 1))
    z = mu + noise_ref[...] * jnp.exp(0.5 * lv)                    # reparam
    # constant (time-independent) part of the generator layer-1 gates
    zy_ref[...] = (jnp.dot(z, wz_ref[...], preferred_element_type=F32)
                   + jnp.dot(y_ref[...], wy_ref[...], preferred_element_type=F32)
                   + b1_ref[...])


def _pred_pool_kernel(y2_ref, eh_ref, embT_ref, wpT_ref, wpb_ref, ctx_ref,
                      wihT_ref, b_ref, gx_ref):
    """Predictor: class embedding, hard-attention pool over the 2-element pair
    axis, and the hoisted LSTM input-gate projection — all in one call."""
    x_emb = jnp.dot(y2_ref[...], embT_ref[...], preferred_element_type=F32)   # (Bs, Z)
    eh = eh_ref[...]                                                          # (Bs, Z)
    h0 = jnp.tanh(jnp.dot(x_emb, wpT_ref[...], preferred_element_type=F32) + wpb_ref[...])
    h1 = jnp.tanh(jnp.dot(eh, wpT_ref[...], preferred_element_type=F32) + wpb_ref[...])
    ctx = ctx_ref[...]                                                        # (1, Z)
    # score via VPU multiply + lane reduction (no (z,1) matmul)
    s0 = jnp.sum(h0 * ctx, axis=-1, keepdims=True)
    s1 = jnp.sum(h1 * ctx, axis=-1, keepdims=True)
    m = jnp.maximum(s0, s1)
    e0 = jnp.exp(s0 - m)
    e1 = jnp.exp(s1 - m)
    pooled = (x_emb * e0 + eh * e1) / (e0 + e1)                               # (Bs, Z)
    gx_ref[...] = jnp.dot(pooled, wihT_ref[...], preferred_element_type=F32) + b_ref[...]


def _pred_lstm_kernel(gx_ref, whhT_ref, doc_ref, pwT_ref, pb_ref, out_ref,
                      h_scr, c_scr, sel_scr):
    """Predictor recurrence + output[arange(B), doc_len] selection + predict head."""
    t = pl.program_id(0)

    @pl.when(t == 0)
    def _():
        h_scr[...] = jnp.zeros_like(h_scr)
        c_scr[...] = jnp.zeros_like(c_scr)
        sel_scr[...] = jnp.zeros_like(sel_scr)

    h = h_scr[...]
    c = c_scr[...]
    gates = gx_ref[0] + jnp.dot(h, whhT_ref[...], preferred_element_type=F32)
    h_new, c_new = _lstm_cell(gates, c, h.shape[-1])
    h_scr[...] = h_new
    c_scr[...] = c_new
    sel_scr[...] = jnp.where(doc_ref[...] == t, h_new, sel_scr[...])

    @pl.when(t == pl.num_programs(0) - 1)
    def _():
        out_ref[...] = (jnp.dot(sel_scr[...], pwT_ref[...], preferred_element_type=F32)
                        + pb_ref[...])


def _gen_gates_kernel(we_ref, pe_ref, tt_ref, g_ref, b_ref, wxT_ref, gx_ref):
    """Generator: prob embeddings + LayerNorm + hoisted layer-1 input-gate
    projection as one large batched matmul over flat time-major rows."""
    e = we_ref[...] + pe_ref[...] + tt_ref[...]
    mean = jnp.mean(e, axis=-1, keepdims=True)
    var = jnp.mean((e - mean) ** 2, axis=-1, keepdims=True)
    emb = ((e - mean) * lax.rsqrt(var + 1e-12)) * g_ref[...] + b_ref[...]
    gx_ref[...] = jnp.dot(emb, wxT_ref[...], preferred_element_type=F32)


def _gen_lstm_kernel(gx1_ref, zy_ref, whh1T_ref, w2xT_ref, whh2T_ref, b2_ref,
                     woutT_ref, bout_ref, out_ref, h1_scr, c1_scr, h2_scr, c2_scr):
    """Fused 2-layer generator LSTM recurrence + vocab projection (per step)."""
    t = pl.program_id(0)

    @pl.when(t == 0)
    def _():
        h1_scr[...] = jnp.zeros_like(h1_scr)
        c1_scr[...] = jnp.zeros_like(c1_scr)
        h2_scr[...] = jnp.zeros_like(h2_scr)
        c2_scr[...] = jnp.zeros_like(c2_scr)

    # layer 1 (input projection already hoisted: gx1 + zy constant)
    h1 = h1_scr[...]
    c1 = c1_scr[...]
    gates1 = (gx1_ref[0] + zy_ref[...]
              + jnp.dot(h1, whh1T_ref[...], preferred_element_type=F32))
    h1n, c1n = _lstm_cell(gates1, c1, h1.shape[-1])
    h1_scr[...] = h1n
    c1_scr[...] = c1n

    # layer 2 (fed directly from layer-1 output in VMEM)
    h2 = h2_scr[...]
    c2 = c2_scr[...]
    gates2 = (jnp.dot(h1n, w2xT_ref[...], preferred_element_type=F32)
              + jnp.dot(h2, whh2T_ref[...], preferred_element_type=F32)
              + b2_ref[...])
    h2n, c2n = _lstm_cell(gates2, c2, h2.shape[-1])
    h2_scr[...] = h2n
    c2_scr[...] = c2n

    # fused vocab projection (lane-dense (Bs, V) slab per step)
    # TODO(synk): at real vocab sizes (~30k) tile this projection over vocab.
    out_ref[0] = jnp.dot(h2n, woutT_ref[...], preferred_element_type=F32) + bout_ref[...]


# ---------------------------------------------------------------- params ----

class ParamFactory:
    def __init__(self, seed):
        self.key = jax.random.PRNGKey(seed)

    def next(self, shape, scale=0.1):
        self.key, sub = jax.random.split(self.key)
        return (scale * jax.random.normal(sub, shape)).astype(F32)


def init_params(*, bert_vocab, max_pos, hidden, z_size, n_class, out_class,
                gen_hidden, gen_layers, vocab_size, pred_hidden, seed=42):
    pf = ParamFactory(seed)
    p = {}
    # BERT-embeddings stand-in (word + position + token_type + LayerNorm)
    p["word_emb"] = pf.next((bert_vocab, hidden))
    p["pos_emb"] = pf.next((max_pos, hidden))
    p["type_emb"] = pf.next((2, hidden))
    p["ln_gamma"] = jnp.ones((1, hidden), F32)
    p["ln_beta"] = jnp.zeros((1, hidden), F32)
    # heads on top of encoder
    p["classifier_w"] = pf.next((n_class, hidden)); p["classifier_b"] = pf.next((n_class,))
    p["hidden_linear_w"] = pf.next((z_size, hidden)); p["hidden_linear_b"] = pf.next((z_size,))
    p["mu_w"] = pf.next((z_size, z_size + n_class)); p["mu_b"] = pf.next((z_size,))
    p["logvar_w"] = pf.next((z_size, z_size + n_class)); p["logvar_b"] = pf.next((z_size,))
    # predictor (hard=True path)
    p["pred_emb_w"] = pf.next((z_size, n_class))            # nn.Linear(n_class, z, bias=False)
    p["wproj_w"] = pf.next((z_size, z_size)); p["wproj_b"] = pf.next((z_size,))
    p["ctx"] = pf.next((z_size, 1))
    p["pred_lstm_wih"] = pf.next((4 * pred_hidden, z_size))
    p["pred_lstm_whh"] = pf.next((4 * pred_hidden, pred_hidden))
    p["pred_lstm_bih"] = pf.next((4 * pred_hidden,))
    p["pred_lstm_bhh"] = pf.next((4 * pred_hidden,))
    p["predict_w"] = pf.next((out_class, pred_hidden)); p["predict_b"] = pf.next((out_class,))
    # generator (2-layer LSTM + output projection)
    gen_in = hidden + z_size + n_class
    layers = []
    d = gen_in
    for _ in range(gen_layers):
        layers.append(dict(
            wih=pf.next((4 * gen_hidden, d)),
            whh=pf.next((4 * gen_hidden, gen_hidden)),
            bih=pf.next((4 * gen_hidden,)),
            bhh=pf.next((4 * gen_hidden,)),
        ))
        d = gen_hidden
    p["gen_lstm"] = layers
    p["gen_out_w"] = pf.next((vocab_size, gen_hidden)); p["gen_out_b"] = pf.next((vocab_size,))
    return p


# ---------------------------------------------------------------- forward ---

def hierachy_vae_forward(params, x, prob, tau, mask1, mask2, y, doc_len, sent_len,
                         rng, *, z_size, n_class, hard=True):
    batch, seq_num, seq_len = x.shape
    Bs = batch * seq_num
    x_flat = x.reshape(Bs, seq_len)
    y_flat = y.reshape(Bs, n_class).astype(F32)
    m1 = mask1.reshape(Bs, 1).astype(F32)
    m2 = mask2.reshape(Bs, 1).astype(F32)
    del sent_len                       # Encoder.forward ignores sent_len

    H = params["word_emb"].shape[1]
    Z = z_size
    C = n_class
    Hp = params["pred_lstm_whh"].shape[1]
    out_class = params["predict_w"].shape[0]
    assert len(params["gen_lstm"]) == 2, "fused generator kernel supports 2 layers"
    g1, g2 = params["gen_lstm"]
    H1 = g1["whh"].shape[1]
    H2 = g2["whh"].shape[1]
    V = params["gen_out_w"].shape[0]

    # ----- weight prep: pre-transpose / concat once (no in-kernel .T) -------
    ln_g, ln_b = params["ln_gamma"], params["ln_beta"]
    tt = params["type_emb"][0:1]                                   # token_type_ids == 0
    w_head_T = jnp.concatenate([params["classifier_w"], params["hidden_linear_w"]], 0).T
    b_head = jnp.concatenate([params["classifier_b"], params["hidden_linear_b"]])[None, :]
    w_mulv_T = jnp.concatenate([params["mu_w"], params["logvar_w"]], 0).T      # (Z+C, 2Z)
    b_mulv = jnp.concatenate([params["mu_b"], params["logvar_b"]])[None, :]
    w1 = g1["wih"]                                                 # (4H1, H+Z+C)
    w1x_T = w1[:, :H].T
    w1z_T = w1[:, H:H + Z].T
    w1y_T = w1[:, H + Z:].T
    b1 = (g1["bih"] + g1["bhh"])[None, :]
    whh1_T = g1["whh"].T
    w2x_T = g2["wih"].T
    whh2_T = g2["whh"].T
    b2 = (g2["bih"] + g2["bhh"])[None, :]
    wout_T = params["gen_out_w"].T
    bout = params["gen_out_b"][None, :]
    pred_wih_T = params["pred_lstm_wih"].T
    pred_whh_T = params["pred_lstm_whh"].T
    pred_bsum = (params["pred_lstm_bih"] + params["pred_lstm_bhh"])[None, :]
    predict_wT = params["predict_w"].T
    predict_b = params["predict_b"][None, :]

    # ---------------- encode: embeddings + LN + pool + heads (1 call) -------
    # TODO(synk): pretrained 12-layer BertModel has no Pallas equivalent here;
    # replaced by its deterministic embedding stack + LayerNorm + mean-pool.
    we = jnp.take(params["word_emb"], x_flat, axis=0)              # glue gather (Bs,L,H)
    pe = params["pos_emb"][:seq_len]
    head = pl.pallas_call(
        _encode_kernel,
        out_shape=jax.ShapeDtypeStruct((Bs, C + Z), F32),
        in_specs=[_vmem()] * 7,
        out_specs=_vmem(),
    )(we, pe, tt, ln_g, ln_b, w_head_T, b_head)
    q_y = head[:, :C]
    enc_hidden = head[:, C:]

    # ---------------- gumbel softmax / masks (tiny -> jnp glue) -------------
    k_g, k_z = jax.random.split(rng)
    eps = 1e-8
    U = jax.random.uniform(k_g, q_y.shape, dtype=F32)
    gumbel = -jnp.log(-jnp.log(U + eps) + eps)
    y_soft = jax.nn.softmax((q_y + gumbel) / tau, axis=-1)
    if hard:
        y_sample = jax.nn.one_hot(jnp.argmax(y_soft, axis=-1), C, dtype=F32)
    else:
        y_sample = y_soft
    y_in = y_flat * m1 + y_sample * m2
    q_y_soft = jax.nn.softmax(q_y, axis=-1)
    y_in2 = y_flat * m1 + q_y_soft * m2
    hidden_cat = jnp.concatenate([enc_hidden, y_in], axis=-1)      # (Bs, Z+C)
    z_noise = jax.random.normal(k_z, (Bs, Z), dtype=F32)

    # ---------------- mu/logvar + KLD + reparam + gen constant gates --------
    kld_out, zy_g = pl.pallas_call(
        _vae_head_kernel,
        out_shape=(jax.ShapeDtypeStruct((1, 1), F32),
                   jax.ShapeDtypeStruct((Bs, 4 * H1), F32)),
        in_specs=[_vmem()] * 8,
        out_specs=(_vmem(), _vmem()),
    )(hidden_cat, w_mulv_T, b_mulv, z_noise, y_in, w1z_T, w1y_T, b1)
    kld = kld_out[0, 0]

    # ---------------- predictor: pool + hoisted input gates (1 call) --------
    gx_pred = pl.pallas_call(
        _pred_pool_kernel,
        out_shape=jax.ShapeDtypeStruct((Bs, 4 * Hp), F32),
        in_specs=[_vmem()] * 8,
        out_specs=_vmem(),
    )(y_in2, enc_hidden, params["pred_emb_w"].T, params["wproj_w"].T,
      params["wproj_b"][None, :], params["ctx"].reshape(1, Z), pred_wih_T, pred_bsum)

    # tiny (batch, seq_num, 4Hp) relayout to time-major for the recurrence
    gx_pred_tm = jnp.transpose(gx_pred.reshape(batch, seq_num, 4 * Hp), (1, 0, 2))
    doc = doc_len.reshape(batch, 1).astype(jnp.int32)
    t_out = pl.pallas_call(
        _pred_lstm_kernel,
        out_shape=jax.ShapeDtypeStruct((batch, out_class), F32),
        grid=(seq_num,),
        in_specs=[
            pl.BlockSpec((1, batch, 4 * Hp), lambda t: (t, 0, 0)),
            pl.BlockSpec((Hp, 4 * Hp), lambda t: (0, 0)),
            pl.BlockSpec((batch, 1), lambda t: (0, 0)),
            pl.BlockSpec((Hp, out_class), lambda t: (0, 0)),
            pl.BlockSpec((1, out_class), lambda t: (0, 0)),
        ],
        out_specs=pl.BlockSpec((batch, out_class), lambda t: (0, 0)),
        scratch_shapes=[pltpu.VMEM((batch, Hp), F32)] * 3,
        compiler_params=pltpu.CompilerParams(dimension_semantics=("arbitrary",)),
    )(gx_pred_tm, pred_whh_T, doc, predict_wT, predict_b)
    strategy_embedding = params["pred_emb_w"]

    # ---------------- generator -------------------------------------------
    Lg = prob.shape[1]
    # gather the generator embeddings directly in time-major row order so no
    # large activation transpose is ever needed (only tiny int ids transposed)
    prob_tm_flat = jnp.transpose(prob).reshape(Lg * Bs)
    we_g = jnp.take(params["word_emb"], prob_tm_flat, axis=0)      # (Lg*Bs, H)
    pe_rep = jnp.repeat(params["pos_emb"][:Lg], Bs, axis=0)        # (Lg*Bs, H)

    rows = Lg * Bs
    row_tile = rows   # single tile at toy sizes; at BERT scale pick a 128-mult
                      # tile so this "parallel" axis shards across v7x's 2 TCs.
    gx1_flat = pl.pallas_call(
        _gen_gates_kernel,
        out_shape=jax.ShapeDtypeStruct((rows, 4 * H1), F32),
        grid=(rows // row_tile,),
        in_specs=[
            pl.BlockSpec((row_tile, H), lambda r: (r, 0)),
            pl.BlockSpec((row_tile, H), lambda r: (r, 0)),
            pl.BlockSpec((1, H), lambda r: (0, 0)),
            pl.BlockSpec((1, H), lambda r: (0, 0)),
            pl.BlockSpec((1, H), lambda r: (0, 0)),
            pl.BlockSpec((H, 4 * H1), lambda r: (0, 0)),
        ],
        out_specs=pl.BlockSpec((row_tile, 4 * H1), lambda r: (r, 0)),
        compiler_params=pltpu.CompilerParams(
            dimension_semantics=("parallel",),
            vmem_limit_bytes=64 * 1024 * 1024),
    )(we_g, pe_rep, tt, ln_g, ln_b, w1x_T)
    gx1_tm = gx1_flat.reshape(Lg, Bs, 4 * H1)                      # free reshape

    logits_tm = pl.pallas_call(
        _gen_lstm_kernel,
        out_shape=jax.ShapeDtypeStruct((Lg, Bs, V), F32),
        grid=(Lg,),
        in_specs=[
            pl.BlockSpec((1, Bs, 4 * H1), lambda t: (t, 0, 0)),
            pl.BlockSpec((Bs, 4 * H1), lambda t: (0, 0)),
            pl.BlockSpec((H1, 4 * H1), lambda t: (0, 0)),
            pl.BlockSpec((H1, 4 * H2), lambda t: (0, 0)),
            pl.BlockSpec((H2, 4 * H2), lambda t: (0, 0)),
            pl.BlockSpec((1, 4 * H2), lambda t: (0, 0)),
            pl.BlockSpec((H2, V), lambda t: (0, 0)),
            pl.BlockSpec((1, V), lambda t: (0, 0)),
        ],
        out_specs=pl.BlockSpec((1, Bs, V), lambda t: (t, 0, 0)),
        scratch_shapes=[pltpu.VMEM((Bs, H1), F32), pltpu.VMEM((Bs, H1), F32),
                        pltpu.VMEM((Bs, H2), F32), pltpu.VMEM((Bs, H2), F32)],
        compiler_params=pltpu.CompilerParams(
            dimension_semantics=("arbitrary",),
            vmem_limit_bytes=64 * 1024 * 1024),
    )(gx1_tm, zy_g, whh1_T, w2x_T, whh2_T, b2, wout_T, bout)
    logits = jnp.transpose(logits_tm, (1, 0, 2))                   # (Bs, Lg, V)

    return logits, kld, q_y, q_y_soft, t_out, strategy_embedding


# ---------------------------------------------------------------- main ------

if __name__ == "__main__":
    BATCH, SEQ_NUM, SEQ_LEN = 2, 3, 8
    GEN_SEQ_LEN = 8
    BERT_HIDDEN = 32        # small stand-in for BERT's 768
    Z_SIZE = 16
    N_CLASS = 4
    OUT_CLASS = 3
    GEN_HIDDEN = 32
    GEN_LAYERS = 2
    PRED_HIDDEN = 64
    VOCAB = 64
    BERT_VOCAB = 64
    MAX_POS = 16

    params = init_params(bert_vocab=BERT_VOCAB, max_pos=MAX_POS, hidden=BERT_HIDDEN,
                         z_size=Z_SIZE, n_class=N_CLASS, out_class=OUT_CLASS,
                         gen_hidden=GEN_HIDDEN, gen_layers=GEN_LAYERS,
                         vocab_size=VOCAB, pred_hidden=PRED_HIDDEN, seed=42)

    key = jax.random.PRNGKey(0)
    k1, k2, k3, k4, k5, k6 = jax.random.split(key, 6)
    x = jax.random.randint(k1, (BATCH, SEQ_NUM, SEQ_LEN), 0, BERT_VOCAB, dtype=jnp.int32)
    prob = jax.random.randint(k2, (BATCH * SEQ_NUM, GEN_SEQ_LEN), 0, BERT_VOCAB,
                              dtype=jnp.int32)
    y = jax.nn.one_hot(jax.random.randint(k3, (BATCH, SEQ_NUM), 0, N_CLASS),
                       N_CLASS, dtype=F32)
    mask1 = jax.random.bernoulli(k4, 0.5, (BATCH, SEQ_NUM)).astype(jnp.int32)
    mask2 = 1 - mask1
    doc_len = jax.random.randint(k5, (BATCH,), 0, SEQ_NUM, dtype=jnp.int32)
    sent_len = jnp.full((BATCH, SEQ_NUM), SEQ_LEN, dtype=jnp.int32)
    tau = 1.0

    fwd = jax.jit(hierachy_vae_forward, static_argnames=("z_size", "n_class", "hard"))
    outs = fwd(params, x, prob, tau, mask1, mask2, y, doc_len, sent_len, k6,
               z_size=Z_SIZE, n_class=N_CLASS, hard=True)
    outs = jax.block_until_ready(outs)
    logits, kld, q_y, q_y_soft, t_out, strat = outs

    assert logits.shape == (BATCH * SEQ_NUM, GEN_SEQ_LEN, VOCAB)
    assert kld.shape == ()
    assert q_y.shape == (BATCH * SEQ_NUM, N_CLASS)
    assert q_y_soft.shape == (BATCH * SEQ_NUM, N_CLASS)
    assert t_out.shape == (BATCH, OUT_CLASS)
    assert strat.shape == (Z_SIZE, N_CLASS)
    assert all(bool(jnp.all(jnp.isfinite(a))) for a in
               (logits, kld.reshape(1), q_y, q_y_soft, t_out, strat))
    print("KERNEL_OK")
</pallas_src>

<mosaic_0001>
module attributes {stable_mosaic.version = 11 : i64} {
  func.func @_encode_kernel(%arg0: memref<6x8x32xf32, #tpu.memory_space<vmem>>, %arg1: memref<8x32xf32, #tpu.memory_space<vmem>>, %arg2: memref<1x32xf32, #tpu.memory_space<vmem>>, %arg3: memref<1x32xf32, #tpu.memory_space<vmem>>, %arg4: memref<1x32xf32, #tpu.memory_space<vmem>>, %arg5: memref<32x20xf32, #tpu.memory_space<vmem>>, %arg6: memref<1x20xf32, #tpu.memory_space<vmem>>, %arg7: memref<6x20xf32, #tpu.memory_space<vmem>>) attributes {dimension_semantics = [], scalar_prefetch = 0 : i64, scratch_operands = 0 : i64, tpu.core_type = #tpu.core_type<tc>} {
    %c0 = arith.constant 0 : index
    %c0_0 = arith.constant 0 : index
    %c0_1 = arith.constant 0 : index
    %0 = vector.load %arg0[%c0, %c0_0, %c0_1] : memref<6x8x32xf32, #tpu.memory_space<vmem>>, vector<6x8x32xf32>
    %c0_2 = arith.constant 0 : index
    %c0_3 = arith.constant 0 : index
    %1 = vector.load %arg1[%c0_2, %c0_3] : memref<8x32xf32, #tpu.memory_space<vmem>>, vector<8x32xf32>
    %2 = vector.shape_cast %1 : vector<8x32xf32> to vector<1x8x32xf32>
    %3 = vector.broadcast %2 : vector<1x8x32xf32> to vector<6x8x32xf32>
    %4 = arith.addf %0, %3 : vector<6x8x32xf32>
    %c0_4 = arith.constant 0 : index
    %c0_5 = arith.constant 0 : index
    %5 = vector.load %arg2[%c0_4, %c0_5] : memref<1x32xf32, #tpu.memory_space<vmem>>, vector<1x32xf32>
    %6 = vector.shape_cast %5 : vector<1x32xf32> to vector<1x1x32xf32>
    %7 = vector.broadcast %6 : vector<1x1x32xf32> to vector<6x8x32xf32>
    %8 = arith.addf %4, %7 : vector<6x8x32xf32>
    %cst = arith.constant dense<0.000000e+00> : vector<6x8xf32>
    %9 = vector.multi_reduction <add>, %8, %cst [2] : vector<6x8x32xf32> to vector<6x8xf32>
    %10 = vector.shape_cast %9 : vector<6x8xf32> to vector<6x8x1xf32>
    %cst_6 = arith.constant 3.200000e+01 : f32
    %11 = vector.broadcast %cst_6 : f32 to vector<6x8x1xf32>
    %12 = arith.divf %10, %11 : vector<6x8x1xf32>
    %13 = vector.broadcast %12 : vector<6x8x1xf32> to vector<6x8x32xf32>
    %14 = arith.subf %8, %13 : vector<6x8x32xf32>
    %15 = arith.mulf %14, %14 : vector<6x8x32xf32>
    %cst_7 = arith.constant dense<0.000000e+00> : vector<6x8xf32>
    %16 = vector.multi_reduction <add>, %15, %cst_7 [2] : vector<6x8x32xf32> to vector<6x8xf32>
    %17 = vector.shape_cast %16 : vector<6x8xf32> to vector<6x8x1xf32>
    %cst_8 = arith.constant 3.200000e+01 : f32
    %18 = vector.broadcast %cst_8 : f32 to vector<6x8x1xf32>
    %19 = arith.divf %17, %18 : vector<6x8x1xf32>
    %20 = vector.broadcast %12 : vector<6x8x1xf32> to vector<6x8x32xf32>
    %21 = arith.subf %8, %20 : vector<6x8x32xf32>
    %cst_9 = arith.constant 9.99999996E-13 : f32
    %22 = vector.broadcast %cst_9 : f32 to vector<6x8x1xf32>
    %23 = arith.addf %19, %22 : vector<6x8x1xf32>
    %24 = math.rsqrt %23 : vector<6x8x1xf32>
    %25 = vector.broadcast %24 : vector<6x8x1xf32> to vector<6x8x32xf32>
    %26 = arith.mulf %21, %25 : vector<6x8x32xf32>
    %c0_10 = arith.constant 0 : index
    %c0_11 = arith.constant 0 : index
    %27 = vector.load %arg3[%c0_10, %c0_11] : memref<1x32xf32, #tpu.memory_space<vmem>>, vector<1x32xf32>
    %28 = vector.shape_cast %27 : vector<1x32xf32> to vector<1x1x32xf32>
    %29 = vector.broadcast %28 : vector<1x1x32xf32> to vector<6x8x32xf32>
    %30 = arith.mulf %26, %29 : vector<6x8x32xf32>
    %c0_12 = arith.constant 0 : index
    %c0_13 = arith.constant 0 : index
    %31 = vector.load %arg4[%c0_12, %c0_13] : memref<1x32xf32, #tpu.memory_space<vmem>>, vector<1x32xf32>
    %32 = vector.shape_cast %31 : vector<1x32xf32> to vector<1x1x32xf32>
    %33 = vector.broadcast %32 : vector<1x1x32xf32> to vector<6x8x32xf32>
    %34 = arith.addf %30, %33 : vector<6x8x32xf32>
    %cst_14 = arith.constant dense<0.000000e+00> : vector<6x32xf32>
    %35 = vector.multi_reduction <add>, %34, %cst_14 [1] : vector<6x8x32xf32> to vector<6x32xf32>
    %cst_15 = arith.constant 8.000000e+00 : f32
    %36 = vector.broadcast %cst_15 : f32 to vector<6x32xf32>
    %37 = arith.divf %35, %36 : vector<6x32xf32>
    %c0_16 = arith.constant 0 : index
    %c0_17 = arith.constant 0 : index
    %38 = vector.load %arg5[%c0_16, %c0_17] : memref<32x20xf32, #tpu.memory_space<vmem>>, vector<32x20xf32>
    %cst_18 = arith.constant dense<0.000000e+00> : vector<6x20xf32>
    %39 = tpu.matmul %37, %38, %cst_18 {dimension_numbers = #tpu.dot_dimension_numbers<[1], [0], [0], [1], [0, 0, 1, 1], [], []>} : vector<6x32xf32>, vector<32x20xf32>, vector<6x20xf32> -> vector<6x20xf32>
    %c0_19 = arith.constant 0 : index
    %c0_20 = arith.constant 0 : index
    %40 = vector.load %arg6[%c0_19, %c0_20] : memref<1x20xf32, #tpu.memory_space<vmem>>, vector<1x20xf32>
    %41 = vector.broadcast %40 : vector<1x20xf32> to vector<6x20xf32>
    %42 = arith.addf %39, %41 : vector<6x20xf32>
    %c0_21 = arith.constant 0 : index
    %c0_22 = arith.constant 0 : index
    %43 = vector.load %arg7[%c0_21, %c0_22] : memref<6x20xf32, #tpu.memory_space<vmem>>, vector<6x20xf32>
    tpu.vector_store %arg7[%c0_21, %c0_22], %42 {strides = array<i32>} : memref<6x20xf32, #tpu.memory_space<vmem>>, vector<6x20xf32>,
    return
  }
}

module attributes {stable_mosaic.version = 11 : i64} {
  func.func @_pred_lstm_kernel(%arg0: i32, %arg1: memref<1x2x256xf32, #tpu.memory_space<vmem>>, %arg2: memref<64x256xf32, #tpu.memory_space<vmem>>, %arg3: memref<2x1xi32, #tpu.memory_space<vmem>>, %arg4: memref<64x3xf32, #tpu.memory_space<vmem>>, %arg5: memref<1x3xf32, #tpu.memory_space<vmem>>, %arg6: memref<2x3xf32, #tpu.memory_space<vmem>>, %arg7: memref<2x64xf32, #tpu.memory_space<vmem>>, %arg8: memref<2x64xf32, #tpu.memory_space<vmem>>, %arg9: memref<2x64xf32, #tpu.memory_space<vmem>>) attributes {dimension_semantics = [#tpu.dimension_semantics<arbitrary>], iteration_bounds = array<i64: 3>, scalar_prefetch = 0 : i64, scratch_operands = 3 : i64, tpu.core_type = #tpu.core_type<tc>, window_params = [{transform_indices = @transform_0, window_bounds = array<i64: 1, 2, 256>}, {pipeline_mode = #tpu.pipeline_mode<synchronous>, transform_indices = @transform_1, window_bounds = array<i64: 64, 256>}, {pipeline_mode = #tpu.pipeline_mode<synchronous>, transform_indices = @transform_2, window_bounds = array<i64: 2, 1>}, {pipeline_mode = #tpu.pipeline_mode<synchronous>, transform_indices = @transform_3, window_bounds = array<i64: 64, 3>}, {pipeline_mode = #tpu.pipeline_mode<synchronous>, transform_indices = @transform_4, window_bounds = array<i64: 1, 3>}, {pipeline_mode = #tpu.pipeline_mode<synchronous>, transform_indices = @transform_5, window_bounds = array<i64: 2, 3>}]} {
    %c0_i32 = arith.constant 0 : i32
    %0 = arith.cmpi eq, %arg0, %c0_i32 : i32
    %1 = arith.extui %0 : i1 to i32
    %c0_i32_0 = arith.constant 0 : i32
    %2 = arith.cmpi ne, %1, %c0_i32_0 : i32
    scf.if %2 {
      %cst_23 = arith.constant 0.000000e+00 : f32
      %48 = vector.broadcast %cst_23 : f32 to vector<2x64xf32>
      %c0_24 = arith.constant 0 : index
      %c0_25 = arith.constant 0 : index
      %49 = vector.load %arg7[%c0_24, %c0_25] : memref<2x64xf32, #tpu.memory_space<vmem>>, vector<2x64xf32>
      tpu.vector_store %arg7[%c0_24, %c0_25], %48 {strides = array<i32>} : memref<2x64xf32, #tpu.memory_space<vmem>>, vector<2x64xf32>,
      %cst_26 = arith.constant 0.000000e+00 : f32
      %50 = vector.broadcast %cst_26 : f32 to vector<2x64xf32>
      %c0_27 = arith.constant 0 : index
      %c0_28 = arith.constant 0 : index
      %51 = vector.load %arg8[%c0_27, %c0_28] : memref<2x64xf32, #tpu.memory_space<vmem>>, vector<2x64xf32>
      tpu.vector_store %arg8[%c0_27, %c0_28], %50 {strides = array<i32>} : memref<2x64xf32, #tpu.memory_space<vmem>>, vector<2x64xf32>,
      %cst_29 = arith.constant 0.000000e+00 : f32
      %52 = vector.broadcast %cst_29 : f32 to vector<2x64xf32>
      %c0_30 = arith.constant 0 : index
      %c0_31 = arith.constant 0 : index
      %53 = vector.load %arg9[%c0_30, %c0_31] : memref<2x64xf32, #tpu.memory_space<vmem>>, vector<2x64xf32>
      tpu.vector_store %arg9[%c0_30, %c0_31], %52 {strides = array<i32>} : memref<2x64xf32, #tpu.memory_space<vmem>>, vector<2x64xf32>,
    } else {
    }
    %c0 = arith.constant 0 : index
    %c0_1 = arith.constant 0 : index
    %3 = vector.load %arg7[%c0, %c0_1] : memref<2x64xf32, #tpu.memory_space<vmem>>, vector<2x64xf32>
    %c0_2 = arith.constant 0 : index
    %c0_3 = arith.constant 0 : index
    %4 = vector.load %arg8[%c0_2, %c0_3] : memref<2x64xf32, #tpu.memory_space<vmem>>, vector<2x64xf32>
    %c0_4 = arith.constant 0 : index
    %c0_5 = arith.constant 0 : index
    %c0_6 = arith.constant 0 : index
    %5 = vector.load %arg1[%c0_4, %c0_5, %c0_6] : memref<1x2x256xf32, #tpu.memory_space<vmem>>, vector<1x2x256xf32>
    %6 = vector.shape_cast %5 : vector<1x2x256xf32> to vector<2x256xf32>
    %c0_7 = arith.constant 0 : index
    %c0_8 = arith.constant 0 : index
    %7 = vector.load %arg2[%c0_7, %c0_8] : memref<64x256xf32, #tpu.memory_space<vmem>>, vector<64x256xf32>
    %cst = arith.constant dense<0.000000e+00> : vector<2x256xf32>
    %8 = tpu.matmul %3, %7, %cst {dimension_numbers = #tpu.dot_dimension_numbers<[1], [0], [0], [1], [0, 0, 1, 1], [], []>} : vector<2x64xf32>, vector<64x256xf32>, vector<2x256xf32> -> vector<2x256xf32>
    %9 = arith.addf %6, %8 : vector<2x256xf32>
    %10 = vector.extract_strided_slice %9 {offsets = [0, 0], sizes = [2, 64], strides = [1, 1]} : vector<2x256xf32> to vector<2x64xf32>
    %11 = arith.negf %10 : vector<2x64xf32>
    %12 = math.exp %11 : vector<2x64xf32>
    %cst_9 = arith.constant 1.000000e+00 : f32
    %13 = vector.broadcast %cst_9 : f32 to vector<2x64xf32>
    %14 = arith.addf %13, %12 : vector<2x64xf32>
    %15 = arith.divf %13, %14 : vector<2x64xf32>
    %16 = vector.extract_strided_slice %9 {offsets = [0, 64], sizes = [2, 64], strides = [1, 1]} : vector<2x256xf32> to vector<2x64xf32>
    %17 = arith.negf %16 : vector<2x64xf32>
    %18 = math.exp %17 : vector<2x64xf32>
    %cst_10 = arith.constant 1.000000e+00 : f32
    %19 = vector.broadcast %cst_10 : f32 to vector<2x64xf32>
    %20 = arith.addf %19, %18 : vector<2x64xf32>
    %21 = arith.divf %19, %20 : vector<2x64xf32>
    %22 = vector.extract_strided_slice %9 {offsets = [0, 128], sizes = [2, 64], strides = [1, 1]} : vector<2x256xf32> to vector<2x64xf32>
    %23 = math.tanh %22 : vector<2x64xf32>
    %24 = vector.extract_strided_slice %9 {offsets = [0, 192], sizes = [2, 64], strides = [1, 1]} : vector<2x256xf32> to vector<2x64xf32>
    %25 = arith.negf %24 : vector<2x64xf32>
    %26 = math.exp %25 : vector<2x64xf32>
    %cst_11 = arith.constant 1.000000e+00 : f32
    %27 = vector.broadcast %cst_11 : f32 to vector<2x64xf32>
    %28 = arith.addf %27, %26 : vector<2x64xf32>
    %29 = arith.divf %27, %28 : vector<2x64xf32>
    %30 = arith.mulf %21, %4 : vector<2x64xf32>
    %31 = arith.mulf %15, %23 : vector<2x64xf32>
    %32 = arith.addf %30, %31 : vector<2x64xf32>
    %33 = math.tanh %32 : vector<2x64xf32>
    %34 = arith.mulf %29, %33 : vector<2x64xf32>
    %c0_12 = arith.constant 0 : index
    %c0_13 = arith.constant 0 : index
    %35 = vector.load %arg7[%c0_12, %c0_13] : memref<2x64xf32, #tpu.memory_space<vmem>>, vector<2x64xf32>
    tpu.vector_store %arg7[%c0_12, %c0_13], %34 {strides = array<i32>} : memref<2x64xf32, #tpu.memory_space<vmem>>, vector<2x64xf32>,
    %c0_14 = arith.constant 0 : index
    %c0_15 = arith.constant 0 : index
    %36 = vector.load %arg8[%c0_14, %c0_15] : memref<2x64xf32, #tpu.memory_space<vmem>>, vector<2x64xf32>
    tpu.vector_store %arg8[%c0_14, %c0_15], %32 {strides = array<i32>} : memref<2x64xf32, #tpu.memory_space<vmem>>, vector<2x64xf32>,
    %c0_16 = arith.constant 0 : index
    %c0_17 = arith.constant 0 : index
    %37 = vector.load %arg3[%c0_16, %c0_17] : memref<2x1xi32, #tpu.memory_space<vmem>>, vector<2x1xi32>
    %38 = vector.broadcast %arg0 : i32 to vector<2x1xi32>
    %39 = arith.cmpi eq, %37, %38 : vector<2x1xi32>
    %c0_18 = arith.constant 0 : index
    %c0_19 = arith.constant 0 : index
    %40 = vector.load %arg9[%c0_18, %c0_19] : memref<2x64xf32, #tpu.memory_space<vmem>>, vector<2x64xf32>
    %41 = vector.shape_cast %39 : vector<2x1xi1> to vector<2x1xi1>
    %42 = vector.broadcast %41 : vector<2x1xi1> to vector<2x64xi1>
    %43 = arith.select %42, %34, %40 : vector<2x64xi1>, vector<2x64xf32>
    %c0_20 = arith.constant 0 : index
    %c0_21 = arith.constant 0 : index
    %44 = vector.load %arg9[%c0_20, %c0_21] : memref<2x64xf32, #tpu.memory_space<vmem>>, vector<2x64xf32>
    tpu.vector_store %arg9[%c0_20, %c0_21], %43 {strides = array<i32>} : memref<2x64xf32, #tpu.memory_space<vmem>>, vector<2x64xf32>,
    %c2_i32 = arith.constant 2 : i32
    %45 = arith.cmpi eq, %arg0, %c2_i32 : i32
    %46 = arith.extui %45 : i1 to i32
    %c0_i32_22 = arith.constant 0 : i32
    %47 = arith.cmpi ne, %46, %c0_i32_22 : i32
    scf.if %47 {
      %c0_23 = arith.constant 0 : index
      %c0_24 = arith.constant 0 : index
      %48 = vector.load %arg9[%c0_23, %c0_24] : memref<2x64xf32, #tpu.memory_space<vmem>>, vector<2x64xf32>
      %c0_25 = arith.constant 0 : index
      %c0_26 = arith.constant 0 : index
      %49 = vector.load %arg4[%c0_25, %c0_26] : memref<64x3xf32, #tpu.memory_space<vmem>>, vector<64x3xf32>
      %cst_27 = arith.constant dense<0.000000e+00> : vector<2x3xf32>
      %50 = tpu.matmul %48, %49, %cst_27 {dimension_numbers = #tpu.dot_dimension_numbers<[1], [0], [0], [1], [0, 0, 1, 1], [], []>} : vector<2x64xf32>, vector<64x3xf32>, vector<2x3xf32> -> vector<2x3xf32>
      %c0_28 = arith.constant 0 : index
      %c0_29 = arith.constant 0 : index
      %51 = vector.load %arg5[%c0_28, %c0_29] : memref<1x3xf32, #tpu.memory_space<vmem>>, vector<1x3xf32>
      %52 = vector.broadcast %51 : vector<1x3xf32> to vector<2x3xf32>
      %53 = arith.addf %50, %52 : vector<2x3xf32>
      %c0_30 = arith.constant 0 : index
      %c0_31 = arith.constant 0 : index
      %54 = vector.load %arg6[%c0_30, %c0_31] : memref<2x3xf32, #tpu.memory_space<vmem>>, vector<2x3xf32>
      tpu.vector_store %arg6[%c0_30, %c0_31], %53 {strides = array<i32>} : memref<2x3xf32, #tpu.memory_space<vmem>>, vector<2x3xf32>,
    } else {
    }
    return
  }
  func.func @transform_0(%arg0: i32) -> (i32, i32, i32) {
    %c0_i32 = arith.constant 0 : i32
    %c0_i32_0 = arith.constant 0 : i32
    %c0_i32_1 = arith.constant 0 : i32
    return %arg0, %c0_i32, %c0_i32_0 : i32, i32, i32
  }
  func.func @transform_1(%arg0: i32) -> (i32, i32) {
    %c0_i32 = arith.constant 0 : i32
    %c0_i32_0 = arith.constant 0 : i32
    %c0_i32_1 = arith.constant 0 : i32
    return %c0_i32, %c0_i32_0 : i32, i32
  }
  func.func @transform_2(%arg0: i32) -> (i32, i32) {
    %c0_i32 = arith.constant 0 : i32
    %c0_i32_0 = arith.constant 0 : i32
    %c0_i32_1 = arith.constant 0 : i32
    return %c0_i32, %c0_i32_0 : i32, i32
  }
  func.func @transform_3(%arg0: i32) -> (i32, i32) {
    %c0_i32 = arith.constant 0 : i32
    %c0_i32_0 = arith.constant 0 : i32
    %c0_i32_1 = arith.constant 0 : i32
    return %c0_i32, %c0_i32_0 : i32, i32
  }
  func.func @transform_4(%arg0: i32) -> (i32, i32) {
    %c0_i32 = arith.constant 0 : i32
    %c0_i32_0 = arith.constant 0 : i32
    %c0_i32_1 = arith.constant 0 : i32
    return %c0_i32, %c0_i32_0 : i32, i32
  }
  func.func @transform_5(%arg0: i32) -> (i32, i32) {
    %c0_i32 = arith.constant 0 : i32
    %c0_i32_0 = arith.constant 0 : i32
    %c0_i32_1 = arith.constant 0 : i32
    return %c0_i32, %c0_i32_0 : i32, i32
  }
}

module attributes {stable_mosaic.version = 11 : i64} {
  func.func @_pred_pool_kernel(%arg0: memref<6x4xf32, #tpu.memory_space<vmem>>, %arg1: memref<6x16xf32, #tpu.memory_space<vmem>>, %arg2: memref<4x16xf32, #tpu.memory_space<vmem>>, %arg3: memref<16x16xf32, #tpu.memory_space<vmem>>, %arg4: memref<1x16xf32, #tpu.memory_space<vmem>>, %arg5: memref<1x16xf32, #tpu.memory_space<vmem>>, %arg6: memref<16x256xf32, #tpu.memory_space<vmem>>, %arg7: memref<1x256xf32, #tpu.memory_space<vmem>>, %arg8: memref<6x256xf32, #tpu.memory_space<vmem>>) attributes {dimension_semantics = [], scalar_prefetch = 0 : i64, scratch_operands = 0 : i64, tpu.core_type = #tpu.core_type<tc>} {
    %c0 = arith.constant 0 : index
    %c0_0 = arith.constant 0 : index
    %0 = vector.load %arg0[%c0, %c0_0] : memref<6x4xf32, #tpu.memory_space<vmem>>, vector<6x4xf32>
    %c0_1 = arith.constant 0 : index
    %c0_2 = arith.constant 0 : index
    %1 = vector.load %arg2[%c0_1, %c0_2] : memref<4x16xf32, #tpu.memory_space<vmem>>, vector<4x16xf32>
    %cst = arith.constant dense<0.000000e+00> : vector<6x16xf32>
    %2 = tpu.matmul %0, %1, %cst {dimension_numbers = #tpu.dot_dimension_numbers<[1], [0], [0], [1], [0, 0, 1, 1], [], []>} : vector<6x4xf32>, vector<4x16xf32>, vector<6x16xf32> -> vector<6x16xf32>
    %c0_3 = arith.constant 0 : index
    %c0_4 = arith.constant 0 : index
    %3 = vector.load %arg1[%c0_3, %c0_4] : memref<6x16xf32, #tpu.memory_space<vmem>>, vector<6x16xf32>
    %c0_5 = arith.constant 0 : index
    %c0_6 = arith.constant 0 : index
    %4 = vector.load %arg3[%c0_5, %c0_6] : memref<16x16xf32, #tpu.memory_space<vmem>>, vector<16x16xf32>
    %cst_7 = arith.constant dense<0.000000e+00> : vector<6x16xf32>
    %5 = tpu.matmul %2, %4, %cst_7 {dimension_numbers = #tpu.dot_dimension_numbers<[1], [0], [0], [1], [0, 0, 1, 1], [], []>} : vector<6x16xf32>, vector<16x16xf32>, vector<6x16xf32> -> vector<6x16xf32>
    %c0_8 = arith.constant 0 : index
    %c0_9 = arith.constant 0 : index
    %6 = vector.load %arg4[%c0_8, %c0_9] : memref<1x16xf32, #tpu.memory_space<vmem>>, vector<1x16xf32>
    %7 = vector.broadcast %6 : vector<1x16xf32> to vector<6x16xf32>
    %8 = arith.addf %5, %7 : vector<6x16xf32>
    %9 = math.tanh %8 : vector<6x16xf32>
    %c0_10 = arith.constant 0 : index
    %c0_11 = arith.constant 0 : index
    %10 = vector.load %arg3[%c0_10, %c0_11] : memref<16x16xf32, #tpu.memory_space<vmem>>, vector<16x16xf32>
    %cst_12 = arith.constant dense<0.000000e+00> : vector<6x16xf32>
    %11 = tpu.matmul %3, %10, %cst_12 {dimension_numbers = #tpu.dot_dimension_numbers<[1], [0], [0], [1], [0, 0, 1, 1], [], []>} : vector<6x16xf32>, vector<16x16xf32>, vector<6x16xf32> -> vector<6x16xf32>
    %c0_13 = arith.constant 0 : index
    %c0_14 = arith.constant 0 : index
    %12 = vector.load %arg4[%c0_13, %c0_14] : memref<1x16xf32, #tpu.memory_space<vmem>>, vector<1x16xf32>
    %13 = vector.broadcast %12 : vector<1x16xf32> to vector<6x16xf32>
    %14 = arith.addf %11, %13 : vector<6x16xf32>
    %15 = math.tanh %14 : vector<6x16xf32>
    %c0_15 = arith.constant 0 : index
    %c0_16 = arith.constant 0 : index
    %16 = vector.load %arg5[%c0_15, %c0_16] : memref<1x16xf32, #tpu.memory_space<vmem>>, vector<1x16xf32>
    %17 = vector.broadcast %16 : vector<1x16xf32> to vector<6x16xf32>
    %18 = arith.mulf %9, %17 : vector<6x16xf32>
    %cst_17 = arith.constant dense<0.000000e+00> : vector<6xf32>
    %19 = vector.multi_reduction <add>, %18, %cst_17 [1] : vector<6x16xf32> to vector<6xf32>
    %20 = vector.shape_cast %19 : vector<6xf32> to vector<6x1xf32>
    %21 = vector.broadcast %16 : vector<1x16xf32> to vector<6x16xf32>
    %22 = arith.mulf %15, %21 : vector<6x16xf32>
    %cst_18 = arith.constant dense<0.000000e+00> : vector<6xf32>
    %23 = vector.multi_reduction <add>, %22, %cst_18 [1] : vector<6x16xf32> to vector<6xf32>
    %24 = vector.shape_cast %23 : vector<6xf32> to vector<6x1xf32>
    %25 = arith.maximumf %20, %24 : vector<6x1xf32>
    %26 = arith.subf %20, %25 : vector<6x1xf32>
    %27 = math.exp %26 : vector<6x1xf32>
    %28 = arith.subf %24, %25 : vector<6x1xf32>
    %29 = math.exp %28 : vector<6x1xf32>
    %30 = vector.broadcast %27 : vector<6x1xf32> to vector<6x16xf32>
    %31 = arith.mulf %2, %30 : vector<6x16xf32>
    %32 = vector.broadcast %29 : vector<6x1xf32> to vector<6x16xf32>
    %33 = arith.mulf %3, %32 : vector<6x16xf32>
    %34 = arith.addf %31, %33 : vector<6x16xf32>
    %35 = arith.addf %27, %29 : vector<6x1xf32>
    %36 = vector.broadcast %35 : vector<6x1xf32> to vector<6x16xf32>
    %37 = arith.divf %34, %36 : vector<6x16xf32>
    %c0_19 = arith.constant 0 : index
    %c0_20 = arith.constant 0 : index
    %38 = vector.load %arg6[%c0_19, %c0_20] : memref<16x256xf32, #tpu.memory_space<vmem>>, vector<16x256xf32>
    %cst_21 = arith.constant dense<0.000000e+00> : vector<6x256xf32>
    %39 = tpu.matmul %37, %38, %cst_21 {dimension_numbers = #tpu.dot_dimension_numbers<[1], [0], [0], [1], [0, 0, 1, 1], [], []>} : vector<6x16xf32>, vector<16x256xf32>, vector<6x256xf32> -> vector<6x256xf32>
    %c0_22 = arith.constant 0 : index
    %c0_23 = arith.constant 0 : index
    %40 = vector.load %arg7[%c0_22, %c0_23] : memref<1x256xf32, #tpu.memory_space<vmem>>, vector<1x256xf32>
    %41 = vector.broadcast %40 : vector<1x256xf32> to vector<6x256xf32>
    %42 = arith.addf %39, %41 : vector<6x256xf32>
    %c0_24 = arith.constant 0 : index
    %c0_25 = arith.constant 0 : index
    %43 = vector.load %arg8[%c0_24, %c0_25] : memref<6x256xf32, #tpu.memory_space<vmem>>, vector<6x256xf32>
    tpu.vector_store %arg8[%c0_24, %c0_25], %42 {strides = array<i32>} : memref<6x256xf32, #tpu.memory_space<vmem>>, vector<6x256xf32>,
    return
  }
}

module attributes {stable_mosaic.version = 11 : i64} {
  func.func @_vae_head_kernel(%arg0: memref<6x20xf32, #tpu.memory_space<vmem>>, %arg1: memref<20x32xf32, #tpu.memory_space<vmem>>, %arg2: memref<1x32xf32, #tpu.memory_space<vmem>>, %arg3: memref<6x16xf32, #tpu.memory_space<vmem>>, %arg4: memref<6x4xf32, #tpu.memory_space<vmem>>, %arg5: memref<16x128xf32, #tpu.memory_space<vmem>>, %arg6: memref<4x128xf32, #tpu.memory_space<vmem>>, %arg7: memref<1x128xf32, #tpu.memory_space<vmem>>, %arg8: memref<1x1xf32, #tpu.memory_space<vmem>>, %arg9: memref<6x128xf32, #tpu.memory_space<vmem>>) attributes {dimension_semantics = [], scalar_prefetch = 0 : i64, scratch_operands = 0 : i64, tpu.core_type = #tpu.core_type<tc>} {
    %c0 = arith.constant 0 : index
    %c0_0 = arith.constant 0 : index
    %0 = vector.load %arg0[%c0, %c0_0] : memref<6x20xf32, #tpu.memory_space<vmem>>, vector<6x20xf32>
    %c0_1 = arith.constant 0 : index
    %c0_2 = arith.constant 0 : index
    %1 = vector.load %arg1[%c0_1, %c0_2] : memref<20x32xf32, #tpu.memory_space<vmem>>, vector<20x32xf32>
    %cst = arith.constant dense<0.000000e+00> : vector<6x32xf32>
    %2 = tpu.matmul %0, %1, %cst {dimension_numbers = #tpu.dot_dimension_numbers<[1], [0], [0], [1], [0, 0, 1, 1], [], []>} : vector<6x20xf32>, vector<20x32xf32>, vector<6x32xf32> -> vector<6x32xf32>
    %c0_3 = arith.constant 0 : index
    %c0_4 = arith.constant 0 : index
    %3 = vector.load %arg2[%c0_3, %c0_4] : memref<1x32xf32, #tpu.memory_space<vmem>>, vector<1x32xf32>
    %4 = vector.broadcast %3 : vector<1x32xf32> to vector<6x32xf32>
    %5 = arith.addf %2, %4 : vector<6x32xf32>
    %6 = vector.extract_strided_slice %5 {offsets = [0, 0], sizes = [6, 16], strides = [1, 1]} : vector<6x32xf32> to vector<6x16xf32>
    %7 = vector.extract_strided_slice %5 {offsets = [0, 16], sizes = [6, 16], strides = [1, 1]} : vector<6x32xf32> to vector<6x16xf32>
    %8 = arith.mulf %6, %6 : vector<6x16xf32>
    %9 = arith.subf %7, %8 : vector<6x16xf32>
    %10 = math.exp %7 : vector<6x16xf32>
    %11 = arith.subf %9, %10 : vector<6x16xf32>
    %cst_5 = arith.constant 1.000000e+00 : f32
    %12 = vector.broadcast %cst_5 : f32 to vector<6x16xf32>
    %13 = arith.addf %11, %12 : vector<6x16xf32>
    %14 = vector.shape_cast %13 : vector<6x16xf32> to vector<1x6x16xf32>
    %cst_6 = arith.constant dense<0.000000e+00> : vector<1xf32>
    %15 = vector.multi_reduction <add>, %14, %cst_6 [1, 2] : vector<1x6x16xf32> to vector<1xf32>
    %16 = vector.shape_cast %15 : vector<1xf32> to vector<1x1x1xf32>
    %17 = vector.extract %16[0, 0, 0] : f32 from vector<1x1x1xf32>
    %cst_7 = arith.constant -5.000000e-01 : f32
    %18 = arith.mulf %cst_7, %17 : f32
    %cst_8 = arith.constant 6.000000e+00 : f32
    %19 = arith.divf %18, %cst_8 : f32
    %20 = vector.broadcast %19 : f32 to vector<1x1xf32>
    %c0_9 = arith.constant 0 : index
    %c0_10 = arith.constant 0 : index
    %21 = vector.load %arg8[%c0_9, %c0_10] : memref<1x1xf32, #tpu.memory_space<vmem>>, vector<1x1xf32>
    tpu.vector_store %arg8[%c0_9, %c0_10], %20 {strides = array<i32>} : memref<1x1xf32, #tpu.memory_space<vmem>>, vector<1x1xf32>,
    %c0_11 = arith.constant 0 : index
    %c0_12 = arith.constant 0 : index
    %22 = vector.load %arg3[%c0_11, %c0_12] : memref<6x16xf32, #tpu.memory_space<vmem>>, vector<6x16xf32>
    %cst_13 = arith.constant 5.000000e-01 : f32
    %23 = vector.broadcast %cst_13 : f32 to vector<6x16xf32>
    %24 = arith.mulf %23, %7 : vector<6x16xf32>
    %25 = math.exp %24 : vector<6x16xf32>
    %26 = arith.mulf %22, %25 : vector<6x16xf32>
    %27 = arith.addf %6, %26 : vector<6x16xf32>
    %c0_14 = arith.constant 0 : index
    %c0_15 = arith.constant 0 : index
    %28 = vector.load %arg5[%c0_14, %c0_15] : memref<16x128xf32, #tpu.memory_space<vmem>>, vector<16x128xf32>
    %cst_16 = arith.constant dense<0.000000e+00> : vector<6x128xf32>
    %29 = tpu.matmul %27, %28, %cst_16 {dimension_numbers = #tpu.dot_dimension_numbers<[1], [0], [0], [1], [0, 0, 1, 1], [], []>} : vector<6x16xf32>, vector<16x128xf32>, vector<6x128xf32> -> vector<6x128xf32>
    %c0_17 = arith.constant 0 : index
    %c0_18 = arith.constant 0 : index
    %30 = vector.load %arg4[%c0_17, %c0_18] : memref<6x4xf32, #tpu.memory_space<vmem>>, vector<6x4xf32>
    %c0_19 = arith.constant 0 : index
    %c0_20 = arith.constant 0 : index
    %31 = vector.load %arg6[%c0_19, %c0_20] : memref<4x128xf32, #tpu.memory_space<vmem>>, vector<4x128xf32>
    %cst_21 = arith.constant dense<0.000000e+00> : vector<6x128xf32>
    %32 = tpu.matmul %30, %31, %cst_21 {dimension_numbers = #tpu.dot_dimension_numbers<[1], [0], [0], [1], [0, 0, 1, 1], [], []>} : vector<6x4xf32>, vector<4x128xf32>, vector<6x128xf32> -> vector<6x128xf32>
    %33 = arith.addf %29, %32 : vector<6x128xf32>
    %c0_22 = arith.constant 0 : index
    %c0_23 = arith.constant 0 : index
    %34 = vector.load %arg7[%c0_22, %c0_23] : memref<1x128xf32, #tpu.memory_space<vmem>>, vector<1x128xf32>
    %35 = vector.broadcast %34 : vector<1x128xf32> to vector<6x128xf32>
    %36 = arith.addf %33, %35 : vector<6x128xf32>
    %c0_24 = arith.constant 0 : index
    %c0_25 = arith.constant 0 : index
    %37 = vector.load %arg9[%c0_24, %c0_25] : memref<6x128xf32, #tpu.memory_space<vmem>>, vector<6x128xf32>
    tpu.vector_store %arg9[%c0_24, %c0_25], %36 {strides = array<i32>} : memref<6x128xf32, #tpu.memory_space<vmem>>, vector<6x128xf32>,
    return
  }
}

module attributes {stable_mosaic.version = 11 : i64} {
  func.func @_gen_gates_kernel(%arg0: i32, %arg1: memref<48x32xf32, #tpu.memory_space<vmem>>, %arg2: memref<48x32xf32, #tpu.memory_space<vmem>>, %arg3: memref<1x32xf32, #tpu.memory_space<vmem>>, %arg4: memref<1x32xf32, #tpu.memory_space<vmem>>, %arg5: memref<1x32xf32, #tpu.memory_space<vmem>>, %arg6: memref<32x128xf32, #tpu.memory_space<vmem>>, %arg7: memref<48x128xf32, #tpu.memory_space<vmem>>) attributes {dimension_semantics = [#tpu.dimension_semantics<parallel>], iteration_bounds = array<i64: 1>, scalar_prefetch = 0 : i64, scratch_operands = 0 : i64, tpu.core_type = #tpu.core_type<tc>, window_params = [{transform_indices = @transform_0, window_bounds = array<i64: 48, 32>}, {transform_indices = @transform_1, window_bounds = array<i64: 48, 32>}, {pipeline_mode = #tpu.pipeline_mode<synchronous>, transform_indices = @transform_2, window_bounds = array<i64: 1, 32>}, {pipeline_mode = #tpu.pipeline_mode<synchronous>, transform_indices = @transform_3, window_bounds = array<i64: 1, 32>}, {pipeline_mode = #tpu.pipeline_mode<synchronous>, transform_indices = @transform_4, window_bounds = array<i64: 1, 32>}, {pipeline_mode = #tpu.pipeline_mode<synchronous>, transform_indices = @transform_5, window_bounds = array<i64: 32, 128>}, {transform_indices = @transform_6, window_bounds = array<i64: 48, 128>}]} {
    %c0 = arith.constant 0 : index
    %c0_0 = arith.constant 0 : index
    %0 = vector.load %arg1[%c0, %c0_0] : memref<48x32xf32, #tpu.memory_space<vmem>>, vector<48x32xf32>
    %c0_1 = arith.constant 0 : index
    %c0_2 = arith.constant 0 : index
    %1 = vector.load %arg2[%c0_1, %c0_2] : memref<48x32xf32, #tpu.memory_space<vmem>>, vector<48x32xf32>
    %2 = arith.addf %0, %1 : vector<48x32xf32>
    %c0_3 = arith.constant 0 : index
    %c0_4 = arith.constant 0 : index
    %3 = vector.load %arg3[%c0_3, %c0_4] : memref<1x32xf32, #tpu.memory_space<vmem>>, vector<1x32xf32>
    %4 = vector.broadcast %3 : vector<1x32xf32> to vector<48x32xf32>
    %5 = arith.addf %2, %4 : vector<48x32xf32>
    %cst = arith.constant dense<0.000000e+00> : vector<48xf32>
    %6 = vector.multi_reduction <add>, %5, %cst [1] : vector<48x32xf32> to vector<48xf32>
    %7 = vector.shape_cast %6 : vector<48xf32> to vector<48x1xf32>
    %cst_5 = arith.constant 3.200000e+01 : f32
    %8 = vector.broadcast %cst_5 : f32 to vector<48x1xf32>
    %9 = arith.divf %7, %8 : vector<48x1xf32>
    %10 = vector.broadcast %9 : vector<48x1xf32> to vector<48x32xf32>
    %11 = arith.subf %5, %10 : vector<48x32xf32>
    %12 = arith.mulf %11, %11 : vector<48x32xf32>
    %cst_6 = arith.constant dense<0.000000e+00> : vector<48xf32>
    %13 = vector.multi_reduction <add>, %12, %cst_6 [1] : vector<48x32xf32> to vector<48xf32>
    %14 = vector.shape_cast %13 : vector<48xf32> to vector<48x1xf32>
    %cst_7 = arith.constant 3.200000e+01 : f32
    %15 = vector.broadcast %cst_7 : f32 to vector<48x1xf32>
    %16 = arith.divf %14, %15 : vector<48x1xf32>
    %17 = vector.broadcast %9 : vector<48x1xf32> to vector<48x32xf32>
    %18 = arith.subf %5, %17 : vector<48x32xf32>
    %cst_8 = arith.constant 9.99999996E-13 : f32
    %19 = vector.broadcast %cst_8 : f32 to vector<48x1xf32>
    %20 = arith.addf %16, %19 : vector<48x1xf32>
    %21 = math.rsqrt %20 : vector<48x1xf32>
    %22 = vector.broadcast %21 : vector<48x1xf32> to vector<48x32xf32>
    %23 = arith.mulf %18, %22 : vector<48x32xf32>
    %c0_9 = arith.constant 0 : index
    %c0_10 = arith.constant 0 : index
    %24 = vector.load %arg4[%c0_9, %c0_10] : memref<1x32xf32, #tpu.memory_space<vmem>>, vector<1x32xf32>
    %25 = vector.broadcast %24 : vector<1x32xf32> to vector<48x32xf32>
    %26 = arith.mulf %23, %25 : vector<48x32xf32>
    %c0_11 = arith.constant 0 : index
    %c0_12 = arith.constant 0 : index
    %27 = vector.load %arg5[%c0_11, %c0_12] : memref<1x32xf32, #tpu.memory_space<vmem>>, vector<1x32xf32>
    %28 = vector.broadcast %27 : vector<1x32xf32> to vector<48x32xf32>
    %29 = arith.addf %26, %28 : vector<48x32xf32>
    %c0_13 = arith.constant 0 : index
    %c0_14 = arith.constant 0 : index
    %30 = vector.load %arg6[%c0_13, %c0_14] : memref<32x128xf32, #tpu.memory_space<vmem>>, vector<32x128xf32>
    %cst_15 = arith.constant dense<0.000000e+00> : vector<48x128xf32>
    %31 = tpu.matmul %29, %30, %cst_15 {dimension_numbers = #tpu.dot_dimension_numbers<[1], [0], [0], [1], [0, 0, 1, 1], [], []>} : vector<48x32xf32>, vector<32x128xf32>, vector<48x128xf32> -> vector<48x128xf32>
    %c0_16 = arith.constant 0 : index
    %c0_17 = arith.constant 0 : index
    %32 = vector.load %arg7[%c0_16, %c0_17] : memref<48x128xf32, #tpu.memory_space<vmem>>, vector<48x128xf32>
    tpu.vector_store %arg7[%c0_16, %c0_17], %31 {strides = array<i32>} : memref<48x128xf32, #tpu.memory_space<vmem>>, vector<48x128xf32>,
    return
  }
  func.func @transform_0(%arg0: i32) -> (i32, i32) {
    %c0_i32 = arith.constant 0 : i32
    %c0_i32_0 = arith.constant 0 : i32
    return %arg0, %c0_i32 : i32, i32
  }
  func.func @transform_1(%arg0: i32) -> (i32, i32) {
    %c0_i32 = arith.constant 0 : i32
    %c0_i32_0 = arith.constant 0 : i32
    return %arg0, %c0_i32 : i32, i32
  }
  func.func @transform_2(%arg0: i32) -> (i32, i32) {
    %c0_i32 = arith.constant 0 : i32
    %c0_i32_0 = arith.constant 0 : i32
    %c0_i32_1 = arith.constant 0 : i32
    return %c0_i32, %c0_i32_0 : i32, i32
  }
  func.func @transform_3(%arg0: i32) -> (i32, i32) {
    %c0_i32 = arith.constant 0 : i32
    %c0_i32_0 = arith.constant 0 : i32
    %c0_i32_1 = arith.constant 0 : i32
    return %c0_i32, %c0_i32_0 : i32, i32
  }
  func.func @transform_4(%arg0: i32) -> (i32, i32) {
    %c0_i32 = arith.constant 0 : i32
    %c0_i32_0 = arith.constant 0 : i32
    %c0_i32_1 = arith.constant 0 : i32
    return %c0_i32, %c0_i32_0 : i32, i32
  }
  func.func @transform_5(%arg0: i32) -> (i32, i32) {
    %c0_i32 = arith.constant 0 : i32
    %c0_i32_0 = arith.constant 0 : i32
    %c0_i32_1 = arith.constant 0 : i32
    return %c0_i32, %c0_i32_0 : i32, i32
  }
  func.func @transform_6(%arg0: i32) -> (i32, i32) {
    %c0_i32 = arith.constant 0 : i32
    %c0_i32_0 = arith.constant 0 : i32
    return %arg0, %c0_i32 : i32, i32
  }
}

module attributes {stable_mosaic.version = 11 : i64} {
  func.func @_gen_lstm_kernel(%arg0: i32, %arg1: memref<1x6x128xf32, #tpu.memory_space<vmem>>, %arg2: memref<6x128xf32, #tpu.memory_space<vmem>>, %arg3: memref<32x128xf32, #tpu.memory_space<vmem>>, %arg4: memref<32x128xf32, #tpu.memory_space<vmem>>, %arg5: memref<32x128xf32, #tpu.memory_space<vmem>>, %arg6: memref<1x128xf32, #tpu.memory_space<vmem>>, %arg7: memref<32x64xf32, #tpu.memory_space<vmem>>, %arg8: memref<1x64xf32, #tpu.memory_space<vmem>>, %arg9: memref<1x6x64xf32, #tpu.memory_space<vmem>>, %arg10: memref<6x32xf32, #tpu.memory_space<vmem>>, %arg11: memref<6x32xf32, #tpu.memory_space<vmem>>, %arg12: memref<6x32xf32, #tpu.memory_space<vmem>>, %arg13: memref<6x32xf32, #tpu.memory_space<vmem>>) attributes {dimension_semantics = [#tpu.dimension_semantics<arbitrary>], iteration_bounds = array<i64: 8>, scalar_prefetch = 0 : i64, scratch_operands = 4 : i64, tpu.core_type = #tpu.core_type<tc>, window_params = [{transform_indices = @transform_0, window_bounds = array<i64: 1, 6, 128>}, {pipeline_mode = #tpu.pipeline_mode<synchronous>, transform_indices = @transform_1, window_bounds = array<i64: 6, 128>}, {pipeline_mode = #tpu.pipeline_mode<synchronous>, transform_indices = @transform_2, window_bounds = array<i64: 32, 128>}, {pipeline_mode = #tpu.pipeline_mode<synchronous>, transform_indices = @transform_3, window_bounds = array<i64: 32, 128>}, {pipeline_mode = #tpu.pipeline_mode<synchronous>, transform_indices = @transform_4, window_bounds = array<i64: 32, 128>}, {pipeline_mode = #tpu.pipeline_mode<synchronous>, transform_indices = @transform_5, window_bounds = array<i64: 1, 128>}, {pipeline_mode = #tpu.pipeline_mode<synchronous>, transform_indices = @transform_6, window_bounds = array<i64: 32, 64>}, {pipeline_mode = #tpu.pipeline_mode<synchronous>, transform_indices = @transform_7, window_bounds = array<i64: 1, 64>}, {transform_indices = @transform_8, window_bounds = array<i64: 1, 6, 64>}]} {
    %c0_i32 = arith.constant 0 : i32
    %0 = arith.cmpi eq, %arg0, %c0_i32 : i32
    %1 = arith.extui %0 : i1 to i32
    %c0_i32_0 = arith.constant 0 : i32
    %2 = arith.cmpi ne, %1, %c0_i32_0 : i32
    scf.if %2 {
      %cst_45 = arith.constant 0.000000e+00 : f32
      %84 = vector.broadcast %cst_45 : f32 to vector<6x32xf32>
      %c0_46 = arith.constant 0 : index
      %c0_47 = arith.constant 0 : index
      %85 = vector.load %arg10[%c0_46, %c0_47] : memref<6x32xf32, #tpu.memory_space<vmem>>, vector<6x32xf32>
      tpu.vector_store %arg10[%c0_46, %c0_47], %84 {strides = array<i32>} : memref<6x32xf32, #tpu.memory_space<vmem>>, vector<6x32xf32>,
      %cst_48 = arith.constant 0.000000e+00 : f32
      %86 = vector.broadcast %cst_48 : f32 to vector<6x32xf32>
      %c0_49 = arith.constant 0 : index
      %c0_50 = arith.constant 0 : index
      %87 = vector.load %arg11[%c0_49, %c0_50] : memref<6x32xf32, #tpu.memory_space<vmem>>, vector<6x32xf32>
      tpu.vector_store %arg11[%c0_49, %c0_50], %86 {strides = array<i32>} : memref<6x32xf32, #tpu.memory_space<vmem>>, vector<6x32xf32>,
      %cst_51 = arith.constant 0.000000e+00 : f32
      %88 = vector.broadcast %cst_51 : f32 to vector<6x32xf32>
      %c0_52 = arith.constant 0 : index
      %c0_53 = arith.constant 0 : index
      %89 = vector.load %arg12[%c0_52, %c0_53] : memref<6x32xf32, #tpu.memory_space<vmem>>, vector<6x32xf32>
      tpu.vector_store %arg12[%c0_52, %c0_53], %88 {strides = array<i32>} : memref<6x32xf32, #tpu.memory_space<vmem>>, vector<6x32xf32>,
      %cst_54 = arith.constant 0.000000e+00 : f32
      %90 = vector.broadcast %cst_54 : f32 to vector<6x32xf32>
      %c0_55 = arith.constant 0 : index
      %c0_56 = arith.constant 0 : index
      %91 = vector.load %arg13[%c0_55, %c0_56] : memref<6x32xf32, #tpu.memory_space<vmem>>, vector<6x32xf32>
      tpu.vector_store %arg13[%c0_55, %c0_56], %90 {strides = array<i32>} : memref<6x32xf32, #tpu.memory_space<vmem>>, vector<6x32xf32>,
    } else {
    }
    %c0 = arith.constant 0 : index
    %c0_1 = arith.constant 0 : index
    %3 = vector.load %arg10[%c0, %c0_1] : memref<6x32xf32, #tpu.memory_space<vmem>>, vector<6x32xf32>
    %c0_2 = arith.constant 0 : index
    %c0_3 = arith.constant 0 : index
    %4 = vector.load %arg11[%c0_2, %c0_3] : memref<6x32xf32, #tpu.memory_space<vmem>>, vector<6x32xf32>
    %c0_4 = arith.constant 0 : index
    %c0_5 = arith.constant 0 : index
    %c0_6 = arith.constant 0 : index
    %5 = vector.load %arg1[%c0_4, %c0_5, %c0_6] : memref<1x6x128xf32, #tpu.memory_space<vmem>>, vector<1x6x128xf32>
    %6 = vector.shape_cast %5 : vector<1x6x128xf32> to vector<6x128xf32>
    %c0_7 = arith.constant 0 : index
    %c0_8 = arith.constant 0 : index
    %7 = vector.load %arg2[%c0_7, %c0_8] : memref<6x128xf32, #tpu.memory_space<vmem>>, vector<6x128xf32>
    %8 = arith.addf %6, %7 : vector<6x128xf32>
    %c0_9 = arith.constant 0 : index
    %c0_10 = arith.constant 0 : index
    %9 = vector.load %arg3[%c0_9, %c0_10] : memref<32x128xf32, #tpu.memory_space<vmem>>, vector<32x128xf32>
    %cst = arith.constant dense<0.000000e+00> : vector<6x128xf32>
    %10 = tpu.matmul %3, %9, %cst {dimension_numbers = #tpu.dot_dimension_numbers<[1], [0], [0], [1], [0, 0, 1, 1], [], []>} : vector<6x32xf32>, vector<32x128xf32>, vector<6x128xf32> -> vector<6x128xf32>
    %11 = arith.addf %8, %10 : vector<6x128xf32>
    %12 = vector.extract_strided_slice %11 {offsets = [0, 0], sizes = [6, 32], strides = [1, 1]} : vector<6x128xf32> to vector<6x32xf32>
    %13 = arith.negf %12 : vector<6x32xf32>
    %14 = math.exp %13 : vector<6x32xf32>
    %cst_11 = arith.constant 1.000000e+00 : f32
    %15 = vector.broadcast %cst_11 : f32 to vector<6x32xf32>
    %16 = arith.addf %15, %14 : vector<6x32xf32>
    %17 = arith.divf %15, %16 : vector<6x32xf32>
    %18 = vector.extract_strided_slice %11 {offsets = [0, 32], sizes = [6, 32], strides = [1, 1]} : vector<6x128xf32> to vector<6x32xf32>
    %19 = arith.negf %18 : vector<6x32xf32>
    %20 = math.exp %19 : vector<6x32xf32>
    %cst_12 = arith.constant 1.000000e+00 : f32
    %21 = vector.broadcast %cst_12 : f32 to vector<6x32xf32>
    %22 = arith.addf %21, %20 : vector<6x32xf32>
    %23 = arith.divf %21, %22 : vector<6x32xf32>
    %24 = vector.extract_strided_slice %11 {offsets = [0, 64], sizes = [6, 32], strides = [1, 1]} : vector<6x128xf32> to vector<6x32xf32>
    %25 = math.tanh %24 : vector<6x32xf32>
    %26 = vector.extract_strided_slice %11 {offsets = [0, 96], sizes = [6, 32], strides = [1, 1]} : vector<6x128xf32> to vector<6x32xf32>
    %27 = arith.negf %26 : vector<6x32xf32>
    %28 = math.exp %27 : vector<6x32xf32>
    %cst_13 = arith.constant 1.000000e+00 : f32
    %29 = vector.broadcast %cst_13 : f32 to vector<6x32xf32>
    %30 = arith.addf %29, %28 : vector<6x32xf32>
    %31 = arith.divf %29, %30 : vector<6x32xf32>
    %32 = arith.mulf %23, %4 : vector<6x32xf32>
    %33 = arith.mulf %17, %25 : vector<6x32xf32>
    %34 = arith.addf %32, %33 : vector<6x32xf32>
    %35 = math.tanh %34 : vector<6x32xf32>
    %36 = arith.mulf %31, %35 : vector<6x32xf32>
    %c0_14 = arith.constant 0 : index
    %c0_15 = arith.constant 0 : index
    %37 = vector.load %arg10[%c0_14, %c0_15] : memref<6x32xf32, #tpu.memory_space<vmem>>, vector<6x32xf32>
    tpu.vector_store %arg10[%c0_14, %c0_15], %36 {strides = array<i32>} : memref<6x32xf32, #tpu.memory_space<vmem>>, vector<6x32xf32>,
    %c0_16 = arith.constant 0 : index
    %c0_17 = arith.constant 0 : index
    %38 = vector.load %arg11[%c0_16, %c0_17] : memref<6x32xf32, #tpu.memory_space<vmem>>, vector<6x32xf32>
    tpu.vector_store %arg11[%c0_16, %c0_17], %34 {strides = array<i32>} : memref<6x32xf32, #tpu.memory_space<vmem>>, vector<6x32xf32>,
    %c0_18 = arith.constant 0 : index
    %c0_19 = arith.constant 0 : index
    %39 = vector.load %arg12[%c0_18, %c0_19] : memref<6x32xf32, #tpu.memory_space<vmem>>, vector<6x32xf32>
    %c0_20 = arith.constant 0 : index
    %c0_21 = arith.constant 0 : index
    %40 = vector.load %arg13[%c0_20, %c0_21] : memref<6x32xf32, #tpu.memory_space<vmem>>, vector<6x32xf32>
    %c0_22 = arith.constant 0 : index
    %c0_23 = arith.constant 0 : index
    %41 = vector.load %arg4[%c0_22, %c0_23] : memref<32x128xf32, #tpu.memory_space<vmem>>, vector<32x128xf32>
    %cst_24 = arith.constant dense<0.000000e+00> : vector<6x128xf32>
    %42 = tpu.matmul %36, %41, %cst_24 {dimension_numbers = #tpu.dot_dimension_numbers<[1], [0], [0], [1], [0, 0, 1, 1], [], []>} : vector<6x32xf32>, vector<32x128xf32>, vector<6x128xf32> -> vector<6x128xf32>
    %c0_25 = arith.constant 0 : index
    %c0_26 = arith.constant 0 : index
    %43 = vector.load %arg5[%c0_25, %c0_26] : memref<32x128xf32, #tpu.memory_space<vmem>>, vector<32x128xf32>
    %cst_27 = arith.constant dense<0.000000e+00> : vector<6x128xf32>
    %44 = tpu.matmul %39, %43, %cst_27 {dimension_numbers = #tpu.dot_dimension_numbers<[1], [0], [0], [1], [0, 0, 1, 1], [], []>} : vector<6x32xf32>, vector<32x128xf32>, vector<6x128xf32> -> vector<6x128xf32>
    %45 = arith.addf %42, %44 : vector<6x128xf32>
    %c0_28 = arith.constant 0 : index
    %c0_29 = arith.constant 0 : index
    %46 = vector.load %arg6[%c0_28, %c0_29] : memref<1x128xf32, #tpu.memory_space<vmem>>, vector<1x128xf32>
    %47 = vector.broadcast %46 : vector<1x128xf32> to vector<6x128xf32>
    %48 = arith.addf %45, %47 : vector<6x128xf32>
    %49 = vector.extract_strided_slice %48 {offsets = [0, 0], sizes = [6, 32], strides = [1, 1]} : vector<6x128xf32> to vector<6x32xf32>
    %50 = arith.negf %49 : vector<6x32xf32>
    %51 = math.exp %50 : vector<6x32xf32>
    %cst_30 = arith.constant 1.000000e+00 : f32
    %52 = vector.broadcast %cst_30 : f32 to vector<6x32xf32>
    %53 = arith.addf %52, %51 : vector<6x32xf32>
    %54 = arith.divf %52, %53 : vector<6x32xf32>
    %55 = vector.extract_strided_slice %48 {offsets = [0, 32], sizes = [6, 32], strides = [1, 1]} : vector<6x128xf32> to vector<6x32xf32>
    %56 = arith.negf %55 : vector<6x32xf32>
    %57 = math.exp %56 : vector<6x32xf32>
    %cst_31 = arith.constant 1.000000e+00 : f32
    %58 = vector.broadcast %cst_31 : f32 to vector<6x32xf32>
    %59 = arith.addf %58, %57 : vector<6x32xf32>
    %60 = arith.divf %58, %59 : vector<6x32xf32>
    %61 = vector.extract_strided_slice %48 {offsets = [0, 64], sizes = [6, 32], strides = [1, 1]} : vector<6x128xf32> to vector<6x32xf32>
    %62 = math.tanh %61 : vector<6x32xf32>
    %63 = vector.extract_strided_slice %48 {offsets = [0, 96], sizes = [6, 32], strides = [1, 1]} : vector<6x128xf32> to vector<6x32xf32>
    %64 = arith.negf %63 : vector<6x32xf32>
    %65 = math.exp %64 : vector<6x32xf32>
    %cst_32 = arith.constant 1.000000e+00 : f32
    %66 = vector.broadcast %cst_32 : f32 to vector<6x32xf32>
    %67 = arith.addf %66, %65 : vector<6x32xf32>
    %68 = arith.divf %66, %67 : vector<6x32xf32>
    %69 = arith.mulf %60, %40 : vector<6x32xf32>
    %70 = arith.mulf %54, %62 : vector<6x32xf32>
    %71 = arith.addf %69, %70 : vector<6x32xf32>
    %72 = math.tanh %71 : vector<6x32xf32>
    %73 = arith.mulf %68, %72 : vector<6x32xf32>
    %c0_33 = arith.constant 0 : index
    %c0_34 = arith.constant 0 : index
    %74 = vector.load %arg12[%c0_33, %c0_34] : memref<6x32xf32, #tpu.memory_space<vmem>>, vector<6x32xf32>
    tpu.vector_store %arg12[%c0_33, %c0_34], %73 {strides = array<i32>} : memref<6x32xf32, #tpu.memory_space<vmem>>, vector<6x32xf32>,
    %c0_35 = arith.constant 0 : index
    %c0_36 = arith.constant 0 : index
    %75 = vector.load %arg13[%c0_35, %c0_36] : memref<6x32xf32, #tpu.memory_space<vmem>>, vector<6x32xf32>
    tpu.vector_store %arg13[%c0_35, %c0_36], %71 {strides = array<i32>} : memref<6x32xf32, #tpu.memory_space<vmem>>, vector<6x32xf32>,
    %c0_37 = arith.constant 0 : index
    %c0_38 = arith.constant 0 : index
    %76 = vector.load %arg7[%c0_37, %c0_38] : memref<32x64xf32, #tpu.memory_space<vmem>>, vector<32x64xf32>
    %cst_39 = arith.constant dense<0.000000e+00> : vector<6x64xf32>
    %77 = tpu.matmul %73, %76, %cst_39 {dimension_numbers = #tpu.dot_dimension_numbers<[1], [0], [0], [1], [0, 0, 1, 1], [], []>} : vector<6x32xf32>, vector<32x64xf32>, vector<6x64xf32> -> vector<6x64xf32>
    %c0_40 = arith.constant 0 : index
    %c0_41 = arith.constant 0 : index
    %78 = vector.load %arg8[%c0_40, %c0_41] : memref<1x64xf32, #tpu.memory_space<vmem>>, vector<1x64xf32>
    %79 = vector.broadcast %78 : vector<1x64xf32> to vector<6x64xf32>
    %80 = arith.addf %77, %79 : vector<6x64xf32>
    %c0_42 = arith.constant 0 : index
    %c0_43 = arith.constant 0 : index
    %c0_44 = arith.constant 0 : index
    %81 = vector.load %arg9[%c0_42, %c0_43, %c0_44] : memref<1x6x64xf32, #tpu.memory_space<vmem>>, vector<1x6x64xf32>
    %82 = vector.shape_cast %81 : vector<1x6x64xf32> to vector<6x64xf32>
    %83 = vector.shape_cast %80 : vector<6x64xf32> to vector<1x6x64xf32>
    tpu.vector_store %arg9[%c0_42, %c0_43, %c0_44], %83 {strides = array<i32>} : memref<1x6x64xf32, #tpu.memory_space<vmem>>, vector<1x6x64xf32>,
    return
  }
  func.func @transform_0(%arg0: i32) -> (i32, i32, i32) {
    %c0_i32 = arith.constant 0 : i32
    %c0_i32_0 = arith.constant 0 : i32
    %c0_i32_1 = arith.constant 0 : i32
    return %arg0, %c0_i32, %c0_i32_0 : i32, i32, i32
  }
  func.func @transform_1(%arg0: i32) -> (i32, i32) {
    %c0_i32 = arith.constant 0 : i32
    %c0_i32_0 = arith.constant 0 : i32
    %c0_i32_1 = arith.constant 0 : i32
    return %c0_i32, %c0_i32_0 : i32, i32
  }
  func.func @transform_2(%arg0: i32) -> (i32, i32) {
    %c0_i32 = arith.constant 0 : i32
    %c0_i32_0 = arith.constant 0 : i32
    %c0_i32_1 = arith.constant 0 : i32
    return %c0_i32, %c0_i32_0 : i32, i32
  }
  func.func @transform_3(%arg0: i32) -> (i32, i32) {
    %c0_i32 = arith.constant 0 : i32
    %c0_i32_0 = arith.constant 0 : i32
    %c0_i32_1 = arith.constant 0 : i32
    return %c0_i32, %c0_i32_0 : i32, i32
  }
  func.func @transform_4(%arg0: i32) -> (i32, i32) {
    %c0_i32 = arith.constant 0 : i32
    %c0_i32_0 = arith.constant 0 : i32
    %c0_i32_1 = arith.constant 0 : i32
    return %c0_i32, %c0_i32_0 : i32, i32
  }
  func.func @transform_5(%arg0: i32) -> (i32, i32) {
    %c0_i32 = arith.constant 0 : i32
    %c0_i32_0 = arith.constant 0 : i32
    %c0_i32_1 = arith.constant 0 : i32
    return %c0_i32, %c0_i32_0 : i32, i32
  }
  func.func @transform_6(%arg0: i32) -> (i32, i32) {
    %c0_i32 = arith.constant 0 : i32
    %c0_i32_0 = arith.constant 0 : i32
    %c0_i32_1 = arith.constant 0 : i32
    return %c0_i32, %c0_i32_0 : i32, i32
  }
  func.func @transform_7(%arg0: i32) -> (i32, i32) {
    %c0_i32 = arith.constant 0 : i32
    %c0_i32_0 = arith.constant 0 : i32
    %c0_i32_1 = arith.constant 0 : i32
    return %c0_i32, %c0_i32_0 : i32, i32
  }
  func.func @transform_8(%arg0: i32) -> (i32, i32, i32) {
    %c0_i32 = arith.constant 0 : i32
    %c0_i32_0 = arith.constant 0 : i32
    %c0_i32_1 = arith.constant 0 : i32
    return %arg0, %c0_i32, %c0_i32_0 : i32, i32, i32
  }
}

</mosaic_0001>

<llo_original>
// kernel: hierachy_vae_forward.7
$region0: #{hierachy_vae_forward.7}
  #allocation0 [shape = 'u32[]', space=smem, size = 0x4, offset = 0x4, fixed_abs, tag = 'smem constant byte address 0x4 - core index']
  #allocation1 [shape = 'u32[144,128]{1,0:T(1,128)}', space=vmem, size = 0x12000, scoped, tag = 'internal scratch']
  %s0 = inlined_call_operand.vmem [shape: f32[6,8,32], index: 0, kind: input, shape index: {}]
  %s1 = inlined_call_operand.vmem [shape: f32[8,32], index: 1, kind: input, shape index: {}]
  %s2 = inlined_call_operand.vmem [shape: f32[1,32], index: 2, kind: input, shape index: {}]
  %s3 = inlined_call_operand.vmem [shape: f32[1,32], index: 3, kind: input, shape index: {}]
  %s4 = inlined_call_operand.vmem [shape: f32[1,32], index: 4, kind: input, shape index: {}]
  %s5 = inlined_call_operand.vmem [shape: f32[32,20], index: 5, kind: input, shape index: {}]
  %s6 = inlined_call_operand.vmem [shape: f32[1,20], index: 6, kind: input, shape index: {}]
  %s7 = inlined_call_operand.vmem [shape: f32[6,20], index: 7, kind: output, shape index: {}]
  %s8 = sld [smem:[#allocation0]]
  $region38: #{hierachy_vae_forward.7} parent=0
    _
  %s10 = ssub.s32 1, %s8
  %s11 = scalar_select 0, %s10, %s8
  // Predicated region
  $region2: #{hierachy_vae_forward.7} parent=0 // pred_check
    _
  $region3: #{hierachy_vae_forward.7} parent=0 // pred_check_branch
    %13 = sbr.rel (0) target = $region5
  $region4: #{hierachy_vae_forward.7} parent=0 // pred_region
    _
  $region5: #{hierachy_vae_forward.7} parent=0 // pred_fallthru
    _
  // Predicated region
  $region6: #{hierachy_vae_forward.7} parent=0 // pred_check
    _
  $region7: #{hierachy_vae_forward.7} parent=0 // pred_check_branch
    %15 = sbr.rel (0) target = $region9
  $region8: #{hierachy_vae_forward.7} parent=0 // pred_region
    _
  $region9: #{hierachy_vae_forward.7} parent=0 // pred_fallthru
    _
  // Predicated region
  $region10: #{hierachy_vae_forward.7} parent=0 // pred_check
    _
  $region11: #{hierachy_vae_forward.7} parent=0 // pred_check_branch
    %17 = sbr.rel (0) target = $region13
  $region12: #{hierachy_vae_forward.7} parent=0 // pred_region
    _
  $region13: #{hierachy_vae_forward.7} parent=0 // pred_fallthru
    _
  // Predicated region
  $region14: #{hierachy_vae_forward.7} parent=0 // pred_check
    _
  $region15: #{hierachy_vae_forward.7} parent=0 // pred_check_branch
    %19 = sbr.rel (0) target = $region17
  $region16: #{hierachy_vae_forward.7} parent=0 // pred_region
    _
  $region17: #{hierachy_vae_forward.7} parent=0 // pred_fallthru
    _
  // Predicated region
  $region18: #{hierachy_vae_forward.7} parent=0 // pred_check
    _
  $region19: #{hierachy_vae_forward.7} parent=0 // pred_check_branch
    %21 = sbr.rel (0) target = $region21
  $region20: #{hierachy_vae_forward.7} parent=0 // pred_region
    _
  $region21: #{hierachy_vae_forward.7} parent=0 // pred_fallthru
    _
  // Predicated region
  $region22: #{hierachy_vae_forward.7} parent=0 // pred_check
    _
  $region23: #{hierachy_vae_forward.7} parent=0 // pred_check_branch
    %23 = sbr.rel (0) target = $region25
  $region24: #{hierachy_vae_forward.7} parent=0 // pred_region
    _
  $region25: #{hierachy_vae_forward.7} parent=0 // pred_fallthru
    _
  // Predicated region
  $region26: #{hierachy_vae_forward.7} parent=0 // pred_check
    _
  $region27: #{hierachy_vae_forward.7} parent=0 // pred_check_branch
    %25 = sbr.rel (0) target = $region29
  $region28: #{hierachy_vae_forward.7} parent=0 // pred_region
    _
  $region29: #{hierachy_vae_forward.7} parent=0 // pred_fallthru
    _
  %v26 = vld [vmem:[%s0] sm:$0xff]
  %v27 = vld [vmem:[%s0 + $0x8] sm:$0xff]
  %v28 = vld [vmem:[%s0 + $0x10] sm:$0xff]
  %v29 = vld [vmem:[%s0 + $0x18] sm:$0xff]
  %v30 = vld [vmem:[%s0 + $0x20] sm:$0xff]
  %v31 = vld [vmem:[%s0 + $0x28] sm:$0xff]
  %v32 = vld [vmem:[%s1] sm:$0xff]
  %v33 = vadd.f32 %v26, %v32
  %v34 = vadd.f32 %v27, %v32
  %v35 = vadd.f32 %v28, %v32
  %v36 = vadd.f32 %v29, %v32
  %v37 = vadd.f32 %v30, %v32
  %v38 = vadd.f32 %v31, %v32
  %v39 = vld [vmem:[%s2] sm:$0x1]
  %v41 = vlaneseq
  %v42 = vshrl.u32 %v41, 7
  %v43 = vsub.s32 0, %v42
  %v44 = vrot.slane %v39, %v43
  %v46 = vadd.f32 %v33, %v44
  %v47 = vadd.f32 %v34, %v44
  %v48 = vadd.f32 %v35, %v44
  %v49 = vadd.f32 %v36, %v44
  %v50 = vadd.f32 %v37, %v44
  %v51 = vadd.f32 %v38, %v44
  %vm52 = vcmask 261120
  %v53 = vsel %vm52, %v46, 0.0
  %54 = vadd.xlane.f32.xlu0 %v53
  %v55 = vpop.xlane.xlu0 %54
  %v56 = vsel %vm52, %v47, 0.0
  %57 = vadd.xlane.f32.xlu0 %v56
  %v58 = vpop.xlane.xlu0 %57
  %v59 = vsel %vm52, %v48, 0.0
  %60 = vadd.xlane.f32.xlu0 %v59
  %v61 = vpop.xlane.xlu0 %60
  %v62 = vsel %vm52, %v49, 0.0
  %63 = vadd.xlane.f32.xlu0 %v62
  %v64 = vpop.xlane.xlu0 %63
  %v65 = vsel %vm52, %v50, 0.0
  %66 = vadd.xlane.f32.xlu0 %v65
  %v67 = vpop.xlane.xlu0 %66
  %v68 = vsel %vm52, %v51, 0.0
  %69 = vadd.xlane.f32.xlu0 %v68
  %v70 = vpop.xlane.xlu0 %69
  %v71 = vrcp.pop 32.0
  %v72 = vmul.f32 %v55, %v71
  %v73 = vmul.f32 %v58, %v71
  %v74 = vmul.f32 %v61, %v71
  %v75 = vmul.f32 %v64, %v71
  %v76 = vmul.f32 %v67, %v71
  %v77 = vmul.f32 %v70, %v71
  %v78 = vsub.f32 %v46, %v72
  %v79 = vsub.f32 %v47, %v73
  %v80 = vsub.f32 %v48, %v74
  %v81 = vsub.f32 %v49, %v75
  %v82 = vsub.f32 %v50, %v76
  %v83 = vsub.f32 %v51, %v77
  %v84 = vmul.f32 %v78, %v78
  %v85 = vmul.f32 %v79, %v79
  %v86 = vmul.f32 %v80, %v80
  %v87 = vmul.f32 %v81, %v81
  %v88 = vmul.f32 %v82, %v82
  %v89 = vmul.f32 %v83, %v83
  %v90 = vsel %vm52, %v84, 0.0
  %91 = vadd.xlane.f32.xlu0 %v90
  %v92 = vpop.xlane.xlu0 %91
  %v93 = vsel %vm52, %v85, 0.0
  %94 = vadd.xlane.f32.xlu0 %v93
  %v95 = vpop.xlane.xlu0 %94
  %v96 = vsel %vm52, %v86, 0.0
  %97 = vadd.xlane.f32.xlu0 %v96
  %v98 = vpop.xlane.xlu0 %97
  %v99 = vsel %vm52, %v87, 0.0
  %100 = vadd.xlane.f32.xlu0 %v99
  %v101 = vpop.xlane.xlu0 %100
  %v102 = vsel %vm52, %v88, 0.0
  %103 = vadd.xlane.f32.xlu0 %v102
  %v104 = vpop.xlane.xlu0 %103
  %v105 = vsel %vm52, %v89, 0.0
  %106 = vadd.xlane.f32.xlu0 %v105
  %v107 = vpop.xlane.xlu0 %106
  %v108 = vmul.f32 %v92, %v71
  %v109 = vmul.f32 %v95, %v71
  %v110 = vmul.f32 %v98, %v71
  %v111 = vmul.f32 %v101, %v71
  %v112 = vmul.f32 %v104, %v71
  %v113 = vmul.f32 %v107, %v71
  %v114 = vadd.f32 %v108, 1e-12
  %v115 = vadd.f32 %v109, 1e-12
  %v116 = vadd.f32 %v110, 1e-12
  %v117 = vadd.f32 %v111, 1e-12
  %v118 = vadd.f32 %v112, 1e-12
  %v119 = vadd.f32 %v113, 1e-12
  %v120 = vrsqrt.pop %v114
  %v121 = vrsqrt.pop %v115
  %v122 = vrsqrt.pop %v116
  %v123 = vrsqrt.pop %v117
  %v124 = vrsqrt.pop %v118
  %v125 = vrsqrt.pop %v119
  %v126 = vmul.f32 %v78, %v120
  %v127 = vmul.f32 %v79, %v121
  %v128 = vmul.f32 %v80, %v122
  %v129 = vmul.f32 %v81, %v123
  %v130 = vmul.f32 %v82, %v124
  %v131 = vmul.f32 %v83, %v125
  %v132 = vld [vmem:[%s3] sm:$0x1]
  %v134 = vlaneseq
  %v135 = vshrl.u32 %v134, 7
  %v136 = vsub.s32 0, %v135
  %v137 = vrot.slane %v132, %v136
  %v139 = vmul.f32 %v126, %v137
  %v140 = vmul.f32 %v127, %v137
  %v141 = vmul.f32 %v128, %v137
  %v142 = vmul.f32 %v129, %v137
  %v143 = vmul.f32 %v130, %v137
  %v144 = vmul.f32 %v131, %v137
  %v145 = vld [vmem:[%s4] sm:$0x1]
  %v147 = vlaneseq
  %v148 = vshrl.u32 %v147, 7
  %v149 = vsub.s32 0, %v148
  %v150 = vrot.slane %v145, %v149
  %v152 = vadd.f32 %v139, %v150
  %v153 = vadd.f32 %v140, %v150
  %v154 = vadd.f32 %v141, %v150
  %v155 = vadd.f32 %v142, %v150
  %v156 = vadd.f32 %v143, %v150
  %v157 = vadd.f32 %v144, %v150
  %v158 = vsel %vm52, %v152, 0.0
  %v159 = vrot.slane %v158, 4
  %v160 = vadd.f32 %v158, %v159
  %v161 = vrot.slane %v160, 2
  %v162 = vadd.f32 %v160, %v161
  %v163 = vrot.slane %v162, 1
  %v164 = vadd.f32 %v162, %v163
  %v165 = vsel %vm52, %v153, 0.0
  %v166 = vrot.slane %v165, 4
  %v167 = vadd.f32 %v165, %v166
  %v168 = vrot.slane %v167, 2
  %v169 = vadd.f32 %v167, %v168
  %v170 = vrot.slane %v169, 1
  %v171 = vadd.f32 %v169, %v170
  %v172 = vsel %vm52, %v154, 0.0
  %v173 = vrot.slane %v172, 4
  %v174 = vadd.f32 %v172, %v173
  %v175 = vrot.slane %v174, 2
  %v176 = vadd.f32 %v174, %v175
  %v177 = vrot.slane %v176, 1
  %v178 = vadd.f32 %v176, %v177
  %v179 = vsel %vm52, %v155, 0.0
  %v180 = vrot.slane %v179, 4
  %v181 = vadd.f32 %v179, %v180
  %v182 = vrot.slane %v181, 2
  %v183 = vadd.f32 %v181, %v182
  %v184 = vrot.slane %v183, 1
  %v185 = vadd.f32 %v183, %v184
  %v186 = vsel %vm52, %v156, 0.0
  %v187 = vrot.slane %v186, 4
  %v188 = vadd.f32 %v186, %v187
  %v189 = vrot.slane %v188, 2
  %v190 = vadd.f32 %v188, %v189
  %v191 = vrot.slane %v190, 1
  %v192 = vadd.f32 %v190, %v191
  %v193 = vsel %vm52, %v157, 0.0
  %v194 = vrot.slane %v193, 4
  %v195 = vadd.f32 %v193, %v194
  %v196 = vrot.slane %v195, 2
  %v197 = vadd.f32 %v195, %v196
  %v198 = vrot.slane %v197, 1
  %v199 = vadd.f32 %v197, %v198
  %v200 = vrcp.pop 8.0
  %v201 = vmul.f32 %v164, %v200
  %v202 = vmul.f32 %v171, %v200
  %v203 = vmul.f32 %v178, %v200
  %v204 = vmul.f32 %v185, %v200
  %v205 = vmul.f32 %v192, %v200
  %v206 = vmul.f32 %v199, %v200
  %v207 = vld [vmem:[%s5] sm:$0xff]
  %v208 = vld [vmem:[%s5 + $0x8] sm:$0xff]
  %v209 = vld [vmem:[%s5 + $0x10] sm:$0xff]
  %v210 = vld [vmem:[%s5 + $0x18] sm:$0xff]
  %v211 = vld [vmem:[%s6] sm:$0x1]
  %v213 = vlaneseq
  %v214 = vshrl.u32 %v213, 7
  %v215 = vsub.s32 0, %v214
  %v216 = vrot.slane %v211, %v215
  %vm224 = vcmask 1041409
  %v225 = vsel %vm224, %v202, %v201
  %vm226 = vcmask 1042434
  %v227 = vsel %vm226, %v203, %v225
  %vm228 = vcmask 1043459
  %v229 = vsel %vm228, %v204, %v227
  %vm230 = vcmask 1044484
  %v231 = vsel %vm230, %v205, %v229
  %vm232 = vcmask 1045509
  %v233 = vsel %vm232, %v206, %v231
  %v234 = vsel %vm52, %v233, 0
  %236 = vmatprep.subr.mxu0 0.0
  %237 = vmatpush1.msra.mxu0 %v207
  %238 = vmatprep.subr.mxu0 0.0
  %239 = vmatpush1.msra.mxu0 %v208
  %240 = vmatprep.subr.mxu0 0.0
  %241 = vmatpush1.msra.mxu0 %v209
  %242 = vmatprep.subr.mxu0 0.0
  %243 = vmatpush1.msra.mxu0 %v210
  %244 = vmatprep.subr.mxu0 0.0
  %245 = vmatpush1.msra.mxu0 0.0
  %246 = vmatprep.subr.mxu0 0.0
  %247 = vmatpush1.msra.mxu0 0.0
  %248 = vmatprep.subr.mxu0 0.0
  %249 = vmatpush1.msra.mxu0 0.0
  %250 = vmatprep.subr.mxu0 0.0
  %251 = vmatpush1.msra.mxu0 0.0
  %252 = vmatprep.subr.mxu0 0.0
  %253 = vmatpush1.msra.mxu0 0.0
  %254 = vmatprep.subr.mxu0 0.0
  %255 = vmatpush1.msra.mxu0 0.0
  %256 = vmatprep.subr.mxu0 0.0
  %257 = vmatpush1.msra.mxu0 0.0
  %258 = vmatprep.subr.mxu0 0.0
  %259 = vmatpush1.msra.mxu0 0.0
  %260 = vmatprep.subr.mxu0 0.0
  %261 = vmatpush1.msra.mxu0 0.0
  %262 = vmatprep.subr.mxu0 0.0
  %263 = vmatpush1.msra.mxu0 0.0
  %264 = vmatprep.subr.mxu0 0.0
  %265 = vmatpush1.msra.mxu0 0.0
  %266 = vmatprep.subr.mxu0 0.0
  %267 = vmatpush1.msra.mxu0 0.0
  %268 = vmatprep.subr.mxu0 0.0
  %269 = vmatpush1.msra.mxu0 0.0
  %270 = vmatprep.subr.mxu0 0.0
  %271 = vmatpush1.msra.mxu0 0.0
  %272 = vmatprep.subr.mxu0 0.0
  %273 = vmatpush1.msra.mxu0 0.0
  %274 = vmatprep.subr.mxu0 0.0
  %275 = vmatpush1.msra.mxu0 0.0
  %276 = vmatprep.subr.mxu0 0.0
  %277 = vmatpush1.msra.mxu0 0.0
  %278 = vmatprep.subr.mxu0 0.0
  %279 = vmatpush1.msra.mxu0 0.0
  %280 = vmatprep.subr.mxu0 0.0
  %281 = vmatpush1.msra.mxu0 0.0
  %282 = vmatprep.subr.mxu0 0.0
  %283 = vmatpush1.msra.mxu0 0.0
  %284 = vmatprep.subr.mxu0 0.0
  %285 = vmatpush1.msra.mxu0 0.0
  %286 = vmatprep.subr.mxu0 0.0
  %287 = vmatpush1.msra.mxu0 0.0
  %288 = vmatprep.subr.mxu0 0.0
  %289 = vmatpush1.msra.mxu0 0.0
  %290 = vmatprep.subr.mxu0 0.0
  %291 = vmatpush1.msra.mxu0 0.0
  %292 = vmatprep.subr.mxu0 0.0
  %293 = vmatpush1.msra.mxu0 0.0
  %294 = vmatprep.subr.mxu0 0.0
  %295 = vmatpush1.msra.mxu0 0.0
  %296 = vmatprep.subr.mxu0 0.0
  %297 = vmatpush1.msra.mxu0 0.0
  %298 = vmatprep.subr.mxu0 0.0
  %299 = vmatpush1.msra.mxu0 0.0
  %300 = vmatprep.mubr.f32.mxu0 0.0
  %301 = vmatmul.mubr.f32.gmra.mrb[0].mxu0 %v234
  %v302 = vpop.f32.mrb[0].mxu0
  %v303 = vadd.f32 %v216, %v302
  %v304 = vpop.f32.mrb[0].mxu0
  %305 = vdwg.mxu0
  %vm306 = vcmask 160768
  %307 = vst.msk [vmem:[%s7] sm:$0x3f] %vm306, %v303
  // Predicated region
  $region30: #{hierachy_vae_forward.7} parent=0 // pred_check
    _
  $region31: #{hierachy_vae_forward.7} parent=0 // pred_check_branch
    %309 = sbr.rel (0) target = $region33
  $region32: #{hierachy_vae_forward.7} parent=0 // pred_region
    _
  $region33: #{hierachy_vae_forward.7} parent=0 // pred_fallthru
    _
  // Predicated region
  $region34: #{hierachy_vae_forward.7} parent=0 // pred_check
    _
  $region35: #{hierachy_vae_forward.7} parent=0 // pred_check_branch
    %311 = sbr.rel (0) target = $region37
  $region36: #{hierachy_vae_forward.7} parent=0 // pred_region
    _
  $region37: #{hierachy_vae_forward.7} parent=0 // pred_fallthru
    _

// kernel: hierachy_vae_forward.11
$region0: #{hierachy_vae_forward.11}
  #allocation0 [shape = 'u32[]', space=smem, size = 0x4, offset = 0x4, fixed_abs, tag = 'smem constant byte address 0x4 - core index']
  #allocation1 [shape = 'u32[144,128]{1,0:T(1,128)}', space=vmem, size = 0x12000, scoped, tag = 'internal scratch']
  #allocation2 [shape = 'f32[2,64]{1,0:T(2,128)}', space=vmem, size = 0x400, scoped, tag = 'scratch operand']
  #allocation3 [shape = 'f32[2,64]{1,0:T(2,128)}', space=vmem, size = 0x400, scoped, tag = 'scratch operand']
  #allocation4 [shape = 'f32[2,64]{1,0:T(2,128)}', space=vmem, size = 0x400, scoped, tag = 'scratch operand']
  %s0 = inlined_call_operand.vmem [shape: f32[3,2,256], index: 0, kind: input, shape index: {}]
  %s1 = inlined_call_operand.vmem [shape: f32[64,256], index: 1, kind: input, shape index: {}]
  %s2 = inlined_call_operand.vmem [shape: s32[2,1], index: 2, kind: input, shape index: {}]
  %s3 = inlined_call_operand.vmem [shape: f32[64,3], index: 3, kind: input, shape index: {}]
  %s4 = inlined_call_operand.vmem [shape: f32[1,3], index: 4, kind: input, shape index: {}]
  %s5 = inlined_call_operand.hbm [shape: f32[2,3], index: 5, kind: output, shape index: {}]
  %s6 = sld [smem:[#allocation0]]
  $region61: #{hierachy_vae_forward.11} parent=0
    _
  %s8 = ssub.s32 1, %s6
  %s9 = scalar_select 0, %s8, %s6
  $region1: #{hierachy_vae_forward.11} parent=0
    #allocation5 [shape = 'u8[1024]{0}', space=vmem, size = 0x400, scoped, tag = 'output window, operand 0, single buffered']
    #allocation6 [shape = 's32[2]{0}', space=sflag, size = 0x8, scoped, tag = 'scoped memory for hierachy_vae_forward.11']
    %10 = vsyncpa [#allocation6], 0
    loop: start=0, step=1, limit=5
    $region2: #{hierachy_vae_forward.11} parent=1 // loop_pre_header
      _
    $region3: #{hierachy_vae_forward.11} parent=1 // loop_header
      %s12 = sphi 0, %s16
      %p13 = scmp.ge.s32.totalorder %s12, 5
      %s22 = sphi 0, %s24
      %s25 = sphi 0, %s22
      %s26 = sphi 0, %s25
      %s42 = sphi 0, %s26
      %s46 = sphi 0, %s46
      %s48 = sphi 0, %s46
      %s49 = sphi 0, %s48
      %s63 = sphi 0, %s49
      %s67 = sphi 0, %s67
      %s69 = sphi 0, %s67
      %s70 = sphi 0, %s69
      %s84 = sphi 0, %s70
      %s88 = sphi 0, %s88
      %s90 = sphi 0, %s88
      %s91 = sphi 0, %s90
      %s105 = sphi 0, %s91
      %s109 = sphi 0, %s109
      %s111 = sphi 0, %s109
      %s112 = sphi 0, %s111
      %s126 = sphi 0, %s112
      %s130 = sphi 0, %s130
      %s132 = sphi 0, %s130
      %s133 = sphi 0, %s132
      %s147 = sphi 0, %s133
    $region4: #{hierachy_vae_forward.11} parent=1 // loop_header_branch
      %15 = sbr.rel (%p13) target = $region8
    $region5: #{hierachy_vae_forward.11} parent=1 // loop_body
      %s17 = ssub.s32 %s12, 1
      %s18 = ssub.s32 %s12, 2
      %s19 = sadd.s32 %s12, 1
      %s20 = ssub.s32 %s12, %s19
      %p21 = scmp.eq.s32.totalorder %s20, 0
      %s23 = sadd.s32 %s22, 1
      %s24 = scalar_select %p21, %s22, %s23
      %p27 = pneg %p21
      %p28 = scmp.eq.s32.totalorder %s12, 2
      %p29 = por %p27, %p28
      %p30 = scmp.ne.s32.totalorder %s22, %s25
      %p31 = scmp.eq.s32.totalorder %s12, 0
      %p32 = por %p30, %p31
      %p33 = scmp.ne.s32.totalorder %s22, %s25
      %p34 = scmp.eq.s32.totalorder %s17, 2
      %p35 = por %p33, %p34
      %p36 = scmp.ne.s32.totalorder %s25, %s26
      %p37 = scmp.eq.s32.totalorder %s17, 0
      %p38 = por %p36, %p37
      %p39 = scmp.ne.s32.totalorder %s25, %s26
      %p40 = scmp.eq.s32.totalorder %s18, 2
      %p41 = por %p39, %p40
      %p43 = scmp.ne.s32.totalorder %s26, %s42
      %p44 = scmp.eq.s32.totalorder %s18, 0
      %p45 = por %p43, %p44
      %s47 = sadd.s32 %s46, 1
      %p50 = scmp.eq.s32.totalorder %s12, 2
      %p51 = scmp.ne.s32.totalorder %s46, %s48
      %p52 = scmp.eq.s32.totalorder %s12, 0
      %p53 = por %p51, %p52
      %p54 = scmp.ne.s32.totalorder %s46, %s48
      %p55 = scmp.eq.s32.totalorder %s17, 2
      %p56 = por %p54, %p55
      %p57 = scmp.ne.s32.totalorder %s48, %s49
      %p58 = scmp.eq.s32.totalorder %s17, 0
      %p59 = por %p57, %p58
      %p60 = scmp.ne.s32.totalorder %s48, %s49
      %p61 = scmp.eq.s32.totalorder %s18, 2
      %p62 = por %p60, %p61
      %p64 = scmp.ne.s32.totalorder %s49, %s63
      %p65 = scmp.eq.s32.totalorder %s18, 0
      %p66 = por %p64, %p65
      %s68 = sadd.s32 %s67, 1
      %p71 = scmp.eq.s32.totalorder %s12, 2
      %p72 = scmp.ne.s32.totalorder %s67, %s69
      %p73 = scmp.eq.s32.totalorder %s12, 0
      %p74 = por %p72, %p73
      %p75 = scmp.ne.s32.totalorder %s67, %s69
      %p76 = scmp.eq.s32.totalorder %s17, 2
      %p77 = por %p75, %p76
      %p78 = scmp.ne.s32.totalorder %s69, %s70
      %p79 = scmp.eq.s32.totalorder %s17, 0
      %p80 = por %p78, %p79
      %p81 = scmp.ne.s32.totalorder %s69, %s70
      %p82 = scmp.eq.s32.totalorder %s18, 2
      %p83 = por %p81, %p82
      %p85 = scmp.ne.s32.totalorder %s70, %s84
      %p86 = scmp.eq.s32.totalorder %s18, 0
      %p87 = por %p85, %p86
      %s89 = sadd.s32 %s88, 1
      %p92 = scmp.eq.s32.totalorder %s12, 2
      %p93 = scmp.ne.s32.totalorder %s88, %s90
      %p94 = scmp.eq.s32.totalorder %s12, 0
      %p95 = por %p93, %p94
      %p96 = scmp.ne.s32.totalorder %s88, %s90
      %p97 = scmp.eq.s32.totalorder %s17, 2
      %p98 = por %p96, %p97
      %p99 = scmp.ne.s32.totalorder %s90, %s91
      %p100 = scmp.eq.s32.totalorder %s17, 0
      %p101 = por %p99, %p100
      %p102 = scmp.ne.s32.totalorder %s90, %s91
      %p103 = scmp.eq.s32.totalorder %s18, 2
      %p104 = por %p102, %p103
      %p106 = scmp.ne.s32.totalorder %s91, %s105
      %p107 = scmp.eq.s32.totalorder %s18, 0
      %p108 = por %p106, %p107
      %s110 = sadd.s32 %s109, 1
      %p113 = scmp.eq.s32.totalorder %s12, 2
      %p114 = scmp.ne.s32.totalorder %s109, %s111
      %p115 = scmp.eq.s32.totalorder %s12, 0
      %p116 = por %p114, %p115
      %p117 = scmp.ne.s32.totalorder %s109, %s111
      %p118 = scmp.eq.s32.totalorder %s17, 2
      %p119 = por %p117, %p118
      %p120 = scmp.ne.s32.totalorder %s111, %s112
      %p121 = scmp.eq.s32.totalorder %s17, 0
      %p122 = por %p120, %p121
      %p123 = scmp.ne.s32.totalorder %s111, %s112
      %p124 = scmp.eq.s32.totalorder %s18, 2
      %p125 = por %p123, %p124
      %p127 = scmp.ne.s32.totalorder %s112, %s126
      %p128 = scmp.eq.s32.totalorder %s18, 0
      %p129 = por %p127, %p128
      %s131 = sadd.s32 %s130, 1
      %p134 = scmp.eq.s32.totalorder %s12, 2
      %p135 = scmp.ne.s32.totalorder %s130, %s132
      %p136 = scmp.eq.s32.totalorder %s12, 0
      %p137 = por %p135, %p136
      %p138 = scmp.ne.s32.totalorder %s130, %s132
      %p139 = scmp.eq.s32.totalorder %s17, 2
      %p140 = por %p138, %p139
      %p141 = scmp.ne.s32.totalorder %s132, %s133
      %p142 = scmp.eq.s32.totalorder %s17, 0
      %p143 = por %p141, %p142
      %p144 = scmp.ne.s32.totalorder %s132, %s133
      %p145 = scmp.eq.s32.totalorder %s18, 2
      %p146 = por %p144, %p145
      %p148 = scmp.ne.s32.totalorder %s133, %s147
      %p149 = scmp.eq.s32.totalorder %s18, 0
      %p150 = por %p148, %p149
      %p151 = scmp.le.s32.totalorder 1, %s12
      %p152 = scmp.lt.s32.totalorder %s12, 4
      %p153 = pnand %p151, %p152
      %p154 = pneg %p153
      // Predicated region
      $region9: #{hierachy_vae_forward.11} parent=5 // pred_check
        _
      $region10: #{hierachy_vae_forward.11} parent=5 // pred_check_branch
        %156 = sbr.rel (%p153) target = $region12
      $region11: #{hierachy_vae_forward.11} parent=5 // pred_region
        %s157 = ssub.s32 %s12, 1
        // Predicated region
        $region13: #{hierachy_vae_forward.11} parent=11 // pred_check
          %p158 = pneg %p59
        $region14: #{hierachy_vae_forward.11} parent=11 // pred_check_branch
          %160 = sbr.rel (%p158) target = $region16
        $region15: #{hierachy_vae_forward.11} parent=11 // pred_region
          _
        $region16: #{hierachy_vae_forward.11} parent=11 // pred_fallthru
          _
        // Predicated region
        $region17: #{hierachy_vae_forward.11} parent=11 // pred_check
          %p161 = pneg %p80
        $region18: #{hierachy_vae_forward.11} parent=11 // pred_check_branch
          %163 = sbr.rel (%p161) target = $region20
        $region19: #{hierachy_vae_forward.11} parent=11 // pred_region
          _
        $region20: #{hierachy_vae_forward.11} parent=11 // pred_fallthru
          _
        // Predicated region
        $region21: #{hierachy_vae_forward.11} parent=11 // pred_check
          %p164 = pneg %p101
        $region22: #{hierachy_vae_forward.11} parent=11 // pred_check_branch
          %166 = sbr.rel (%p164) target = $region24
        $region23: #{hierachy_vae_forward.11} parent=11 // pred_region
          _
        $region24: #{hierachy_vae_forward.11} parent=11 // pred_fallthru
          _
        // Predicated region
        $region25: #{hierachy_vae_forward.11} parent=11 // pred_check
          %p167 = pneg %p122
        $region26: #{hierachy_vae_forward.11} parent=11 // pred_check_branch
          %169 = sbr.rel (%p167) target = $region28
        $region27: #{hierachy_vae_forward.11} parent=11 // pred_region
          _
        $region28: #{hierachy_vae_forward.11} parent=11 // pred_fallthru
          _
      $region12: #{hierachy_vae_forward.11} parent=5 // pred_fallthru
        _
      %p170 = scmp.lt.s32.totalorder %s12, 3
      // Predicated region
      $region29: #{hierachy_vae_forward.11} parent=5 // pred_check
        %p171 = pneg %p170
      $region30: #{hierachy_vae_forward.11} parent=5 // pred_check_branch
        %173 = sbr.rel (%p171) target = $region32
      $region31: #{hierachy_vae_forward.11} parent=5 // pred_region
        // Predicated region
        $region33: #{hierachy_vae_forward.11} parent=31 // pred_check
          %p174 = pneg %p32
        $region34: #{hierachy_vae_forward.11} parent=31 // pred_check_branch
          %176 = sbr.rel (%p174) target = $region36
        $region35: #{hierachy_vae_forward.11} parent=31 // pred_region
          %p177 = scmp.lt.s32.totalorder %s12, 2
          %s178 = scalar_select %p177, %s12, 2
          %s179 = smul.addr %s178, 2
          %s180 = smul.addr %s179, 2
          %s181 = scalar_lea.vmem %s0, %s180
        $region36: #{hierachy_vae_forward.11} parent=31 // pred_fallthru
          _
      $region32: #{hierachy_vae_forward.11} parent=5 // pred_fallthru
        _
      %p182 = scmp.le.s32.totalorder 1, %s12
      %p183 = scmp.lt.s32.totalorder %s12, 4
      %p184 = pnand %p182, %p183
      %p185 = pneg %p184
      // Predicated region
      $region37: #{hierachy_vae_forward.11} parent=5 // pred_check
        _
      $region38: #{hierachy_vae_forward.11} parent=5 // pred_check_branch
        %187 = sbr.rel (%p184) target = $region40
      $region39: #{hierachy_vae_forward.11} parent=5 // pred_region
        %s188 = ssub.s32 %s12, 1
        %p189 = scmp.lt.s32.totalorder %s17, 2
        %s190 = scalar_select %p189, %s17, 2
        %s191 = smul.addr %s190, 2
        %s192 = smul.addr %s191, 2
        %s193 = scalar_lea.vmem %s0, %s192
        %p194 = pneg %p38
        %p195 = pneg %p35
        %p196 = pneg %p59
        %p197 = pneg %p56
        %p198 = pneg %p80
        %p199 = pneg %p77
        %p200 = pneg %p101
        %p201 = pneg %p98
        %p202 = pneg %p122
        %p203 = pneg %p119
        %p204 = pneg %p143
        %p205 = pneg %p140
        %p206 = scmp.lt.s32.totalorder %s17, 2
        %s207 = scalar_select %p206, %s17, 2
        %s208 = smul.addr %s207, 2
        %s209 = smul.addr %s208, 2
        %s210 = scalar_lea.vmem %s0, %s209
        %p211 = scmp.eq.s32.totalorder %s17, 0
        // Predicated region
        $region41: #{hierachy_vae_forward.11} parent=39 // pred_check
          %p212 = pneg %p211
        $region42: #{hierachy_vae_forward.11} parent=39 // pred_check_branch
          %214 = sbr.rel (%p212) target = $region44
        $region43: #{hierachy_vae_forward.11} parent=39 // pred_region
          %vm215 = vcmask 517120
          %216 = vst.msk [vmem:[#allocation2] sm:$0x3] %vm215, 0.0
          %217 = vst.msk [vmem:[#allocation3] sm:$0x3] %vm215, 0.0
          %218 = vst.msk [vmem:[#allocation4] sm:$0x3] %vm215, 0.0
        $region44: #{hierachy_vae_forward.11} parent=39 // pred_fallthru
          _
        %v219 = vld [vmem:[#allocation2] sm:$0x3]
        %v220 = vld [vmem:[#allocation3] sm:$0x3]
        %v221 = vld [vmem:[%s210] sm:$0xf]
        %v222 = vld [vmem:[%s1] sm:$0xff]
        %v223 = vld [vmem:[%s1 + $0x8] sm:$0xff]
        %v224 = vld [vmem:[%s1 + $0x10] sm:$0xff]
        %v225 = vld [vmem:[%s1 + $0x18] sm:$0xff]
        %v226 = vld [vmem:[%s1 + $0x20] sm:$0xff]
        %v227 = vld [vmem:[%s1 + $0x28] sm:$0xff]
        %v228 = vld [vmem:[%s1 + $0x30] sm:$0xff]
        %v229 = vld [vmem:[%s1 + $0x38] sm:$0xff]
        %v230 = vld [vmem:[%s1 + $0x40] sm:$0xff]
        %v231 = vld [vmem:[%s1 + $0x48] sm:$0xff]
        %v232 = vld [vmem:[%s1 + $0x50] sm:$0xff]
        %v233 = vld [vmem:[%s1 + $0x58] sm:$0xff]
        %v234 = vld [vmem:[%s1 + $0x60] sm:$0xff]
        %v235 = vld [vmem:[%s1 + $0x68] sm:$0xff]
        %v236 = vld [vmem:[%s1 + $0x70] sm:$0xff]
        %v237 = vld [vmem:[%s1 + $0x78] sm:$0xff]
        %vm238 = vcmask 523264
        %v240 = vsel %vm238, %v219, 0
        %242 = vmatprep.subr.mxu0 %v223
        %243 = vmatpush1.msra.mxu0 %v222
        %244 = vmatprep.subr.mxu0 %v225
        %245 = vmatpush1.msra.mxu0 %v224
        %246 = vmatprep.subr.mxu0 %v227
        %247 = vmatpush1.msra.mxu0 %v226
        %248 = vmatprep.subr.mxu0 %v229
        %249 = vmatpush1.msra.mxu0 %v228
        %250 = vmatprep.subr.mxu0 %v231
        %251 = vmatpush1.msra.mxu0 %v230
        %252 = vmatprep.subr.mxu0 %v233
        %253 = vmatpush1.msra.mxu0 %v232
        %254 = vmatprep.subr.mxu0 %v235
        %255 = vmatpush1.msra.mxu0 %v234
        %256 = vmatprep.subr.mxu0 %v237
        %257 = vmatpush1.msra.mxu0 %v236
        %258 = vmatprep.subr.mxu0 0.0
        %259 = vmatpush1.msra.mxu0 0.0
        %260 = vmatprep.subr.mxu0 0.0
        %261 = vmatpush1.msra.mxu0 0.0
        %262 = vmatprep.subr.mxu0 0.0
        %263 = vmatpush1.msra.mxu0 0.0
        %264 = vmatprep.subr.mxu0 0.0
        %265 = vmatpush1.msra.mxu0 0.0
        %266 = vmatprep.subr.mxu0 0.0
        %267 = vmatpush1.msra.mxu0 0.0
        %268 = vmatprep.subr.mxu0 0.0
        %269 = vmatpush1.msra.mxu0 0.0
        %270 = vmatprep.subr.mxu0 0.0
        %271 = vmatpush1.msra.mxu0 0.0
        %272 = vmatprep.subr.mxu0 0.0
        %273 = vmatpush1.msra.mxu0 0.0
        %274 = vmatprep.subr.mxu0 0.0
        %275 = vmatpush1.msra.mxu0 0.0
        %276 = vmatprep.subr.mxu0 0.0
        %277 = vmatpush1.msra.mxu0 0.0
        %278 = vmatprep.subr.mxu0 0.0
        %279 = vmatpush1.msra.mxu0 0.0
        %280 = vmatprep.subr.mxu0 0.0
        %281 = vmatpush1.msra.mxu0 0.0
        %282 = vmatprep.subr.mxu0 0.0
        %283 = vmatpush1.msra.mxu0 0.0
        %284 = vmatprep.subr.mxu0 0.0
        %285 = vmatpush1.msra.mxu0 0.0
        %286 = vmatprep.subr.mxu0 0.0
        %287 = vmatpush1.msra.mxu0 0.0
        %288 = vmatprep.subr.mxu0 0.0
        %289 = vmatpush1.msra.mxu0 0.0
        %290 = vmatprep.subr.mxu0 0.0
        %291 = vmatpush1.msra.mxu0 0.0
        %292 = vmatprep.subr.mxu0 0.0
        %293 = vmatpush1.msra.mxu0 0.0
        %294 = vmatprep.subr.mxu0 0.0
        %295 = vmatpush1.msra.mxu0 0.0
        %296 = vmatprep.subr.mxu0 0.0
        %297 = vmatpush1.msra.mxu0 0.0
        %298 = vmatprep.subr.mxu0 0.0
        %299 = vmatpush1.msra.mxu0 0.0
        %300 = vmatprep.subr.mxu0 0.0
        %301 = vmatpush1.msra.mxu0 0.0
        %302 = vmatprep.subr.mxu0 0.0
        %303 = vmatpush1.msra.mxu0 0.0
        %304 = vmatprep.subr.mxu0 0.0
        %305 = vmatpush1.msra.mxu0 0.0
        %306 = vmatprep.mubr.f32.mxu0 0.0
        %307 = vmatmul.mubr.f32.gmra.mrb[0].mxu0 %v240
        %v308 = vpop.f32.mrb[0].mxu0
        %v309 = vadd.f32 0.0, %v308
        %v310 = vpop.f32.mrb[0].mxu0
        %v311 = vadd.f32 0.0, %v310
        %312 = vdwg.mxu0
        %v315 = vcombine.low %v309, %v311
        %v317 = vunpack.c.l.s4 1983009808
        %v318 = vunpack.c.0.s8 %v317
        %v319 = vlaneseq
        %v320 = vshrl.u32 %v319, 7
        %v321 = vsub.s32 %v318, %v320
        %v322 = vrot.slane %v315, %v321
        %v324 = vadd.f32 %v221, %v322
        %v325 = vxor.u32 %v324, 2147483648
        %v326 = vmul.f32 %v325, 1.442695
        %v327 = vpow.pop %v326
        %v328 = vadd.f32 %v327, 1.0
        %v329 = vrcp.pop %v328
        %v330 = vmul.f32 1.0, %v329
        %v332 = vrot.slane %v324, 2
        %v334 = vtanh.pop %v332
        %335 = vrot.lane.b32.xlu0 %v324, 64
        %v336 = vpop.permute.xlu0 %335
        %v337 = vrot.slane %v336, 2
        %v339 = vxor.u32 %v337, 2147483648
        %v340 = vmul.f32 %v339, 1.442695
        %v341 = vpow.pop %v340
        %v342 = vadd.f32 %v341, 1.0
        %v343 = vrcp.pop %v342
        %v344 = vmul.f32 1.0, %v343
        %v347 = vunpack.c.l.s4 1983009808
        %v348 = vunpack.c.0.s8 %v347
        %v349 = vlaneseq
        %v350 = vshrl.u32 %v349, 7
        %v351 = vsub.s32 %v348, %v350
        %v352 = vrot.slane %v220, %v351
        %353 = vrot.lane.b32.xlu0 %v352, 64
        %v354 = vpop.permute.xlu0 %353
        %v356 = vmul.f32 %v330, %v354
        %v357 = vmul.f32 %v330, %v334
        %359 = vrot.lane.b32.xlu0 %v357, 64
        %v360 = vpop.permute.xlu0 %359
        %v362 = vadd.f32 %v356, %v360
        %v363 = vtanh.pop %v362
        %365 = vrot.lane.b32.xlu0 %v363, 64
        %v366 = vpop.permute.xlu0 %365
        %v368 = vmul.f32 %v344, %v366
        %vm369 = vcmask 517120
        %370 = vst.msk [vmem:[#allocation2] sm:$0x3] %vm369, %v368
        %v373 = vunpack.c.l.s4 1983009808
        %v374 = vunpack.c.0.s8 %v373
        %v375 = vlaneseq
        %v376 = vshrl.u32 %v375, 7
        %v377 = vsub.s32 %v374, %v376
        %v378 = vrot.slane %v362, %v377
        %379 = vrot.lane.b32.xlu0 %v378, 64
        %v380 = vpop.permute.xlu0 %379
        %382 = vst.msk [vmem:[#allocation3] sm:$0x3] %vm369, %v380
        %v383 = vld [vmem:[%s2] sm:$0x3]
        %v384 = vstv %s17
        %vm385 = vcmp.eq.s32.totalorder %v383, %v384
        %v386 = vld [vmem:[#allocation4] sm:$0x3]
        %v387 = vsel %vm385, 1, 0
        %388 = vset.pattern.permute.xlu0 0
        %389 = vperm.xlu0 %388, %v387
        %v390 = vpop.permute.xlu0 %389
        %vm391 = vcmp.eq.s32.totalorder %v390, 1
        %v392 = vsel %vm391, %v368, %v386
        %393 = vst.msk [vmem:[#allocation4] sm:$0x3] %vm369, %v392
        %p394 = scmp.eq.s32.totalorder %s17, 2
        // Predicated region
        $region45: #{hierachy_vae_forward.11} parent=39 // pred_check
          %p395 = pneg %p394
        $region46: #{hierachy_vae_forward.11} parent=39 // pred_check_branch
          %397 = sbr.rel (%p395) target = $region48
        $region47: #{hierachy_vae_forward.11} parent=39 // pred_region
          %v398 = vld [vmem:[#allocation4] sm:$0x3]
          %v399 = vld [vmem:[%s3] sm:$0xff]
          %v400 = vld [vmem:[%s3 + $0x8] sm:$0xff]
          %v401 = vld [vmem:[%s3 + $0x10] sm:$0xff]
          %v402 = vld [vmem:[%s3 + $0x18] sm:$0xff]
          %v403 = vld [vmem:[%s3 + $0x20] sm:$0xff]
          %v404 = vld [vmem:[%s3 + $0x28] sm:$0xff]
          %v405 = vld [vmem:[%s3 + $0x30] sm:$0xff]
          %v406 = vld [vmem:[%s3 + $0x38] sm:$0xff]
          %v407 = vld [vmem:[%s4] sm:$0x1]
          %v409 = vlaneseq
          %v410 = vshrl.u32 %v409, 7
          %v411 = vsub.s32 0, %v410
          %v412 = vrot.slane %v407, %v411
          %v415 = vsel %vm238, %v398, 0
          %417 = vmatprep.subr.mxu0 0.0
          %418 = vmatpush1.msra.mxu0 %v399
          %419 = vmatprep.subr.mxu0 0.0
          %420 = vmatpush1.msra.mxu0 %v400
          %421 = vmatprep.subr.mxu0 0.0
          %422 = vmatpush1.msra.mxu0 %v401
          %423 = vmatprep.subr.mxu0 0.0
          %424 = vmatpush1.msra.mxu0 %v402
          %425 = vmatprep.subr.mxu0 0.0
          %426 = vmatpush1.msra.mxu0 %v403
          %427 = vmatprep.subr.mxu0 0.0
          %428 = vmatpush1.msra.mxu0 %v404
          %429 = vmatprep.subr.mxu0 0.0
          %430 = vmatpush1.msra.mxu0 %v405
          %431 = vmatprep.subr.mxu0 0.0
          %432 = vmatpush1.msra.mxu0 %v406
          %433 = vmatprep.subr.mxu0 0.0
          %434 = vmatpush1.msra.mxu0 0.0
          %435 = vmatprep.subr.mxu0 0.0
          %436 = vmatpush1.msra.mxu0 0.0
          %437 = vmatprep.subr.mxu0 0.0
          %438 = vmatpush1.msra.mxu0 0.0
          %439 = vmatprep.subr.mxu0 0.0
          %440 = vmatpush1.msra.mxu0 0.0
          %441 = vmatprep.subr.mxu0 0.0
          %442 = vmatpush1.msra.mxu0 0.0
          %443 = vmatprep.subr.mxu0 0.0
          %444 = vmatpush1.msra.mxu0 0.0
          %445 = vmatprep.subr.mxu0 0.0
          %446 = vmatpush1.msra.mxu0 0.0
          %447 = vmatprep.subr.mxu0 0.0
          %448 = vmatpush1.msra.mxu0 0.0
          %449 = vmatprep.subr.mxu0 0.0
          %450 = vmatpush1.msra.mxu0 0.0
          %451 = vmatprep.subr.mxu0 0.0
          %452 = vmatpush1.msra.mxu0 0.0
          %453 = vmatprep.subr.mxu0 0.0
          %454 = vmatpush1.msra.mxu0 0.0
          %455 = vmatprep.subr.mxu0 0.0
          %456 = vmatpush1.msra.mxu0 0.0
          %457 = vmatprep.subr.mxu0 0.0
          %458 = vmatpush1.msra.mxu0 0.0
          %459 = vmatprep.subr.mxu0 0.0
          %460 = vmatpush1.msra.mxu0 0.0
          %461 = vmatprep.subr.mxu0 0.0
          %462 = vmatpush1.msra.mxu0 0.0
          %463 = vmatprep.subr.mxu0 0.0
          %464 = vmatpush1.msra.mxu0 0.0
          %465 = vmatprep.subr.mxu0 0.0
          %466 = vmatpush1.msra.mxu0 0.0
          %467 = vmatprep.subr.mxu0 0.0
          %468 = vmatpush1.msra.mxu0 0.0
          %469 = vmatprep.subr.mxu0 0.0
          %470 = vmatpush1.msra.mxu0 0.0
          %471 = vmatprep.subr.mxu0 0.0
          %472 = vmatpush1.msra.mxu0 0.0
          %473 = vmatprep.subr.mxu0 0.0
          %474 = vmatpush1.msra.mxu0 0.0
          %475 = vmatprep.subr.mxu0 0.0
          %476 = vmatpush1.msra.mxu0 0.0
          %477 = vmatprep.subr.mxu0 0.0
          %478 = vmatpush1.msra.mxu0 0.0
          %479 = vmatprep.subr.mxu0 0.0
          %480 = vmatpush1.msra.mxu0 0.0
          %481 = vmatprep.mubr.f32.mxu0 0.0
          %482 = vmatmul.mubr.f32.gmra.mrb[0].mxu0 %v415
          %v483 = vpop.f32.mrb[0].mxu0
          %v484 = vadd.f32 %v412, %v483
          %v485 = vpop.f32.mrb[0].mxu0
          %486 = vdwg.mxu0
          %vm487 = vcmask 17408
          %488 = vst.msk [vmem:[#allocation5] sm:$0x3] %vm487, %v484
        $region48: #{hierachy_vae_forward.11} parent=39 // pred_fallthru
          _
        // Predicated region
        $region49: #{hierachy_vae_forward.11} parent=39 // pred_check
          %p489 = pneg %p140
        $region50: #{hierachy_vae_forward.11} parent=39 // pred_check_branch
          %491 = sbr.rel (%p489) target = $region52
        $region51: #{hierachy_vae_forward.11} parent=39 // pred_region
          %s493 = ssub.s32 32, 32
          %494 = vsyncadd [#allocation6], %s493
          %s496 = sshll.u32 [#allocation5], 4
          %s497 = int_to_ptr.vmem [resolvable:$true] %s496
          %499 = dma.vmem_to_hbm [thread:$0]  %s497, 32, %s5, [#allocation6]
        $region52: #{hierachy_vae_forward.11} parent=39 // pred_fallthru
          _
        // Predicated region
        $region53: #{hierachy_vae_forward.11} parent=39 // pred_check
          %p500 = pneg %p140
        $region54: #{hierachy_vae_forward.11} parent=39 // pred_check_branch
          %502 = sbr.rel (%p500) target = $region56
        $region55: #{hierachy_vae_forward.11} parent=39 // pred_region
          %503 = dma.done [#allocation6], 32
        $region56: #{hierachy_vae_forward.11} parent=39 // pred_fallthru
          _
      $region40: #{hierachy_vae_forward.11} parent=5 // pred_fallthru
        _
      %p504 = scmp.le.s32.totalorder 2, %s12
      // Predicated region
      $region57: #{hierachy_vae_forward.11} parent=5 // pred_check
        %p505 = pneg %p504
      $region58: #{hierachy_vae_forward.11} parent=5 // pred_check_branch
        %507 = sbr.rel (%p505) target = $region60
      $region59: #{hierachy_vae_forward.11} parent=5 // pred_region
        %s508 = ssub.s32 %s12, 2
      $region60: #{hierachy_vae_forward.11} parent=5 // pred_fallthru
        _
    $region6: #{hierachy_vae_forward.11} parent=1 // loop_footer
      %s16 = sadd.s32 1, %s12
    $region7: #{hierachy_vae_forward.11} parent=1 // loop_footer_branch
      %11 = sbr.rel target = $region3
    $region8: #{hierachy_vae_forward.11} parent=1 // loop_exit
      _
    %509 = vsyncpa [#allocation6], 1
    %s510 = scalar_lea.sflag [#allocation6], 1
    %511 = vsyncpa %s510, 1

// kernel: hierachy_vae_forward.10
$region0: #{hierachy_vae_forward.10}
  #allocation0 [shape = 'u32[]', space=smem, size = 0x4, offset = 0x4, fixed_abs, tag = 'smem constant byte address 0x4 - core index']
  #allocation1 [shape = 'u32[144,128]{1,0:T(1,128)}', space=vmem, size = 0x12000, scoped, tag = 'internal scratch']
  %s0 = inlined_call_operand.vmem [shape: f32[6,4], index: 0, kind: input, shape index: {}]
  %s1 = inlined_call_operand.vmem [shape: f32[6,16], index: 1, kind: input, shape index: {}]
  %s2 = inlined_call_operand.vmem [shape: f32[4,16], index: 2, kind: input, shape index: {}]
  %s3 = inlined_call_operand.vmem [shape: f32[16,16], index: 3, kind: input, shape index: {}]
  %s4 = inlined_call_operand.vmem [shape: f32[1,16], index: 4, kind: input, shape index: {}]
  %s5 = inlined_call_operand.vmem [shape: f32[1,16], index: 5, kind: input, shape index: {}]
  %s6 = inlined_call_operand.vmem [shape: f32[16,256], index: 6, kind: input, shape index: {}]
  %s7 = inlined_call_operand.vmem [shape: f32[1,256], index: 7, kind: input, shape index: {}]
  %s8 = inlined_call_operand.vmem [shape: f32[6,256], index: 8, kind: output, shape index: {}]
  %s9 = sld [smem:[#allocation0]]
  $region42: #{hierachy_vae_forward.10} parent=0
    _
  %s11 = ssub.s32 1, %s9
  %s12 = scalar_select 0, %s11, %s9
  // Predicated region
  $region2: #{hierachy_vae_forward.10} parent=0 // pred_check
    _
  $region3: #{hierachy_vae_forward.10} parent=0 // pred_check_branch
    %14 = sbr.rel (0) target = $region5
  $region4: #{hierachy_vae_forward.10} parent=0 // pred_region
    _
  $region5: #{hierachy_vae_forward.10} parent=0 // pred_fallthru
    _
  // Predicated region
  $region6: #{hierachy_vae_forward.10} parent=0 // pred_check
    _
  $region7: #{hierachy_vae_forward.10} parent=0 // pred_check_branch
    %16 = sbr.rel (0) target = $region9
  $region8: #{hierachy_vae_forward.10} parent=0 // pred_region
    _
  $region9: #{hierachy_vae_forward.10} parent=0 // pred_fallthru
    _
  // Predicated region
  $region10: #{hierachy_vae_forward.10} parent=0 // pred_check
    _
  $region11: #{hierachy_vae_forward.10} parent=0 // pred_check_branch
    %18 = sbr.rel (0) target = $region13
  $region12: #{hierachy_vae_forward.10} parent=0 // pred_region
    _
  $region13: #{hierachy_vae_forward.10} parent=0 // pred_fallthru
    _
  // Predicated region
  $region14: #{hierachy_vae_forward.10} parent=0 // pred_check
    _
  $region15: #{hierachy_vae_forward.10} parent=0 // pred_check_branch
    %20 = sbr.rel (0) target = $region17
  $region16: #{hierachy_vae_forward.10} parent=0 // pred_region
    _
  $region17: #{hierachy_vae_forward.10} parent=0 // pred_fallthru
    _
  // Predicated region
  $region18: #{hierachy_vae_forward.10} parent=0 // pred_check
    _
  $region19: #{hierachy_vae_forward.10} parent=0 // pred_check_branch
    %22 = sbr.rel (0) target = $region21
  $region20: #{hierachy_vae_forward.10} parent=0 // pred_region
    _
  $region21: #{hierachy_vae_forward.10} parent=0 // pred_fallthru
    _
  // Predicated region
  $region22: #{hierachy_vae_forward.10} parent=0 // pred_check
    _
  $region23: #{hierachy_vae_forward.10} parent=0 // pred_check_branch
    %24 = sbr.rel (0) target = $region25
  $region24: #{hierachy_vae_forward.10} parent=0 // pred_region
    _
  $region25: #{hierachy_vae_forward.10} parent=0 // pred_fallthru
    _
  // Predicated region
  $region26: #{hierachy_vae_forward.10} parent=0 // pred_check
    _
  $region27: #{hierachy_vae_forward.10} parent=0 // pred_check_branch
    %26 = sbr.rel (0) target = $region29
  $region28: #{hierachy_vae_forward.10} parent=0 // pred_region
    _
  $region29: #{hierachy_vae_forward.10} parent=0 // pred_fallthru
    _
  // Predicated region
  $region30: #{hierachy_vae_forward.10} parent=0 // pred_check
    _
  $region31: #{hierachy_vae_forward.10} parent=0 // pred_check_branch
    %28 = sbr.rel (0) target = $region33
  $region32: #{hierachy_vae_forward.10} parent=0 // pred_region
    _
  $region33: #{hierachy_vae_forward.10} parent=0 // pred_fallthru
    _
  %v29 = vld [vmem:[%s0] sm:$0x3f]
  %v30 = vld [vmem:[%s2] sm:$0xf]
  %vm31 = vcmask 31744
  %v33 = vsel %vm31, %v29, 0
  %vm35 = vcmask 1043456
  %v37 = vsel %vm35, %v30, 0
  %39 = vmatprep.subr.mxu0 0.0
  %40 = vmatpush1.msra.mxu0 %v37
  %41 = vmatprep.subr.mxu0 0.0
  %42 = vmatpush1.msra.mxu0 0.0
  %43 = vmatprep.subr.mxu0 0.0
  %44 = vmatpush1.msra.mxu0 0.0
  %45 = vmatprep.subr.mxu0 0.0
  %46 = vmatpush1.msra.mxu0 0.0
  %47 = vmatprep.subr.mxu0 0.0
  %48 = vmatpush1.msra.mxu0 0.0
  %49 = vmatprep.subr.mxu0 0.0
  %50 = vmatpush1.msra.mxu0 0.0
  %51 = vmatprep.subr.mxu0 0.0
  %52 = vmatpush1.msra.mxu0 0.0
  %53 = vmatprep.subr.mxu0 0.0
  %54 = vmatpush1.msra.mxu0 0.0
  %55 = vmatprep.subr.mxu0 0.0
  %56 = vmatpush1.msra.mxu0 0.0
  %57 = vmatprep.subr.mxu0 0.0
  %58 = vmatpush1.msra.mxu0 0.0
  %59 = vmatprep.subr.mxu0 0.0
  %60 = vmatpush1.msra.mxu0 0.0
  %61 = vmatprep.subr.mxu0 0.0
  %62 = vmatpush1.msra.mxu0 0.0
  %63 = vmatprep.subr.mxu0 0.0
  %64 = vmatpush1.msra.mxu0 0.0
  %65 = vmatprep.subr.mxu0 0.0
  %66 = vmatpush1.msra.mxu0 0.0
  %67 = vmatprep.subr.mxu0 0.0
  %68 = vmatpush1.msra.mxu0 0.0
  %69 = vmatprep.subr.mxu0 0.0
  %70 = vmatpush1.msra.mxu0 0.0
  %71 = vmatprep.subr.mxu0 0.0
  %72 = vmatpush1.msra.mxu0 0.0
  %73 = vmatprep.subr.mxu0 0.0
  %74 = vmatpush1.msra.mxu0 0.0
  %75 = vmatprep.subr.mxu0 0.0
  %76 = vmatpush1.msra.mxu0 0.0
  %77 = vmatprep.subr.mxu0 0.0
  %78 = vmatpush1.msra.mxu0 0.0
  %79 = vmatprep.subr.mxu0 0.0
  %80 = vmatpush1.msra.mxu0 0.0
  %81 = vmatprep.subr.mxu0 0.0
  %82 = vmatpush1.msra.mxu0 0.0
  %83 = vmatprep.subr.mxu0 0.0
  %84 = vmatpush1.msra.mxu0 0.0
  %85 = vmatprep.subr.mxu0 0.0
  %86 = vmatpush1.msra.mxu0 0.0
  %87 = vmatprep.subr.mxu0 0.0
  %88 = vmatpush1.msra.mxu0 0.0
  %89 = vmatprep.subr.mxu0 0.0
  %90 = vmatpush1.msra.mxu0 0.0
  %91 = vmatprep.subr.mxu0 0.0
  %92 = vmatpush1.msra.mxu0 0.0
  %93 = vmatprep.subr.mxu0 0.0
  %94 = vmatpush1.msra.mxu0 0.0
  %95 = vmatprep.subr.mxu0 0.0
  %96 = vmatpush1.msra.mxu0 0.0
  %97 = vmatprep.subr.mxu0 0.0
  %98 = vmatpush1.msra.mxu0 0.0
  %99 = vmatprep.subr.mxu0 0.0
  %100 = vmatpush1.msra.mxu0 0.0
  %101 = vmatprep.subr.mxu0 0.0
  %102 = vmatpush1.msra.mxu0 0.0
  %103 = vmatprep.mubr.f32.mxu0 0.0
  %104 = vmatmul.mubr.f32.gmra.mrb[0].mxu0 %v33
  %v105 = vpop.f32.mrb[0].mxu0
  %v106 = vadd.f32 0.0, %v105
  %v107 = vpop.f32.mrb[0].mxu0
  %108 = vdwg.mxu0
  %v109 = vld [vmem:[%s1] sm:$0x3f]
  %v110 = vld [vmem:[%s3] sm:$0xff]
  %v111 = vld [vmem:[%s3 + $0x8] sm:$0xff]
  %v112 = vld [vmem:[%s4] sm:$0x1]
  %v114 = vlaneseq
  %v115 = vshrl.u32 %v114, 7
  %v116 = vsub.s32 0, %v115
  %v117 = vrot.slane %v112, %v116
  %vm119 = vcmask 130048
  %v121 = vsel %vm119, %v106, 0
  %123 = vmatprep.subr.mxu0 0.0
  %124 = vmatpush1.msra.mxu0 %v110
  %125 = vmatprep.subr.mxu0 0.0
  %126 = vmatpush1.msra.mxu0 %v111
  %127 = vmatprep.subr.mxu0 0.0
  %128 = vmatpush1.msra.mxu0 0.0
  %129 = vmatprep.subr.mxu0 0.0
  %130 = vmatpush1.msra.mxu0 0.0
  %131 = vmatprep.subr.mxu0 0.0
  %132 = vmatpush1.msra.mxu0 0.0
  %133 = vmatprep.subr.mxu0 0.0
  %134 = vmatpush1.msra.mxu0 0.0
  %135 = vmatprep.subr.mxu0 0.0
  %136 = vmatpush1.msra.mxu0 0.0
  %137 = vmatprep.subr.mxu0 0.0
  %138 = vmatpush1.msra.mxu0 0.0
  %139 = vmatprep.subr.mxu0 0.0
  %140 = vmatpush1.msra.mxu0 0.0
  %141 = vmatprep.subr.mxu0 0.0
  %142 = vmatpush1.msra.mxu0 0.0
  %143 = vmatprep.subr.mxu0 0.0
  %144 = vmatpush1.msra.mxu0 0.0
  %145 = vmatprep.subr.mxu0 0.0
  %146 = vmatpush1.msra.mxu0 0.0
  %147 = vmatprep.subr.mxu0 0.0
  %148 = vmatpush1.msra.mxu0 0.0
  %149 = vmatprep.subr.mxu0 0.0
  %150 = vmatpush1.msra.mxu0 0.0
  %151 = vmatprep.subr.mxu0 0.0
  %152 = vmatpush1.msra.mxu0 0.0
  %153 = vmatprep.subr.mxu0 0.0
  %154 = vmatpush1.msra.mxu0 0.0
  %155 = vmatprep.subr.mxu0 0.0
  %156 = vmatpush1.msra.mxu0 0.0
  %157 = vmatprep.subr.mxu0 0.0
  %158 = vmatpush1.msra.mxu0 0.0
  %159 = vmatprep.subr.mxu0 0.0
  %160 = vmatpush1.msra.mxu0 0.0
  %161 = vmatprep.subr.mxu0 0.0
  %162 = vmatpush1.msra.mxu0 0.0
  %163 = vmatprep.subr.mxu0 0.0
  %164 = vmatpush1.msra.mxu0 0.0
  %165 = vmatprep.subr.mxu0 0.0
  %166 = vmatpush1.msra.mxu0 0.0
  %167 = vmatprep.subr.mxu0 0.0
  %168 = vmatpush1.msra.mxu0 0.0
  %169 = vmatprep.subr.mxu0 0.0
  %170 = vmatpush1.msra.mxu0 0.0
  %171 = vmatprep.subr.mxu0 0.0
  %172 = vmatpush1.msra.mxu0 0.0
  %173 = vmatprep.subr.mxu0 0.0
  %174 = vmatpush1.msra.mxu0 0.0
  %175 = vmatprep.subr.mxu0 0.0
  %176 = vmatpush1.msra.mxu0 0.0
  %177 = vmatprep.subr.mxu0 0.0
  %178 = vmatpush1.msra.mxu0 0.0
  %179 = vmatprep.subr.mxu0 0.0
  %180 = vmatpush1.msra.mxu0 0.0
  %181 = vmatprep.subr.mxu0 0.0
  %182 = vmatpush1.msra.mxu0 0.0
  %183 = vmatprep.subr.mxu0 0.0
  %184 = vmatpush1.msra.mxu0 0.0
  %185 = vmatprep.subr.mxu0 0.0
  %186 = vmatpush1.msra.mxu0 0.0
  %187 = vmatprep.mubr.f32.mxu0 0.0
  %188 = vmatmul.mubr.f32.gmra.mrb[0].mxu0 %v121
  %v189 = vpop.f32.mrb[0].mxu0
  %v190 = vadd.f32 %v117, %v189
  %v191 = vpop.f32.mrb[0].mxu0
  %192 = vdwg.mxu0
  %v193 = vtanh.pop %v190
  %v195 = vsel %vm119, %v109, 0
  %197 = vmatprep.subr.mxu0 0.0
  %198 = vmatpush1.msra.mxu0 %v110
  %199 = vmatprep.subr.mxu0 0.0
  %200 = vmatpush1.msra.mxu0 %v111
  %201 = vmatprep.subr.mxu0 0.0
  %202 = vmatpush1.msra.mxu0 0.0
  %203 = vmatprep.subr.mxu0 0.0
  %204 = vmatpush1.msra.mxu0 0.0
  %205 = vmatprep.subr.mxu0 0.0
  %206 = vmatpush1.msra.mxu0 0.0
  %207 = vmatprep.subr.mxu0 0.0
  %208 = vmatpush1.msra.mxu0 0.0
  %209 = vmatprep.subr.mxu0 0.0
  %210 = vmatpush1.msra.mxu0 0.0
  %211 = vmatprep.subr.mxu0 0.0
  %212 = vmatpush1.msra.mxu0 0.0
  %213 = vmatprep.subr.mxu0 0.0
  %214 = vmatpush1.msra.mxu0 0.0
  %215 = vmatprep.subr.mxu0 0.0
  %216 = vmatpush1.msra.mxu0 0.0
  %217 = vmatprep.subr.mxu0 0.0
  %218 = vmatpush1.msra.mxu0 0.0
  %219 = vmatprep.subr.mxu0 0.0
  %220 = vmatpush1.msra.mxu0 0.0
  %221 = vmatprep.subr.mxu0 0.0
  %222 = vmatpush1.msra.mxu0 0.0
  %223 = vmatprep.subr.mxu0 0.0
  %224 = vmatpush1.msra.mxu0 0.0
  %225 = vmatprep.subr.mxu0 0.0
  %226 = vmatpush1.msra.mxu0 0.0
  %227 = vmatprep.subr.mxu0 0.0
  %228 = vmatpush1.msra.mxu0 0.0
  %229 = vmatprep.subr.mxu0 0.0
  %230 = vmatpush1.msra.mxu0 0.0
  %231 = vmatprep.subr.mxu0 0.0
  %232 = vmatpush1.msra.mxu0 0.0
  %233 = vmatprep.subr.mxu0 0.0
  %234 = vmatpush1.msra.mxu0 0.0
  %235 = vmatprep.subr.mxu0 0.0
  %236 = vmatpush1.msra.mxu0 0.0
  %237 = vmatprep.subr.mxu0 0.0
  %238 = vmatpush1.msra.mxu0 0.0
  %239 = vmatprep.subr.mxu0 0.0
  %240 = vmatpush1.msra.mxu0 0.0
  %241 = vmatprep.subr.mxu0 0.0
  %242 = vmatpush1.msra.mxu0 0.0
  %243 = vmatprep.subr.mxu0 0.0
  %244 = vmatpush1.msra.mxu0 0.0
  %245 = vmatprep.subr.mxu0 0.0
  %246 = vmatpush1.msra.mxu0 0.0
  %247 = vmatprep.subr.mxu0 0.0
  %248 = vmatpush1.msra.mxu0 0.0
  %249 = vmatprep.subr.mxu0 0.0
  %250 = vmatpush1.msra.mxu0 0.0
  %251 = vmatprep.subr.mxu0 0.0
  %252 = vmatpush1.msra.mxu0 0.0
  %253 = vmatprep.subr.mxu0 0.0
  %254 = vmatpush1.msra.mxu0 0.0
  %255 = vmatprep.subr.mxu0 0.0
  %256 = vmatpush1.msra.mxu0 0.0
  %257 = vmatprep.subr.mxu0 0.0
  %258 = vmatpush1.msra.mxu0 0.0
  %259 = vmatprep.subr.mxu0 0.0
  %260 = vmatpush1.msra.mxu0 0.0
  %261 = vmatprep.mubr.f32.mxu0 0.0
  %262 = vmatmul.mubr.f32.gmra.mrb[0].mxu0 %v195
  %v263 = vpop.f32.mrb[0].mxu0
  %v264 = vadd.f32 %v117, %v263
  %v265 = vpop.f32.mrb[0].mxu0
  %266 = vdwg.mxu0
  %v267 = vtanh.pop %v264
  %v268 = vld [vmem:[%s5] sm:$0x1]
  %v270 = vlaneseq
  %v271 = vshrl.u32 %v270, 7
  %v272 = vsub.s32 0, %v271
  %v273 = vrot.slane %v268, %v272
  %v275 = vmul.f32 %v193, %v273
  %vm276 = vcmask 128000
  %v277 = vsel %vm276, %v275, 0.0
  %278 = vadd.xlane.f32.xlu0 %v277
  %v279 = vpop.xlane.xlu0 %278
  %v280 = vmul.f32 %v267, %v273
  %v281 = vsel %vm276, %v280, 0.0
  %282 = vadd.xlane.f32.xlu0 %v281
  %v283 = vpop.xlane.xlu0 %282
  %v284 = vmax.f32 %v279, %v283
  %v285 = vsub.f32 %v279, %v284
  %v286 = vmul.f32 %v285, 1.442695
  %v287 = vpow.pop %v286
  %v288 = vsub.f32 %v283, %v284
  %v289 = vmul.f32 %v288, 1.442695
  %v290 = vpow.pop %v289
  %v291 = vmul.f32 %v106, %v287
  %v292 = vmul.f32 %v109, %v290
  %v293 = vadd.f32 %v291, %v292
  %v294 = vadd.f32 %v287, %v290
  %v295 = vrcp.pop %v294
  %v296 = vmul.f32 %v293, %v295
  %v297 = vld [vmem:[%s6] sm:$0xff]
  %v298 = vld [vmem:[%s6 + $0x8] sm:$0xff]
  %v299 = vld [vmem:[%s6 + $0x10] sm:$0xff]
  %v300 = vld [vmem:[%s6 + $0x18] sm:$0xff]
  %v301 = vld [vmem:[%s7] sm:$0x3]
  %v303 = vlaneseq
  %v304 = vshrl.u32 %v303, 7
  %v305 = vsub.s32 0, %v304
  %v306 = vrot.slane %v301, %v305
  %v307 = vlaneseq
  %v308 = vshrl.u32 %v307, 7
  %v309 = vsub.s32 1, %v308
  %v310 = vrot.slane %v301, %v309
  %v314 = vsel %vm119, %v296, 0
  %316 = vmatprep.subr.mxu0 %v298
  %317 = vmatpush1.msra.mxu0 %v297
  %318 = vmatprep.subr.mxu0 %v300
  %319 = vmatpush1.msra.mxu0 %v299
  %320 = vmatprep.subr.mxu0 0.0
  %321 = vmatpush1.msra.mxu0 0.0
  %322 = vmatprep.subr.mxu0 0.0
  %323 = vmatpush1.msra.mxu0 0.0
  %324 = vmatprep.subr.mxu0 0.0
  %325 = vmatpush1.msra.mxu0 0.0
  %326 = vmatprep.subr.mxu0 0.0
  %327 = vmatpush1.msra.mxu0 0.0
  %328 = vmatprep.subr.mxu0 0.0
  %329 = vmatpush1.msra.mxu0 0.0
  %330 = vmatprep.subr.mxu0 0.0
  %331 = vmatpush1.msra.mxu0 0.0
  %332 = vmatprep.subr.mxu0 0.0
  %333 = vmatpush1.msra.mxu0 0.0
  %334 = vmatprep.subr.mxu0 0.0
  %335 = vmatpush1.msra.mxu0 0.0
  %336 = vmatprep.subr.mxu0 0.0
  %337 = vmatpush1.msra.mxu0 0.0
  %338 = vmatprep.subr.mxu0 0.0
  %339 = vmatpush1.msra.mxu0 0.0
  %340 = vmatprep.subr.mxu0 0.0
  %341 = vmatpush1.msra.mxu0 0.0
  %342 = vmatprep.subr.mxu0 0.0
  %343 = vmatpush1.msra.mxu0 0.0
  %344 = vmatprep.subr.mxu0 0.0
  %345 = vmatpush1.msra.mxu0 0.0
  %346 = vmatprep.subr.mxu0 0.0
  %347 = vmatpush1.msra.mxu0 0.0
  %348 = vmatprep.subr.mxu0 0.0
  %349 = vmatpush1.msra.mxu0 0.0
  %350 = vmatprep.subr.mxu0 0.0
  %351 = vmatpush1.msra.mxu0 0.0
  %352 = vmatprep.subr.mxu0 0.0
  %353 = vmatpush1.msra.mxu0 0.0
  %354 = vmatprep.subr.mxu0 0.0
  %355 = vmatpush1.msra.mxu0 0.0
  %356 = vmatprep.subr.mxu0 0.0
  %357 = vmatpush1.msra.mxu0 0.0
  %358 = vmatprep.subr.mxu0 0.0
  %359 = vmatpush1.msra.mxu0 0.0
  %360 = vmatprep.subr.mxu0 0.0
  %361 = vmatpush1.msra.mxu0 0.0
  %362 = vmatprep.subr.mxu0 0.0
  %363 = vmatpush1.msra.mxu0 0.0
  %364 = vmatprep.subr.mxu0 0.0
  %365 = vmatpush1.msra.mxu0 0.0
  %366 = vmatprep.subr.mxu0 0.0
  %367 = vmatpush1.msra.mxu0 0.0
  %368 = vmatprep.subr.mxu0 0.0
  %369 = vmatpush1.msra.mxu0 0.0
  %370 = vmatprep.subr.mxu0 0.0
  %371 = vmatpush1.msra.mxu0 0.0
  %372 = vmatprep.subr.mxu0 0.0
  %373 = vmatpush1.msra.mxu0 0.0
  %374 = vmatprep.subr.mxu0 0.0
  %375 = vmatpush1.msra.mxu0 0.0
  %376 = vmatprep.subr.mxu0 0.0
  %377 = vmatpush1.msra.mxu0 0.0
  %378 = vmatprep.subr.mxu0 0.0
  %379 = vmatpush1.msra.mxu0 0.0
  %380 = vmatprep.mubr.f32.mxu0 0.0
  %381 = vmatmul.mubr.f32.gmra.mrb[0].mxu0 %v314
  %v382 = vpop.f32.mrb[0].mxu0
  %v383 = vadd.f32 %v306, %v382
  %v384 = vpop.f32.mrb[0].mxu0
  %v385 = vadd.f32 %v310, %v384
  %386 = vdwg.mxu0
  %387 = vst [vmem:[%s8] sm:$0x3f] %v383
  %388 = vst [vmem:[%s8 + $0x8] sm:$0x3f] %v385
  // Predicated region
  $region34: #{hierachy_vae_forward.10} parent=0 // pred_check
    _
  $region35: #{hierachy_vae_forward.10} parent=0 // pred_check_branch
    %390 = sbr.rel (0) target = $region37
  $region36: #{hierachy_vae_forward.10} parent=0 // pred_region
    _
  $region37: #{hierachy_vae_forward.10} parent=0 // pred_fallthru
    _
  // Predicated region
  $region38: #{hierachy_vae_forward.10} parent=0 // pred_check
    _
  $region39: #{hierachy_vae_forward.10} parent=0 // pred_check_branch
    %392 = sbr.rel (0) target = $region41
  $region40: #{hierachy_vae_forward.10} parent=0 // pred_region
    _
  $region41: #{hierachy_vae_forward.10} parent=0 // pred_fallthru
    _

// kernel: hierachy_vae_forward.8
$region0: #{hierachy_vae_forward.8}
  #allocation0 [shape = 'u32[]', space=smem, size = 0x4, offset = 0x4, fixed_abs, tag = 'smem constant byte address 0x4 - core index']
  #allocation1 [shape = 'u32[144,128]{1,0:T(1,128)}', space=vmem, size = 0x12000, scoped, tag = 'internal scratch']
  %s0 = inlined_call_operand.vmem [shape: f32[6,20], index: 0, kind: input, shape index: {}]
  %s1 = inlined_call_operand.vmem [shape: f32[20,32], index: 1, kind: input, shape index: {}]
  %s2 = inlined_call_operand.vmem [shape: f32[1,32], index: 2, kind: input, shape index: {}]
  %s3 = inlined_call_operand.vmem [shape: f32[6,16], index: 3, kind: input, shape index: {}]
  %s4 = inlined_call_operand.vmem [shape: f32[6,4], index: 4, kind: input, shape index: {}]
  %s5 = inlined_call_operand.vmem [shape: f32[16,128], index: 5, kind: input, shape index: {}]
  %s6 = inlined_call_operand.vmem [shape: f32[4,128], index: 6, kind: input, shape index: {}]
  %s7 = inlined_call_operand.vmem [shape: f32[1,128], index: 7, kind: input, shape index: {}]
  %s8 = inlined_call_operand.hbm [shape: f32[1,1], index: 8, kind: output, shape index: {0}]
  %s9 = inlined_call_operand.hbm [shape: f32[6,128], index: 9, kind: output, shape index: {1}]
  %10 = xla_tuple %s8, %s9
  %s11 = sld [smem:[#allocation0]]
  $region50: #{hierachy_vae_forward.8} parent=0
    _
  %s13 = ssub.s32 1, %s11
  %s14 = scalar_select 0, %s13, %s11
  $region1: #{hierachy_vae_forward.8} parent=0
    #allocation2 [shape = 'u8[512]{0}', space=vmem, size = 0x400, scoped, tag = 'output window, operand 0, single buffered']
    #allocation3 [shape = 's32[1]{0}', space=sflag, size = 0x4, scoped, tag = 'scoped memory for hierachy_vae_forward.8']
    #allocation4 [shape = 'u8[4096]{0}', space=vmem, size = 0x1000, scoped, tag = 'output window, operand 1, single buffered']
    #allocation5 [shape = 's32[1]{0}', space=sflag, size = 0x4, scoped, tag = 'scoped memory for hierachy_vae_forward.8']
    %15 = vsyncpa [#allocation3], 0
    %16 = vsyncpa [#allocation5], 0
    // Predicated region
    $region2: #{hierachy_vae_forward.8} parent=1 // pred_check
      _
    $region3: #{hierachy_vae_forward.8} parent=1 // pred_check_branch
      %18 = sbr.rel (0) target = $region5
    $region4: #{hierachy_vae_forward.8} parent=1 // pred_region
      _
    $region5: #{hierachy_vae_forward.8} parent=1 // pred_fallthru
      _
    // Predicated region
    $region6: #{hierachy_vae_forward.8} parent=1 // pred_check
      _
    $region7: #{hierachy_vae_forward.8} parent=1 // pred_check_branch
      %20 = sbr.rel (0) target = $region9
    $region8: #{hierachy_vae_forward.8} parent=1 // pred_region
      _
    $region9: #{hierachy_vae_forward.8} parent=1 // pred_fallthru
      _
    // Predicated region
    $region10: #{hierachy_vae_forward.8} parent=1 // pred_check
      _
    $region11: #{hierachy_vae_forward.8} parent=1 // pred_check_branch
      %22 = sbr.rel (0) target = $region13
    $region12: #{hierachy_vae_forward.8} parent=1 // pred_region
      _
    $region13: #{hierachy_vae_forward.8} parent=1 // pred_fallthru
      _
    // Predicated region
    $region14: #{hierachy_vae_forward.8} parent=1 // pred_check
      _
    $region15: #{hierachy_vae_forward.8} parent=1 // pred_check_branch
      %24 = sbr.rel (0) target = $region17
    $region16: #{hierachy_vae_forward.8} parent=1 // pred_region
      _
    $region17: #{hierachy_vae_forward.8} parent=1 // pred_fallthru
      _
    // Predicated region
    $region18: #{hierachy_vae_forward.8} parent=1 // pred_check
      _
    $region19: #{hierachy_vae_forward.8} parent=1 // pred_check_branch
      %26 = sbr.rel (0) target = $region21
    $region20: #{hierachy_vae_forward.8} parent=1 // pred_region
      _
    $region21: #{hierachy_vae_forward.8} parent=1 // pred_fallthru
      _
    // Predicated region
    $region22: #{hierachy_vae_forward.8} parent=1 // pred_check
      _
    $region23: #{hierachy_vae_forward.8} parent=1 // pred_check_branch
      %28 = sbr.rel (0) target = $region25
    $region24: #{hierachy_vae_forward.8} parent=1 // pred_region
      _
    $region25: #{hierachy_vae_forward.8} parent=1 // pred_fallthru
      _
    // Predicated region
    $region26: #{hierachy_vae_forward.8} parent=1 // pred_check
      _
    $region27: #{hierachy_vae_forward.8} parent=1 // pred_check_branch
      %30 = sbr.rel (0) target = $region29
    $region28: #{hierachy_vae_forward.8} parent=1 // pred_region
      _
    $region29: #{hierachy_vae_forward.8} parent=1 // pred_fallthru
      _
    // Predicated region
    $region30: #{hierachy_vae_forward.8} parent=1 // pred_check
      _
    $region31: #{hierachy_vae_forward.8} parent=1 // pred_check_branch
      %32 = sbr.rel (0) target = $region33
    $region32: #{hierachy_vae_forward.8} parent=1 // pred_region
      _
    $region33: #{hierachy_vae_forward.8} parent=1 // pred_fallthru
      _
    %v33 = vld [vmem:[%s0] sm:$0x3f]
    %v34 = vld [vmem:[%s1] sm:$0xff]
    %v35 = vld [vmem:[%s1 + $0x8] sm:$0xff]
    %v36 = vld [vmem:[%s1 + $0x10] sm:$0xf]
    %v37 = vld [vmem:[%s2] sm:$0x1]
    %v39 = vlaneseq
    %v40 = vshrl.u32 %v39, 7
    %v41 = vsub.s32 0, %v40
    %v42 = vrot.slane %v37, %v41
    %vm44 = vcmask 162816
    %v46 = vsel %vm44, %v33, 0
    %vm48 = vcmask 1043456
    %v50 = vsel %vm48, %v36, 0
    %52 = vmatprep.subr.mxu0 0.0
    %53 = vmatpush1.msra.mxu0 %v34
    %54 = vmatprep.subr.mxu0 0.0
    %55 = vmatpush1.msra.mxu0 %v35
    %56 = vmatprep.subr.mxu0 0.0
    %57 = vmatpush1.msra.mxu0 %v50
    %58 = vmatprep.subr.mxu0 0.0
    %59 = vmatpush1.msra.mxu0 0.0
    %60 = vmatprep.subr.mxu0 0.0
    %61 = vmatpush1.msra.mxu0 0.0
    %62 = vmatprep.subr.mxu0 0.0
    %63 = vmatpush1.msra.mxu0 0.0
    %64 = vmatprep.subr.mxu0 0.0
    %65 = vmatpush1.msra.mxu0 0.0
    %66 = vmatprep.subr.mxu0 0.0
    %67 = vmatpush1.msra.mxu0 0.0
    %68 = vmatprep.subr.mxu0 0.0
    %69 = vmatpush1.msra.mxu0 0.0
    %70 = vmatprep.subr.mxu0 0.0
    %71 = vmatpush1.msra.mxu0 0.0
    %72 = vmatprep.subr.mxu0 0.0
    %73 = vmatpush1.msra.mxu0 0.0
    %74 = vmatprep.subr.mxu0 0.0
    %75 = vmatpush1.msra.mxu0 0.0
    %76 = vmatprep.subr.mxu0 0.0
    %77 = vmatpush1.msra.mxu0 0.0
    %78 = vmatprep.subr.mxu0 0.0
    %79 = vmatpush1.msra.mxu0 0.0
    %80 = vmatprep.subr.mxu0 0.0
    %81 = vmatpush1.msra.mxu0 0.0
    %82 = vmatprep.subr.mxu0 0.0
    %83 = vmatpush1.msra.mxu0 0.0
    %84 = vmatprep.subr.mxu0 0.0
    %85 = vmatpush1.msra.mxu0 0.0
    %86 = vmatprep.subr.mxu0 0.0
    %87 = vmatpush1.msra.mxu0 0.0
    %88 = vmatprep.subr.mxu0 0.0
    %89 = vmatpush1.msra.mxu0 0.0
    %90 = vmatprep.subr.mxu0 0.0
    %91 = vmatpush1.msra.mxu0 0.0
    %92 = vmatprep.subr.mxu0 0.0
    %93 = vmatpush1.msra.mxu0 0.0
    %94 = vmatprep.subr.mxu0 0.0
    %95 = vmatpush1.msra.mxu0 0.0
    %96 = vmatprep.subr.mxu0 0.0
    %97 = vmatpush1.msra.mxu0 0.0
    %98 = vmatprep.subr.mxu0 0.0
    %99 = vmatpush1.msra.mxu0 0.0
    %100 = vmatprep.subr.mxu0 0.0
    %101 = vmatpush1.msra.mxu0 0.0
    %102 = vmatprep.subr.mxu0 0.0
    %103 = vmatpush1.msra.mxu0 0.0
    %104 = vmatprep.subr.mxu0 0.0
    %105 = vmatpush1.msra.mxu0 0.0
    %106 = vmatprep.subr.mxu0 0.0
    %107 = vmatpush1.msra.mxu0 0.0
    %108 = vmatprep.subr.mxu0 0.0
    %109 = vmatpush1.msra.mxu0 0.0
    %110 = vmatprep.subr.mxu0 0.0
    %111 = vmatpush1.msra.mxu0 0.0
    %112 = vmatprep.subr.mxu0 0.0
    %113 = vmatpush1.msra.mxu0 0.0
    %114 = vmatprep.subr.mxu0 0.0
    %115 = vmatpush1.msra.mxu0 0.0
    %116 = vmatprep.mubr.f32.mxu0 0.0
    %117 = vmatmul.mubr.f32.gmra.mrb[0].mxu0 %v46
    %v118 = vpop.f32.mrb[0].mxu0
    %v119 = vadd.f32 %v42, %v118
    %v120 = vpop.f32.mrb[0].mxu0
    %121 = vdwg.mxu0
    %v122 = vmul.f32 %v119, %v119
    %124 = vrot.lane.b32.xlu0 %v122, 16
    %v125 = vpop.permute.xlu0 %124
    %v127 = vsub.f32 %v119, %v125
    %v128 = vmul.f32 %v119, 1.442695
    %v129 = vpow.pop %v128
    %v130 = vsub.f32 %v127, %v129
    %v131 = vadd.f32 %v130, 1.0
    %133 = vrot.lane.b32.xlu0 %v131, 112
    %v134 = vpop.permute.xlu0 %133
    %vm136 = vcmask 128000
    %v137 = vsel %vm136, %v134, 0.0
    %138 = vadd.xlane.f32.xlu0 %v137
    %v139 = vpop.xlane.xlu0 %138
    %v140 = vrot.slane %v139, 4
    %v141 = vadd.f32 %v139, %v140
    %v142 = vrot.slane %v141, 2
    %v143 = vadd.f32 %v141, %v142
    %v144 = vrot.slane %v143, 1
    %v145 = vadd.f32 %v143, %v144
    %s146 = vtos %v145
    %s147 = smul.f32 %s146, -0.5
    %v148 = vrcp.pop 6.0
    %s149 = vtos %v148
    %s150 = smul.f32 %s147, %s149
    %v151 = vstv %s150
    %vm152 = vcmask 0
    %153 = vst.msk [vmem:[#allocation2] sm:$0x1] %vm152, %v151
    %v154 = vld [vmem:[%s3] sm:$0x3f]
    %v155 = vmul.f32 %v119, 0.5
    %v156 = vmul.f32 %v155, 1.442695
    %v157 = vpow.pop %v156
    %159 = vrot.lane.b32.xlu0 %v157, 112
    %v160 = vpop.permute.xlu0 %159
    %v162 = vmul.f32 %v154, %v160
    %v163 = vadd.f32 %v119, %v162
    %v164 = vld [vmem:[%s5] sm:$0xff]
    %v165 = vld [vmem:[%s5 + $0x8] sm:$0xff]
    %v166 = vld [vmem:[%s4] sm:$0x3f]
    %v167 = vld [vmem:[%s6] sm:$0xf]
    %vm168 = vcmask 31744
    %v170 = vsel %vm168, %v166, 0
    %v173 = vsel %vm48, %v167, 0
    %175 = vmatprep.subr.mxu0 0.0
    %176 = vmatpush1.msra.mxu0 %v173
    %177 = vmatprep.subr.mxu0 0.0
    %178 = vmatpush1.msra.mxu0 0.0
    %179 = vmatprep.subr.mxu0 0.0
    %180 = vmatpush1.msra.mxu0 0.0
    %181 = vmatprep.subr.mxu0 0.0
    %182 = vmatpush1.msra.mxu0 0.0
    %183 = vmatprep.subr.mxu0 0.0
    %184 = vmatpush1.msra.mxu0 0.0
    %185 = vmatprep.subr.mxu0 0.0
    %186 = vmatpush1.msra.mxu0 0.0
    %187 = vmatprep.subr.mxu0 0.0
    %188 = vmatpush1.msra.mxu0 0.0
    %189 = vmatprep.subr.mxu0 0.0
    %190 = vmatpush1.msra.mxu0 0.0
    %191 = vmatprep.subr.mxu0 0.0
    %192 = vmatpush1.msra.mxu0 0.0
    %193 = vmatprep.subr.mxu0 0.0
    %194 = vmatpush1.msra.mxu0 0.0
    %195 = vmatprep.subr.mxu0 0.0
    %196 = vmatpush1.msra.mxu0 0.0
    %197 = vmatprep.subr.mxu0 0.0
    %198 = vmatpush1.msra.mxu0 0.0
    %199 = vmatprep.subr.mxu0 0.0
    %200 = vmatpush1.msra.mxu0 0.0
    %201 = vmatprep.subr.mxu0 0.0
    %202 = vmatpush1.msra.mxu0 0.0
    %203 = vmatprep.subr.mxu0 0.0
    %204 = vmatpush1.msra.mxu0 0.0
    %205 = vmatprep.subr.mxu0 0.0
    %206 = vmatpush1.msra.mxu0 0.0
    %207 = vmatprep.subr.mxu0 0.0
    %208 = vmatpush1.msra.mxu0 0.0
    %209 = vmatprep.subr.mxu0 0.0
    %210 = vmatpush1.msra.mxu0 0.0
    %211 = vmatprep.subr.mxu0 0.0
    %212 = vmatpush1.msra.mxu0 0.0
    %213 = vmatprep.subr.mxu0 0.0
    %214 = vmatpush1.msra.mxu0 0.0
    %215 = vmatprep.subr.mxu0 0.0
    %216 = vmatpush1.msra.mxu0 0.0
    %217 = vmatprep.subr.mxu0 0.0
    %218 = vmatpush1.msra.mxu0 0.0
    %219 = vmatprep.subr.mxu0 0.0
    %220 = vmatpush1.msra.mxu0 0.0
    %221 = vmatprep.subr.mxu0 0.0
    %222 = vmatpush1.msra.mxu0 0.0
    %223 = vmatprep.subr.mxu0 0.0
    %224 = vmatpush1.msra.mxu0 0.0
    %225 = vmatprep.subr.mxu0 0.0
    %226 = vmatpush1.msra.mxu0 0.0
    %227 = vmatprep.subr.mxu0 0.0
    %228 = vmatpush1.msra.mxu0 0.0
    %229 = vmatprep.subr.mxu0 0.0
    %230 = vmatpush1.msra.mxu0 0.0
    %231 = vmatprep.subr.mxu0 0.0
    %232 = vmatpush1.msra.mxu0 0.0
    %233 = vmatprep.subr.mxu0 0.0
    %234 = vmatpush1.msra.mxu0 0.0
    %235 = vmatprep.subr.mxu0 0.0
    %236 = vmatpush1.msra.mxu0 0.0
    %237 = vmatprep.subr.mxu0 0.0
    %238 = vmatpush1.msra.mxu0 0.0
    %239 = vmatprep.mubr.f32.mxu0 0.0
    %240 = vmatmul.mubr.f32.gmra.mrb[0].mxu0 %v170
    %v241 = vpop.f32.mrb[0].mxu0
    %v242 = vadd.f32 0.0, %v241
    %v243 = vpop.f32.mrb[0].mxu0
    %244 = vdwg.mxu0
    %vm245 = vcmask 130048
    %v247 = vsel %vm245, %v163, 0
    %249 = vmatprep.subr.mxu0 0.0
    %250 = vmatpush1.msra.mxu0 %v164
    %251 = vmatprep.subr.mxu0 0.0
    %252 = vmatpush1.msra.mxu0 %v165
    %253 = vmatprep.subr.mxu0 0.0
    %254 = vmatpush1.msra.mxu0 0.0
    %255 = vmatprep.subr.mxu0 0.0
    %256 = vmatpush1.msra.mxu0 0.0
    %257 = vmatprep.subr.mxu0 0.0
    %258 = vmatpush1.msra.mxu0 0.0
    %259 = vmatprep.subr.mxu0 0.0
    %260 = vmatpush1.msra.mxu0 0.0
    %261 = vmatprep.subr.mxu0 0.0
    %262 = vmatpush1.msra.mxu0 0.0
    %263 = vmatprep.subr.mxu0 0.0
    %264 = vmatpush1.msra.mxu0 0.0
    %265 = vmatprep.subr.mxu0 0.0
    %266 = vmatpush1.msra.mxu0 0.0
    %267 = vmatprep.subr.mxu0 0.0
    %268 = vmatpush1.msra.mxu0 0.0
    %269 = vmatprep.subr.mxu0 0.0
    %270 = vmatpush1.msra.mxu0 0.0
    %271 = vmatprep.subr.mxu0 0.0
    %272 = vmatpush1.msra.mxu0 0.0
    %273 = vmatprep.subr.mxu0 0.0
    %274 = vmatpush1.msra.mxu0 0.0
    %275 = vmatprep.subr.mxu0 0.0
    %276 = vmatpush1.msra.mxu0 0.0
    %277 = vmatprep.subr.mxu0 0.0
    %278 = vmatpush1.msra.mxu0 0.0
    %279 = vmatprep.subr.mxu0 0.0
    %280 = vmatpush1.msra.mxu0 0.0
    %281 = vmatprep.subr.mxu0 0.0
    %282 = vmatpush1.msra.mxu0 0.0
    %283 = vmatprep.subr.mxu0 0.0
    %284 = vmatpush1.msra.mxu0 0.0
    %285 = vmatprep.subr.mxu0 0.0
    %286 = vmatpush1.msra.mxu0 0.0
    %287 = vmatprep.subr.mxu0 0.0
    %288 = vmatpush1.msra.mxu0 0.0
    %289 = vmatprep.subr.mxu0 0.0
    %290 = vmatpush1.msra.mxu0 0.0
    %291 = vmatprep.subr.mxu0 0.0
    %292 = vmatpush1.msra.mxu0 0.0
    %293 = vmatprep.subr.mxu0 0.0
    %294 = vmatpush1.msra.mxu0 0.0
    %295 = vmatprep.subr.mxu0 0.0
    %296 = vmatpush1.msra.mxu0 0.0
    %297 = vmatprep.subr.mxu0 0.0
    %298 = vmatpush1.msra.mxu0 0.0
    %299 = vmatprep.subr.mxu0 0.0
    %300 = vmatpush1.msra.mxu0 0.0
    %301 = vmatprep.subr.mxu0 0.0
    %302 = vmatpush1.msra.mxu0 0.0
    %303 = vmatprep.subr.mxu0 0.0
    %304 = vmatpush1.msra.mxu0 0.0
    %305 = vmatprep.subr.mxu0 0.0
    %306 = vmatpush1.msra.mxu0 0.0
    %307 = vmatprep.subr.mxu0 0.0
    %308 = vmatpush1.msra.mxu0 0.0
    %309 = vmatprep.subr.mxu0 0.0
    %310 = vmatpush1.msra.mxu0 0.0
    %311 = vmatprep.subr.mxu0 0.0
    %312 = vmatpush1.msra.mxu0 0.0
    %313 = vmatprep.mubr.f32.mxu0 0.0
    %314 = vmatmul.mubr.f32.gmra.mrb[0].mxu0 %v247
    %v315 = vpop.f32.mrb[0].mxu0
    %v316 = vadd.f32 %v242, %v315
    %v317 = vpop.f32.mrb[0].mxu0
    %318 = vdwg.mxu0
    %v319 = vld [vmem:[%s7] sm:$0x1]
    %v321 = vlaneseq
    %v322 = vshrl.u32 %v321, 7
    %v323 = vsub.s32 0, %v322
    %v324 = vrot.slane %v319, %v323
    %v326 = vadd.f32 %v316, %v324
    %327 = vst [vmem:[#allocation4] sm:$0x3f] %v326
    // Predicated region
    $region34: #{hierachy_vae_forward.8} parent=1 // pred_check
      _
    $region35: #{hierachy_vae_forward.8} parent=1 // pred_check_branch
      %329 = sbr.rel (0) target = $region37
    $region36: #{hierachy_vae_forward.8} parent=1 // pred_region
      %s331 = ssub.s32 16, 16
      %332 = vsyncadd [#allocation3], %s331
      %s334 = sshll.u32 [#allocation2], 4
      %s335 = int_to_ptr.vmem [resolvable:$true] %s334
      %337 = dma.vmem_to_hbm [thread:$0]  %s335, 16, %s8, [#allocation3]
    $region37: #{hierachy_vae_forward.8} parent=1 // pred_fallthru
      _
    // Predicated region
    $region38: #{hierachy_vae_forward.8} parent=1 // pred_check
      _
    $region39: #{hierachy_vae_forward.8} parent=1 // pred_check_branch
      %339 = sbr.rel (0) target = $region41
    $region40: #{hierachy_vae_forward.8} parent=1 // pred_region
      %s341 = ssub.s32 128, 128
      %342 = vsyncadd [#allocation5], %s341
      %s344 = sshll.u32 [#allocation4], 4
      %s345 = int_to_ptr.vmem [resolvable:$true] %s344
      %347 = dma.vmem_to_hbm [thread:$0]  %s345, 128, %s9, [#allocation5]
    $region41: #{hierachy_vae_forward.8} parent=1 // pred_fallthru
      _
    // Predicated region
    $region42: #{hierachy_vae_forward.8} parent=1 // pred_check
      _
    $region43: #{hierachy_vae_forward.8} parent=1 // pred_check_branch
      %349 = sbr.rel (0) target = $region45
    $region44: #{hierachy_vae_forward.8} parent=1 // pred_region
      %350 = dma.done [#allocation3], 16
    $region45: #{hierachy_vae_forward.8} parent=1 // pred_fallthru
      _
    // Predicated region
    $region46: #{hierachy_vae_forward.8} parent=1 // pred_check
      _
    $region47: #{hierachy_vae_forward.8} parent=1 // pred_check_branch
      %352 = sbr.rel (0) target = $region49
    $region48: #{hierachy_vae_forward.8} parent=1 // pred_region
      %353 = dma.done [#allocation5], 128
    $region49: #{hierachy_vae_forward.8} parent=1 // pred_fallthru
      _
    %354 = vsyncpa [#allocation3], 1
    %355 = vsyncpa [#allocation5], 1

// kernel: hierachy_vae_forward.6
$region0: #{hierachy_vae_forward.6}
  #allocation0 [shape = 'u32[]', space=smem, size = 0x4, offset = 0x4, fixed_abs, tag = 'smem constant byte address 0x4 - core index']
  #allocation1 [shape = 'u32[144,128]{1,0:T(1,128)}', space=vmem, size = 0x12000, scoped, tag = 'internal scratch']
  %s0 = inlined_call_operand.hbm [shape: f32[48,32], index: 0, kind: input, shape index: {}]
  %s1 = inlined_call_operand.hbm [shape: f32[48,32], index: 1, kind: input, shape index: {}]
  %s2 = inlined_call_operand.hbm [shape: f32[1,32], index: 2, kind: input, shape index: {}]
  %s3 = inlined_call_operand.hbm [shape: f32[1,32], index: 3, kind: input, shape index: {}]
  %s4 = inlined_call_operand.hbm [shape: f32[1,32], index: 4, kind: input, shape index: {}]
  %s5 = inlined_call_operand.hbm [shape: f32[32,128], index: 5, kind: input, shape index: {}]
  %s6 = inlined_call_operand.hbm [shape: f32[48,128], index: 6, kind: output, shape index: {}]
  %s7 = sld [smem:[#allocation0]]
  $region58: #{hierachy_vae_forward.6} parent=0
    _
  %s9 = ssub.s32 1, %s7
  %s10 = scalar_select 0, %s9, %s7
  $region1: #{hierachy_vae_forward.6} parent=0
    #allocation2 [shape = 'u8[24576]{0}', space=vmem, size = 0x6000, scoped, tag = 'input window, operand 0, single buffered']
    #allocation3 [shape = 's32[1]{0}', space=sflag, size = 0x4, scoped, tag = 'scoped memory for hierachy_vae_forward.6']
    #allocation4 [shape = 's32[1]{0}', space=sflag, size = 0x4, scoped, tag = 'scoped memory for hierachy_vae_forward.6']
    #allocation5 [shape = 'u8[24576]{0}', space=vmem, size = 0x6000, scoped, tag = 'input window, operand 1, single buffered']
    #allocation6 [shape = 's32[1]{0}', space=sflag, size = 0x4, scoped, tag = 'scoped memory for hierachy_vae_forward.6']
    #allocation7 [shape = 'u8[512]{0}', space=vmem, size = 0x400, scoped, tag = 'input window, operand 2, single buffered']
    #allocation8 [shape = 'u8[512]{0}', space=vmem, size = 0x400, scoped, tag = 'input window, operand 3, single buffered']
    #allocation9 [shape = 's32[1]{0}', space=sflag, size = 0x4, scoped, tag = 'scoped memory for hierachy_vae_forward.6']
    #allocation10 [shape = 'u8[512]{0}', space=vmem, size = 0x400, scoped, tag = 'input window, operand 4, single buffered']
    #allocation11 [shape = 'u8[16384]{0}', space=vmem, size = 0x4000, scoped, tag = 'input window, operand 5, single buffered']
    #allocation12 [shape = 's32[1]{0}', space=sflag, size = 0x4, scoped, tag = 'scoped memory for hierachy_vae_forward.6']
    #allocation13 [shape = 'u8[24576]{0}', space=vmem, size = 0x6000, scoped, tag = 'output window, operand 0, single buffered']
    %11 = vsyncpa [#allocation3], 0
    %12 = vsyncpa [#allocation6], 0
    %13 = vsyncpa [#allocation9], 0
    %14 = vsyncpa [#allocation12], 0
    %15 = vsyncpa [#allocation4], 0
    // Predicated region
    $region2: #{hierachy_vae_forward.6} parent=1 // pred_check
      _
    $region3: #{hierachy_vae_forward.6} parent=1 // pred_check_branch
      %17 = sbr.rel (0) target = $region5
    $region4: #{hierachy_vae_forward.6} parent=1 // pred_region
      %s19 = ssub.s32 768, 768
      %20 = vsyncadd [#allocation3], %s19
      %s21 = sshll.u32 [#allocation2], 4
      %s22 = int_to_ptr.vmem [resolvable:$true] %s21
      %27 = dma.hbm_to_vmem [thread:$0]  %s0, 768, %s22, [#allocation3], 128, 128, 8
    $region5: #{hierachy_vae_forward.6} parent=1 // pred_fallthru
      _
    // Predicated region
    $region6: #{hierachy_vae_forward.6} parent=1 // pred_check
      _
    $region7: #{hierachy_vae_forward.6} parent=1 // pred_check_branch
      %29 = sbr.rel (0) target = $region9
    $region8: #{hierachy_vae_forward.6} parent=1 // pred_region
      %s31 = ssub.s32 768, 768
      %32 = vsyncadd [#allocation6], %s31
      %s33 = sshll.u32 [#allocation5], 4
      %s34 = int_to_ptr.vmem [resolvable:$true] %s33
      %39 = dma.hbm_to_vmem [thread:$0]  %s1, 768, %s34, [#allocation6], 128, 128, 8
    $region9: #{hierachy_vae_forward.6} parent=1 // pred_fallthru
      _
    // Predicated region
    $region10: #{hierachy_vae_forward.6} parent=1 // pred_check
      _
    $region11: #{hierachy_vae_forward.6} parent=1 // pred_check_branch
      %41 = sbr.rel (0) target = $region13
    $region12: #{hierachy_vae_forward.6} parent=1 // pred_region
      %s43 = ssub.s32 16, 16
      %44 = vsyncadd [#allocation6], %s43
      %s46 = sshll.u32 [#allocation7], 4
      %s47 = int_to_ptr.vmem [resolvable:$true] %s46
      %49 = dma.hbm_to_vmem [thread:$0]  %s2, 16, %s47, [#allocation6]
    $region13: #{hierachy_vae_forward.6} parent=1 // pred_fallthru
      _
    // Predicated region
    $region14: #{hierachy_vae_forward.6} parent=1 // pred_check
      _
    $region15: #{hierachy_vae_forward.6} parent=1 // pred_check_branch
      %51 = sbr.rel (0) target = $region17
    $region16: #{hierachy_vae_forward.6} parent=1 // pred_region
      %s53 = ssub.s32 16, 16
      %54 = vsyncadd [#allocation9], %s53
      %s56 = sshll.u32 [#allocation8], 4
      %s57 = int_to_ptr.vmem [resolvable:$true] %s56
      %59 = dma.hbm_to_vmem [thread:$0]  %s3, 16, %s57, [#allocation9]
    $region17: #{hierachy_vae_forward.6} parent=1 // pred_fallthru
      _
    // Predicated region
    $region18: #{hierachy_vae_forward.6} parent=1 // pred_check
      _
    $region19: #{hierachy_vae_forward.6} parent=1 // pred_check_branch
      %61 = sbr.rel (0) target = $region21
    $region20: #{hierachy_vae_forward.6} parent=1 // pred_region
      %s63 = ssub.s32 16, 16
      %64 = vsyncadd [#allocation9], %s63
      %s66 = sshll.u32 [#allocation10], 4
      %s67 = int_to_ptr.vmem [resolvable:$true] %s66
      %69 = dma.hbm_to_vmem [thread:$0]  %s4, 16, %s67, [#allocation9]
    $region21: #{hierachy_vae_forward.6} parent=1 // pred_fallthru
      _
    // Predicated region
    $region22: #{hierachy_vae_forward.6} parent=1 // pred_check
      _
    $region23: #{hierachy_vae_forward.6} parent=1 // pred_check_branch
      %71 = sbr.rel (0) target = $region25
    $region24: #{hierachy_vae_forward.6} parent=1 // pred_region
      %s73 = ssub.s32 512, 512
      %74 = vsyncadd [#allocation12], %s73
      %s75 = sshll.u32 [#allocation11], 4
      %s76 = int_to_ptr.vmem [resolvable:$true] %s75
      %81 = dma.hbm_to_vmem [thread:$0]  %s5, 512, %s76, [#allocation12], 128, 128, 8
    $region25: #{hierachy_vae_forward.6} parent=1 // pred_fallthru
      _
    // Predicated region
    $region26: #{hierachy_vae_forward.6} parent=1 // pred_check
      _
    $region27: #{hierachy_vae_forward.6} parent=1 // pred_check_branch
      %83 = sbr.rel (0) target = $region29
    $region28: #{hierachy_vae_forward.6} parent=1 // pred_region
      %84 = dma.done [#allocation3], 768
    $region29: #{hierachy_vae_forward.6} parent=1 // pred_fallthru
      _
    // Predicated region
    $region30: #{hierachy_vae_forward.6} parent=1 // pred_check
      _
    $region31: #{hierachy_vae_forward.6} parent=1 // pred_check_branch
      %86 = sbr.rel (0) target = $region33
    $region32: #{hierachy_vae_forward.6} parent=1 // pred_region
      %87 = dma.done [#allocation6], 768
    $region33: #{hierachy_vae_forward.6} parent=1 // pred_fallthru
      _
    // Predicated region
    $region34: #{hierachy_vae_forward.6} parent=1 // pred_check
      _
    $region35: #{hierachy_vae_forward.6} parent=1 // pred_check_branch
      %89 = sbr.rel (0) target = $region37
    $region36: #{hierachy_vae_forward.6} parent=1 // pred_region
      %90 = dma.done [#allocation6], 16
    $region37: #{hierachy_vae_forward.6} parent=1 // pred_fallthru
      _
    // Predicated region
    $region38: #{hierachy_vae_forward.6} parent=1 // pred_check
      _
    $region39: #{hierachy_vae_forward.6} parent=1 // pred_check_branch
      %92 = sbr.rel (0) target = $region41
    $region40: #{hierachy_vae_forward.6} parent=1 // pred_region
      %93 = dma.done [#allocation9], 16
    $region41: #{hierachy_vae_forward.6} parent=1 // pred_fallthru
      _
    // Predicated region
    $region42: #{hierachy_vae_forward.6} parent=1 // pred_check
      _
    $region43: #{hierachy_vae_forward.6} parent=1 // pred_check_branch
      %95 = sbr.rel (0) target = $region45
    $region44: #{hierachy_vae_forward.6} parent=1 // pred_region
      %96 = dma.done [#allocation9], 16
    $region45: #{hierachy_vae_forward.6} parent=1 // pred_fallthru
      _
    // Predicated region
    $region46: #{hierachy_vae_forward.6} parent=1 // pred_check
      _
    $region47: #{hierachy_vae_forward.6} parent=1 // pred_check_branch
      %98 = sbr.rel (0) target = $region49
    $region48: #{hierachy_vae_forward.6} parent=1 // pred_region
      %99 = dma.done [#allocation12], 512
    $region49: #{hierachy_vae_forward.6} parent=1 // pred_fallthru
      _
    %v100 = vld [vmem:[#allocation2] sm:$0xff]
    %v101 = vld [vmem:[#allocation2 + $0x8] sm:$0xff]
    %v102 = vld [vmem:[#allocation2 + $0x10] sm:$0xff]
    %v103 = vld [vmem:[#allocation2 + $0x18] sm:$0xff]
    %v104 = vld [vmem:[#allocation2 + $0x20] sm:$0xff]
    %v105 = vld [vmem:[#allocation2 + $0x28] sm:$0xff]
    %v106 = vld [vmem:[#allocation5] sm:$0xff]
    %v107 = vld [vmem:[#allocation5 + $0x8] sm:$0xff]
    %v108 = vld [vmem:[#allocation5 + $0x10] sm:$0xff]
    %v109 = vld [vmem:[#allocation5 + $0x18] sm:$0xff]
    %v110 = vld [vmem:[#allocation5 + $0x20] sm:$0xff]
    %v111 = vld [vmem:[#allocation5 + $0x28] sm:$0xff]
    %v112 = vadd.f32 %v100, %v106
    %v113 = vadd.f32 %v101, %v107
    %v114 = vadd.f32 %v102, %v108
    %v115 = vadd.f32 %v103, %v109
    %v116 = vadd.f32 %v104, %v110
    %v117 = vadd.f32 %v105, %v111
    %v118 = vld [vmem:[#allocation7] sm:$0x1]
    %v120 = vlaneseq
    %v121 = vshrl.u32 %v120, 7
    %v122 = vsub.s32 0, %v121
    %v123 = vrot.slane %v118, %v122
    %v125 = vadd.f32 %v112, %v123
    %v126 = vadd.f32 %v113, %v123
    %v127 = vadd.f32 %v114, %v123
    %v128 = vadd.f32 %v115, %v123
    %v129 = vadd.f32 %v116, %v123
    %v130 = vadd.f32 %v117, %v123
    %vm131 = vcmask 261120
    %v132 = vsel %vm131, %v125, 0.0
    %133 = vadd.xlane.f32.xlu0 %v132
    %v134 = vpop.xlane.xlu0 %133
    %v135 = vsel %vm131, %v126, 0.0
    %136 = vadd.xlane.f32.xlu0 %v135
    %v137 = vpop.xlane.xlu0 %136
    %v138 = vsel %vm131, %v127, 0.0
    %139 = vadd.xlane.f32.xlu0 %v138
    %v140 = vpop.xlane.xlu0 %139
    %v141 = vsel %vm131, %v128, 0.0
    %142 = vadd.xlane.f32.xlu0 %v141
    %v143 = vpop.xlane.xlu0 %142
    %v144 = vsel %vm131, %v129, 0.0
    %145 = vadd.xlane.f32.xlu0 %v144
    %v146 = vpop.xlane.xlu0 %145
    %v147 = vsel %vm131, %v130, 0.0
    %148 = vadd.xlane.f32.xlu0 %v147
    %v149 = vpop.xlane.xlu0 %148
    %v150 = vrcp.pop 32.0
    %v151 = vmul.f32 %v134, %v150
    %v152 = vmul.f32 %v137, %v150
    %v153 = vmul.f32 %v140, %v150
    %v154 = vmul.f32 %v143, %v150
    %v155 = vmul.f32 %v146, %v150
    %v156 = vmul.f32 %v149, %v150
    %v157 = vsub.f32 %v125, %v151
    %v158 = vsub.f32 %v126, %v152
    %v159 = vsub.f32 %v127, %v153
    %v160 = vsub.f32 %v128, %v154
    %v161 = vsub.f32 %v129, %v155
    %v162 = vsub.f32 %v130, %v156
    %v163 = vmul.f32 %v157, %v157
    %v164 = vmul.f32 %v158, %v158
    %v165 = vmul.f32 %v159, %v159
    %v166 = vmul.f32 %v160, %v160
    %v167 = vmul.f32 %v161, %v161
    %v168 = vmul.f32 %v162, %v162
    %v169 = vsel %vm131, %v163, 0.0
    %170 = vadd.xlane.f32.xlu0 %v169
    %v171 = vpop.xlane.xlu0 %170
    %v172 = vsel %vm131, %v164, 0.0
    %173 = vadd.xlane.f32.xlu0 %v172
    %v174 = vpop.xlane.xlu0 %173
    %v175 = vsel %vm131, %v165, 0.0
    %176 = vadd.xlane.f32.xlu0 %v175
    %v177 = vpop.xlane.xlu0 %176
    %v178 = vsel %vm131, %v166, 0.0
    %179 = vadd.xlane.f32.xlu0 %v178
    %v180 = vpop.xlane.xlu0 %179
    %v181 = vsel %vm131, %v167, 0.0
    %182 = vadd.xlane.f32.xlu0 %v181
    %v183 = vpop.xlane.xlu0 %182
    %v184 = vsel %vm131, %v168, 0.0
    %185 = vadd.xlane.f32.xlu0 %v184
    %v186 = vpop.xlane.xlu0 %185
    %v187 = vmul.f32 %v171, %v150
    %v188 = vmul.f32 %v174, %v150
    %v189 = vmul.f32 %v177, %v150
    %v190 = vmul.f32 %v180, %v150
    %v191 = vmul.f32 %v183, %v150
    %v192 = vmul.f32 %v186, %v150
    %v193 = vadd.f32 %v187, 1e-12
    %v194 = vadd.f32 %v188, 1e-12
    %v195 = vadd.f32 %v189, 1e-12
    %v196 = vadd.f32 %v190, 1e-12
    %v197 = vadd.f32 %v191, 1e-12
    %v198 = vadd.f32 %v192, 1e-12
    %v199 = vrsqrt.pop %v193
    %v200 = vrsqrt.pop %v194
    %v201 = vrsqrt.pop %v195
    %v202 = vrsqrt.pop %v196
    %v203 = vrsqrt.pop %v197
    %v204 = vrsqrt.pop %v198
    %v205 = vmul.f32 %v157, %v199
    %v206 = vmul.f32 %v158, %v200
    %v207 = vmul.f32 %v159, %v201
    %v208 = vmul.f32 %v160, %v202
    %v209 = vmul.f32 %v161, %v203
    %v210 = vmul.f32 %v162, %v204
    %v211 = vld [vmem:[#allocation8] sm:$0x1]
    %v213 = vlaneseq
    %v214 = vshrl.u32 %v213, 7
    %v215 = vsub.s32 0, %v214
    %v216 = vrot.slane %v211, %v215
    %v218 = vmul.f32 %v205, %v216
    %v219 = vmul.f32 %v206, %v216
    %v220 = vmul.f32 %v207, %v216
    %v221 = vmul.f32 %v208, %v216
    %v222 = vmul.f32 %v209, %v216
    %v223 = vmul.f32 %v210, %v216
    %v224 = vld [vmem:[#allocation10] sm:$0x1]
    %v226 = vlaneseq
    %v227 = vshrl.u32 %v226, 7
    %v228 = vsub.s32 0, %v227
    %v229 = vrot.slane %v224, %v228
    %v231 = vadd.f32 %v218, %v229
    %v232 = vadd.f32 %v219, %v229
    %v233 = vadd.f32 %v220, %v229
    %v234 = vadd.f32 %v221, %v229
    %v235 = vadd.f32 %v222, %v229
    %v236 = vadd.f32 %v223, %v229
    %v237 = vld [vmem:[#allocation11] sm:$0xff]
    %v238 = vld [vmem:[#allocation11 + $0x8] sm:$0xff]
    %v239 = vld [vmem:[#allocation11 + $0x10] sm:$0xff]
    %v240 = vld [vmem:[#allocation11 + $0x18] sm:$0xff]
    %v242 = vsel %vm131, %v231, 0
    %v245 = vsel %vm131, %v232, 0
    %v248 = vsel %vm131, %v233, 0
    %v251 = vsel %vm131, %v234, 0
    %v254 = vsel %vm131, %v235, 0
    %v257 = vsel %vm131, %v236, 0
    %259 = vmatprep.subr.mxu0 0.0
    %260 = vmatpush1.msra.mxu0 %v237
    %261 = vmatprep.subr.mxu0 0.0
    %262 = vmatpush1.msra.mxu0 %v238
    %263 = vmatprep.subr.mxu0 0.0
    %264 = vmatpush1.msra.mxu0 %v239
    %265 = vmatprep.subr.mxu0 0.0
    %266 = vmatpush1.msra.mxu0 %v240
    %267 = vmatprep.subr.mxu0 0.0
    %268 = vmatpush1.msra.mxu0 0.0
    %269 = vmatprep.subr.mxu0 0.0
    %270 = vmatpush1.msra.mxu0 0.0
    %271 = vmatprep.subr.mxu0 0.0
    %272 = vmatpush1.msra.mxu0 0.0
    %273 = vmatprep.subr.mxu0 0.0
    %274 = vmatpush1.msra.mxu0 0.0
    %275 = vmatprep.subr.mxu0 0.0
    %276 = vmatpush1.msra.mxu0 0.0
    %277 = vmatprep.subr.mxu0 0.0
    %278 = vmatpush1.msra.mxu0 0.0
    %279 = vmatprep.subr.mxu0 0.0
    %280 = vmatpush1.msra.mxu0 0.0
    %281 = vmatprep.subr.mxu0 0.0
    %282 = vmatpush1.msra.mxu0 0.0
    %283 = vmatprep.subr.mxu0 0.0
    %284 = vmatpush1.msra.mxu0 0.0
    %285 = vmatprep.subr.mxu0 0.0
    %286 = vmatpush1.msra.mxu0 0.0
    %287 = vmatprep.subr.mxu0 0.0
    %288 = vmatpush1.msra.mxu0 0.0
    %289 = vmatprep.subr.mxu0 0.0
    %290 = vmatpush1.msra.mxu0 0.0
    %291 = vmatprep.subr.mxu0 0.0
    %292 = vmatpush1.msra.mxu0 0.0
    %293 = vmatprep.subr.mxu0 0.0
    %294 = vmatpush1.msra.mxu0 0.0
    %295 = vmatprep.subr.mxu0 0.0
    %296 = vmatpush1.msra.mxu0 0.0
    %297 = vmatprep.subr.mxu0 0.0
    %298 = vmatpush1.msra.mxu0 0.0
    %299 = vmatprep.subr.mxu0 0.0
    %300 = vmatpush1.msra.mxu0 0.0
    %301 = vmatprep.subr.mxu0 0.0
    %302 = vmatpush1.msra.mxu0 0.0
    %303 = vmatprep.subr.mxu0 0.0
    %304 = vmatpush1.msra.mxu0 0.0
    %305 = vmatprep.subr.mxu0 0.0
    %306 = vmatpush1.msra.mxu0 0.0
    %307 = vmatprep.subr.mxu0 0.0
    %308 = vmatpush1.msra.mxu0 0.0
    %309 = vmatprep.subr.mxu0 0.0
    %310 = vmatpush1.msra.mxu0 0.0
    %311 = vmatprep.subr.mxu0 0.0
    %312 = vmatpush1.msra.mxu0 0.0
    %313 = vmatprep.subr.mxu0 0.0
    %314 = vmatpush1.msra.mxu0 0.0
    %315 = vmatprep.subr.mxu0 0.0
    %316 = vmatpush1.msra.mxu0 0.0
    %317 = vmatprep.subr.mxu0 0.0
    %318 = vmatpush1.msra.mxu0 0.0
    %319 = vmatprep.subr.mxu0 0.0
    %320 = vmatpush1.msra.mxu0 0.0
    %321 = vmatprep.subr.mxu0 0.0
    %322 = vmatpush1.msra.mxu0 0.0
    %323 = vmatprep.mubr.f32.mxu0 0.0
    %324 = vmatmul.mubr.f32.gmra.mrb[0].mxu0 %v242
    %v325 = vpop.f32.mrb[0].mxu0
    %v326 = vadd.f32 0.0, %v325
    %v327 = vpop.f32.mrb[0].mxu0
    %328 = vmatprep.mubr.f32.mxu0 0.0
    %329 = vmatmul.mubr.f32.gmra.mrb[0].mxu0 %v245
    %v330 = vpop.f32.mrb[0].mxu0
    %v331 = vadd.f32 0.0, %v330
    %v332 = vpop.f32.mrb[0].mxu0
    %333 = vmatprep.mubr.f32.mxu0 0.0
    %334 = vmatmul.mubr.f32.gmra.mrb[0].mxu0 %v248
    %v335 = vpop.f32.mrb[0].mxu0
    %v336 = vadd.f32 0.0, %v335
    %v337 = vpop.f32.mrb[0].mxu0
    %338 = vmatprep.mubr.f32.mxu0 0.0
    %339 = vmatmul.mubr.f32.gmra.mrb[0].mxu0 %v251
    %v340 = vpop.f32.mrb[0].mxu0
    %v341 = vadd.f32 0.0, %v340
    %v342 = vpop.f32.mrb[0].mxu0
    %343 = vmatprep.mubr.f32.mxu0 0.0
    %344 = vmatmul.mubr.f32.gmra.mrb[0].mxu0 %v254
    %v345 = vpop.f32.mrb[0].mxu0
    %v346 = vadd.f32 0.0, %v345
    %v347 = vpop.f32.mrb[0].mxu0
    %348 = vmatprep.mubr.f32.mxu0 0.0
    %349 = vmatmul.mubr.f32.gmra.mrb[0].mxu0 %v257
    %v350 = vpop.f32.mrb[0].mxu0
    %v351 = vadd.f32 0.0, %v350
    %v352 = vpop.f32.mrb[0].mxu0
    %353 = vdwg.mxu0
    %354 = vst [vmem:[#allocation13] sm:$0xff] %v326
    %355 = vst [vmem:[#allocation13 + $0x8] sm:$0xff] %v331
    %356 = vst [vmem:[#allocation13 + $0x10] sm:$0xff] %v336
    %357 = vst [vmem:[#allocation13 + $0x18] sm:$0xff] %v341
    %358 = vst [vmem:[#allocation13 + $0x20] sm:$0xff] %v346
    %359 = vst [vmem:[#allocation13 + $0x28] sm:$0xff] %v351
    // Predicated region
    $region50: #{hierachy_vae_forward.6} parent=1 // pred_check
      _
    $region51: #{hierachy_vae_forward.6} parent=1 // pred_check_branch
      %361 = sbr.rel (0) target = $region53
    $region52: #{hierachy_vae_forward.6} parent=1 // pred_region
      %s363 = ssub.s32 768, 768
      %364 = vsyncadd [#allocation4], %s363
      %s365 = sshll.u32 [#allocation13], 4
      %s366 = int_to_ptr.vmem [resolvable:$true] %s365
      %371 = dma.vmem_to_hbm [thread:$0]  %s366, 768, %s6, [#allocation4], 128, 128, 8
    $region53: #{hierachy_vae_forward.6} parent=1 // pred_fallthru
      _
    // Predicated region
    $region54: #{hierachy_vae_forward.6} parent=1 // pred_check
      _
    $region55: #{hierachy_vae_forward.6} parent=1 // pred_check_branch
      %373 = sbr.rel (0) target = $region57
    $region56: #{hierachy_vae_forward.6} parent=1 // pred_region
      %374 = dma.done [#allocation4], 768
    $region57: #{hierachy_vae_forward.6} parent=1 // pred_fallthru
      _
    %375 = vsyncpa [#allocation3], 1
    %376 = vsyncpa [#allocation6], 1
    %377 = vsyncpa [#allocation9], 1
    %378 = vsyncpa [#allocation12], 1
    %379 = vsyncpa [#allocation4], 1

// kernel: hierachy_vae_forward.9
$region0: #{hierachy_vae_forward.9}
  #allocation0 [shape = 'u32[]', space=smem, size = 0x4, offset = 0x4, fixed_abs, tag = 'smem constant byte address 0x4 - core index']
  #allocation1 [shape = 'u32[144,128]{1,0:T(1,128)}', space=vmem, size = 0x12000, scoped, tag = 'internal scratch']
  #allocation2 [shape = 'f32[6,32]{1,0:T(8,128)}', space=vmem, size = 0x1000, scoped, tag = 'scratch operand']
  #allocation3 [shape = 'f32[6,32]{1,0:T(8,128)}', space=vmem, size = 0x1000, scoped, tag = 'scratch operand']
  #allocation4 [shape = 'f32[6,32]{1,0:T(8,128)}', space=vmem, size = 0x1000, scoped, tag = 'scratch operand']
  #allocation5 [shape = 'f32[6,32]{1,0:T(8,128)}', space=vmem, size = 0x1000, scoped, tag = 'scratch operand']
  %s0 = inlined_call_operand.hbm [shape: f32[8,6,128], index: 0, kind: input, shape index: {}]
  %s1 = inlined_call_operand.hbm [shape: f32[6,128], index: 1, kind: input, shape index: {}]
  %s2 = inlined_call_operand.hbm [shape: f32[32,128], index: 2, kind: input, shape index: {}]
  %s3 = inlined_call_operand.hbm [shape: f32[32,128], index: 3, kind: input, shape index: {}]
  %s4 = inlined_call_operand.hbm [shape: f32[32,128], index: 4, kind: input, shape index: {}]
  %s5 = inlined_call_operand.hbm [shape: f32[1,128], index: 5, kind: input, shape index: {}]
  %s6 = inlined_call_operand.hbm [shape: f32[32,64], index: 6, kind: input, shape index: {}]
  %s7 = inlined_call_operand.hbm [shape: f32[1,64], index: 7, kind: input, shape index: {}]
  %s8 = inlined_call_operand.hbm [shape: f32[8,6,64], index: 8, kind: output, shape index: {}]
  %s9 = sld [smem:[#allocation0]]
  $region101: #{hierachy_vae_forward.9} parent=0
    _
  %s11 = ssub.s32 1, %s9
  %s12 = scalar_select 0, %s11, %s9
  $region1: #{hierachy_vae_forward.9} parent=0
    #allocation6 [shape = 'u8[8192]{0}', space=vmem, size = 0x2000, scoped, tag = 'input window, operand 0']
    #allocation7 [shape = 's32[2]{0}', space=sflag, size = 0x8, scoped, tag = 'scoped memory for hierachy_vae_forward.9']
    #allocation8 [shape = 's32[2]{0}', space=sflag, size = 0x8, scoped, tag = 'scoped memory for hierachy_vae_forward.9']
    #allocation9 [shape = 'u8[4096]{0}', space=vmem, size = 0x1000, scoped, tag = 'input window, operand 1, single buffered']
    #allocation10 [shape = 's32[1]{0}', space=sflag, size = 0x4, scoped, tag = 'scoped memory for hierachy_vae_forward.9']
    #allocation11 [shape = 'u8[16384]{0}', space=vmem, size = 0x4000, scoped, tag = 'input window, operand 2, single buffered']
    #allocation12 [shape = 'u8[16384]{0}', space=vmem, size = 0x4000, scoped, tag = 'input window, operand 3, single buffered']
    #allocation13 [shape = 's32[1]{0}', space=sflag, size = 0x4, scoped, tag = 'scoped memory for hierachy_vae_forward.9']
    #allocation14 [shape = 'u8[16384]{0}', space=vmem, size = 0x4000, scoped, tag = 'input window, operand 4, single buffered']
    #allocation15 [shape = 'u8[512]{0}', space=vmem, size = 0x400, scoped, tag = 'input window, operand 5, single buffered']
    #allocation16 [shape = 's32[1]{0}', space=sflag, size = 0x4, scoped, tag = 'scoped memory for hierachy_vae_forward.9']
    #allocation17 [shape = 'u8[16384]{0}', space=vmem, size = 0x4000, scoped, tag = 'input window, operand 6, single buffered']
    #allocation18 [shape = 'u8[512]{0}', space=vmem, size = 0x400, scoped, tag = 'input window, operand 7, single buffered']
    #allocation19 [shape = 's32[1]{0}', space=sflag, size = 0x4, scoped, tag = 'scoped memory for hierachy_vae_forward.9']
    #allocation20 [shape = 'u8[8192]{0}', space=vmem, size = 0x2000, scoped, tag = 'output window, operand 0']
    %13 = vsyncpa [#allocation7], 0
    %s14 = scalar_lea.sflag [#allocation7], 1
    %15 = vsyncpa %s14, 0
    %16 = vsyncpa [#allocation10], 0
    %17 = vsyncpa [#allocation13], 0
    %18 = vsyncpa [#allocation16], 0
    %19 = vsyncpa [#allocation19], 0
    %20 = vsyncpa [#allocation8], 0
    %s21 = scalar_lea.sflag [#allocation8], 1
    %22 = vsyncpa %s21, 0
    loop: start=0, step=1, limit=10
    $region2: #{hierachy_vae_forward.9} parent=1 // loop_pre_header
      _
    $region3: #{hierachy_vae_forward.9} parent=1 // loop_header
      %s24 = sphi 0, %s28
      %p25 = scmp.ge.s32.totalorder %s24, 10
      %s34 = sphi 0, %s36
      %s37 = sphi 0, %s34
      %s38 = sphi 0, %s37
      %s54 = sphi 0, %s38
      %s58 = sphi 0, %s58
      %s60 = sphi 0, %s58
      %s61 = sphi 0, %s60
      %s75 = sphi 0, %s61
      %s79 = sphi 0, %s79
      %s81 = sphi 0, %s79
      %s82 = sphi 0, %s81
      %s96 = sphi 0, %s82
      %s100 = sphi 0, %s100
      %s102 = sphi 0, %s100
      %s103 = sphi 0, %s102
      %s117 = sphi 0, %s103
      %s121 = sphi 0, %s121
      %s123 = sphi 0, %s121
      %s124 = sphi 0, %s123
      %s138 = sphi 0, %s124
      %s142 = sphi 0, %s142
      %s144 = sphi 0, %s142
      %s145 = sphi 0, %s144
      %s159 = sphi 0, %s145
      %s163 = sphi 0, %s163
      %s165 = sphi 0, %s163
      %s166 = sphi 0, %s165
      %s180 = sphi 0, %s166
      %s184 = sphi 0, %s184
      %s186 = sphi 0, %s184
      %s187 = sphi 0, %s186
      %s201 = sphi 0, %s187
      %s207 = sphi 0, %s209
      %s210 = sphi 0, %s207
      %s211 = sphi 0, %s210
      %s227 = sphi 0, %s211
    $region4: #{hierachy_vae_forward.9} parent=1 // loop_header_branch
      %27 = sbr.rel (%p25) target = $region8
    $region5: #{hierachy_vae_forward.9} parent=1 // loop_body
      %s29 = ssub.s32 %s24, 1
      %s30 = ssub.s32 %s24, 2
      %s31 = sadd.s32 %s24, 1
      %s32 = ssub.s32 %s24, %s31
      %p33 = scmp.eq.s32.totalorder %s32, 0
      %s35 = sadd.s32 %s34, 1
      %s36 = scalar_select %p33, %s34, %s35
      %p39 = pneg %p33
      %p40 = scmp.eq.s32.totalorder %s24, 7
      %p41 = por %p39, %p40
      %p42 = scmp.ne.s32.totalorder %s34, %s37
      %p43 = scmp.eq.s32.totalorder %s24, 0
      %p44 = por %p42, %p43
      %p45 = scmp.ne.s32.totalorder %s34, %s37
      %p46 = scmp.eq.s32.totalorder %s29, 7
      %p47 = por %p45, %p46
      %p48 = scmp.ne.s32.totalorder %s37, %s38
      %p49 = scmp.eq.s32.totalorder %s29, 0
      %p50 = por %p48, %p49
      %p51 = scmp.ne.s32.totalorder %s37, %s38
      %p52 = scmp.eq.s32.totalorder %s30, 7
      %p53 = por %p51, %p52
      %p55 = scmp.ne.s32.totalorder %s38, %s54
      %p56 = scmp.eq.s32.totalorder %s30, 0
      %p57 = por %p55, %p56
      %s59 = sadd.s32 %s58, 1
      %p62 = scmp.eq.s32.totalorder %s24, 7
      %p63 = scmp.ne.s32.totalorder %s58, %s60
      %p64 = scmp.eq.s32.totalorder %s24, 0
      %p65 = por %p63, %p64
      %p66 = scmp.ne.s32.totalorder %s58, %s60
      %p67 = scmp.eq.s32.totalorder %s29, 7
      %p68 = por %p66, %p67
      %p69 = scmp.ne.s32.totalorder %s60, %s61
      %p70 = scmp.eq.s32.totalorder %s29, 0
      %p71 = por %p69, %p70
      %p72 = scmp.ne.s32.totalorder %s60, %s61
      %p73 = scmp.eq.s32.totalorder %s30, 7
      %p74 = por %p72, %p73
      %p76 = scmp.ne.s32.totalorder %s61, %s75
      %p77 = scmp.eq.s32.totalorder %s30, 0
      %p78 = por %p76, %p77
      %s80 = sadd.s32 %s79, 1
      %p83 = scmp.eq.s32.totalorder %s24, 7
      %p84 = scmp.ne.s32.totalorder %s79, %s81
      %p85 = scmp.eq.s32.totalorder %s24, 0
      %p86 = por %p84, %p85
      %p87 = scmp.ne.s32.totalorder %s79, %s81
      %p88 = scmp.eq.s32.totalorder %s29, 7
      %p89 = por %p87, %p88
      %p90 = scmp.ne.s32.totalorder %s81, %s82
      %p91 = scmp.eq.s32.totalorder %s29, 0
      %p92 = por %p90, %p91
      %p93 = scmp.ne.s32.totalorder %s81, %s82
      %p94 = scmp.eq.s32.totalorder %s30, 7
      %p95 = por %p93, %p94
      %p97 = scmp.ne.s32.totalorder %s82, %s96
      %p98 = scmp.eq.s32.totalorder %s30, 0
      %p99 = por %p97, %p98
      %s101 = sadd.s32 %s100, 1
      %p104 = scmp.eq.s32.totalorder %s24, 7
      %p105 = scmp.ne.s32.totalorder %s100, %s102
      %p106 = scmp.eq.s32.totalorder %s24, 0
      %p107 = por %p105, %p106
      %p108 = scmp.ne.s32.totalorder %s100, %s102
      %p109 = scmp.eq.s32.totalorder %s29, 7
      %p110 = por %p108, %p109
      %p111 = scmp.ne.s32.totalorder %s102, %s103
      %p112 = scmp.eq.s32.totalorder %s29, 0
      %p113 = por %p111, %p112
      %p114 = scmp.ne.s32.totalorder %s102, %s103
      %p115 = scmp.eq.s32.totalorder %s30, 7
      %p116 = por %p114, %p115
      %p118 = scmp.ne.s32.totalorder %s103, %s117
      %p119 = scmp.eq.s32.totalorder %s30, 0
      %p120 = por %p118, %p119
      %s122 = sadd.s32 %s121, 1
      %p125 = scmp.eq.s32.totalorder %s24, 7
      %p126 = scmp.ne.s32.totalorder %s121, %s123
      %p127 = scmp.eq.s32.totalorder %s24, 0
      %p128 = por %p126, %p127
      %p129 = scmp.ne.s32.totalorder %s121, %s123
      %p130 = scmp.eq.s32.totalorder %s29, 7
      %p131 = por %p129, %p130
      %p132 = scmp.ne.s32.totalorder %s123, %s124
      %p133 = scmp.eq.s32.totalorder %s29, 0
      %p134 = por %p132, %p133
      %p135 = scmp.ne.s32.totalorder %s123, %s124
      %p136 = scmp.eq.s32.totalorder %s30, 7
      %p137 = por %p135, %p136
      %p139 = scmp.ne.s32.totalorder %s124, %s138
      %p140 = scmp.eq.s32.totalorder %s30, 0
      %p141 = por %p139, %p140
      %s143 = sadd.s32 %s142, 1
      %p146 = scmp.eq.s32.totalorder %s24, 7
      %p147 = scmp.ne.s32.totalorder %s142, %s144
      %p148 = scmp.eq.s32.totalorder %s24, 0
      %p149 = por %p147, %p148
      %p150 = scmp.ne.s32.totalorder %s142, %s144
      %p151 = scmp.eq.s32.totalorder %s29, 7
      %p152 = por %p150, %p151
      %p153 = scmp.ne.s32.totalorder %s144, %s145
      %p154 = scmp.eq.s32.totalorder %s29, 0
      %p155 = por %p153, %p154
      %p156 = scmp.ne.s32.totalorder %s144, %s145
      %p157 = scmp.eq.s32.totalorder %s30, 7
      %p158 = por %p156, %p157
      %p160 = scmp.ne.s32.totalorder %s145, %s159
      %p161 = scmp.eq.s32.totalorder %s30, 0
      %p162 = por %p160, %p161
      %s164 = sadd.s32 %s163, 1
      %p167 = scmp.eq.s32.totalorder %s24, 7
      %p168 = scmp.ne.s32.totalorder %s163, %s165
      %p169 = scmp.eq.s32.totalorder %s24, 0
      %p170 = por %p168, %p169
      %p171 = scmp.ne.s32.totalorder %s163, %s165
      %p172 = scmp.eq.s32.totalorder %s29, 7
      %p173 = por %p171, %p172
      %p174 = scmp.ne.s32.totalorder %s165, %s166
      %p175 = scmp.eq.s32.totalorder %s29, 0
      %p176 = por %p174, %p175
      %p177 = scmp.ne.s32.totalorder %s165, %s166
      %p178 = scmp.eq.s32.totalorder %s30, 7
      %p179 = por %p177, %p178
      %p181 = scmp.ne.s32.totalorder %s166, %s180
      %p182 = scmp.eq.s32.totalorder %s30, 0
      %p183 = por %p181, %p182
      %s185 = sadd.s32 %s184, 1
      %p188 = scmp.eq.s32.totalorder %s24, 7
      %p189 = scmp.ne.s32.totalorder %s184, %s186
      %p190 = scmp.eq.s32.totalorder %s24, 0
      %p191 = por %p189, %p190
      %p192 = scmp.ne.s32.totalorder %s184, %s186
      %p193 = scmp.eq.s32.totalorder %s29, 7
      %p194 = por %p192, %p193
      %p195 = scmp.ne.s32.totalorder %s186, %s187
      %p196 = scmp.eq.s32.totalorder %s29, 0
      %p197 = por %p195, %p196
      %p198 = scmp.ne.s32.totalorder %s186, %s187
      %p199 = scmp.eq.s32.totalorder %s30, 7
      %p200 = por %p198, %p199
      %p202 = scmp.ne.s32.totalorder %s187, %s201
      %p203 = scmp.eq.s32.totalorder %s30, 0
      %p204 = por %p202, %p203
      %s205 = ssub.s32 %s24, %s31
      %p206 = scmp.eq.s32.totalorder %s205, 0
      %s208 = sadd.s32 %s207, 1
      %s209 = scalar_select %p206, %s207, %s208
      %p212 = pneg %p206
      %p213 = scmp.eq.s32.totalorder %s24, 7
      %p214 = por %p212, %p213
      %p215 = scmp.ne.s32.totalorder %s207, %s210
      %p216 = scmp.eq.s32.totalorder %s24, 0
      %p217 = por %p215, %p216
      %p218 = scmp.ne.s32.totalorder %s207, %s210
      %p219 = scmp.eq.s32.totalorder %s29, 7
      %p220 = por %p218, %p219
      %p221 = scmp.ne.s32.totalorder %s210, %s211
      %p222 = scmp.eq.s32.totalorder %s29, 0
      %p223 = por %p221, %p222
      %p224 = scmp.ne.s32.totalorder %s210, %s211
      %p225 = scmp.eq.s32.totalorder %s30, 7
      %p226 = por %p224, %p225
      %p228 = scmp.ne.s32.totalorder %s211, %s227
      %p229 = scmp.eq.s32.totalorder %s30, 0
      %p230 = por %p228, %p229
      %p231 = scmp.le.s32.totalorder 1, %s24
      %p232 = scmp.lt.s32.totalorder %s24, 9
      %p233 = pnand %p231, %p232
      %p234 = pneg %p233
      // Predicated region
      $region9: #{hierachy_vae_forward.9} parent=5 // pred_check
        _
      $region10: #{hierachy_vae_forward.9} parent=5 // pred_check_branch
        %236 = sbr.rel (%p233) target = $region12
      $region11: #{hierachy_vae_forward.9} parent=5 // pred_region
        %s237 = ssub.s32 %s24, 1
        // Predicated region
        $region13: #{hierachy_vae_forward.9} parent=11 // pred_check
          %p238 = pneg %p71
        $region14: #{hierachy_vae_forward.9} parent=11 // pred_check_branch
          %240 = sbr.rel (%p238) target = $region16
        $region15: #{hierachy_vae_forward.9} parent=11 // pred_region
          %s242 = ssub.s32 128, 128
          %243 = vsyncadd [#allocation10], %s242
          %s245 = sshll.u32 [#allocation9], 4
          %s246 = int_to_ptr.vmem [resolvable:$true] %s245
          %248 = dma.hbm_to_vmem [thread:$0]  %s1, 128, %s246, [#allocation10]
        $region16: #{hierachy_vae_forward.9} parent=11 // pred_fallthru
          _
        // Predicated region
        $region17: #{hierachy_vae_forward.9} parent=11 // pred_check
          %p249 = pneg %p92
        $region18: #{hierachy_vae_forward.9} parent=11 // pred_check_branch
          %251 = sbr.rel (%p249) target = $region20
        $region19: #{hierachy_vae_forward.9} parent=11 // pred_region
          %s253 = ssub.s32 512, 512
          %254 = vsyncadd [#allocation10], %s253
          %s255 = sshll.u32 [#allocation11], 4
          %s256 = int_to_ptr.vmem [resolvable:$true] %s255
          %261 = dma.hbm_to_vmem [thread:$0]  %s2, 512, %s256, [#allocation10], 128, 128, 8
        $region20: #{hierachy_vae_forward.9} parent=11 // pred_fallthru
          _
        // Predicated region
        $region21: #{hierachy_vae_forward.9} parent=11 // pred_check
          %p262 = pneg %p113
        $region22: #{hierachy_vae_forward.9} parent=11 // pred_check_branch
          %264 = sbr.rel (%p262) target = $region24
        $region23: #{hierachy_vae_forward.9} parent=11 // pred_region
          %s266 = ssub.s32 512, 512
          %267 = vsyncadd [#allocation13], %s266
          %s268 = sshll.u32 [#allocation12], 4
          %s269 = int_to_ptr.vmem [resolvable:$true] %s268
          %274 = dma.hbm_to_vmem [thread:$0]  %s3, 512, %s269, [#allocation13], 128, 128, 8
        $region24: #{hierachy_vae_forward.9} parent=11 // pred_fallthru
          _
        // Predicated region
        $region25: #{hierachy_vae_forward.9} parent=11 // pred_check
          %p275 = pneg %p134
        $region26: #{hierachy_vae_forward.9} parent=11 // pred_check_branch
          %277 = sbr.rel (%p275) target = $region28
        $region27: #{hierachy_vae_forward.9} parent=11 // pred_region
          %s279 = ssub.s32 512, 512
          %280 = vsyncadd [#allocation13], %s279
          %s281 = sshll.u32 [#allocation14], 4
          %s282 = int_to_ptr.vmem [resolvable:$true] %s281
          %287 = dma.hbm_to_vmem [thread:$0]  %s4, 512, %s282, [#allocation13], 128, 128, 8
        $region28: #{hierachy_vae_forward.9} parent=11 // pred_fallthru
          _
        // Predicated region
        $region29: #{hierachy_vae_forward.9} parent=11 // pred_check
          %p288 = pneg %p155
        $region30: #{hierachy_vae_forward.9} parent=11 // pred_check_branch
          %290 = sbr.rel (%p288) target = $region32
        $region31: #{hierachy_vae_forward.9} parent=11 // pred_region
          %s292 = ssub.s32 16, 16
          %293 = vsyncadd [#allocation16], %s292
          %s295 = sshll.u32 [#allocation15], 4
          %s296 = int_to_ptr.vmem [resolvable:$true] %s295
          %298 = dma.hbm_to_vmem [thread:$0]  %s5, 16, %s296, [#allocation16]
        $region32: #{hierachy_vae_forward.9} parent=11 // pred_fallthru
          _
        // Predicated region
        $region33: #{hierachy_vae_forward.9} parent=11 // pred_check
          %p299 = pneg %p176
        $region34: #{hierachy_vae_forward.9} parent=11 // pred_check_branch
          %301 = sbr.rel (%p299) target = $region36
        $region35: #{hierachy_vae_forward.9} parent=11 // pred_region
          %s303 = ssub.s32 512, 512
          %304 = vsyncadd [#allocation16], %s303
          %s305 = sshll.u32 [#allocation17], 4
          %s306 = int_to_ptr.vmem [resolvable:$true] %s305
          %311 = dma.hbm_to_vmem [thread:$0]  %s6, 512, %s306, [#allocation16], 128, 128, 8
        $region36: #{hierachy_vae_forward.9} parent=11 // pred_fallthru
          _
        // Predicated region
        $region37: #{hierachy_vae_forward.9} parent=11 // pred_check
          %p312 = pneg %p197
        $region38: #{hierachy_vae_forward.9} parent=11 // pred_check_branch
          %314 = sbr.rel (%p312) target = $region40
        $region39: #{hierachy_vae_forward.9} parent=11 // pred_region
          %s316 = ssub.s32 16, 16
          %317 = vsyncadd [#allocation19], %s316
          %s319 = sshll.u32 [#allocation18], 4
          %s320 = int_to_ptr.vmem [resolvable:$true] %s319
          %322 = dma.hbm_to_vmem [thread:$0]  %s7, 16, %s320, [#allocation19]
        $region40: #{hierachy_vae_forward.9} parent=11 // pred_fallthru
          _
      $region12: #{hierachy_vae_forward.9} parent=5 // pred_fallthru
        _
      %p323 = scmp.lt.s32.totalorder %s24, 8
      // Predicated region
      $region41: #{hierachy_vae_forward.9} parent=5 // pred_check
        %p324 = pneg %p323
      $region42: #{hierachy_vae_forward.9} parent=5 // pred_check_branch
        %326 = sbr.rel (%p324) target = $region44
      $region43: #{hierachy_vae_forward.9} parent=5 // pred_region
        // Predicated region
        $region45: #{hierachy_vae_forward.9} parent=43 // pred_check
          %p327 = pneg %p44
        $region46: #{hierachy_vae_forward.9} parent=43 // pred_check_branch
          %329 = sbr.rel (%p327) target = $region48
        $region47: #{hierachy_vae_forward.9} parent=43 // pred_region
          %s330 = sand.u32 %s34, 1
          %s331 = scalar_lea.sflag [#allocation7], %s330
          %s332 = sand.u32 %s34, 1
          %s333 = smul.addr %s332, 8
          %s334 = scalar_lea.vmem [#allocation6], %s333
          %s336 = ssub.s32 128, 128
          %337 = vsyncadd %s331, %s336
          %s338 = smul.addr %s24, 128
          %s339 = scalar_lea.hbm %s0, %s338
          %s341 = sshll.u32 %s334, 4
          %s342 = int_to_ptr.vmem [resolvable:$true] %s341
          %344 = dma.hbm_to_vmem [thread:$0]  %s339, 128, %s342, %s331
        $region48: #{hierachy_vae_forward.9} parent=43 // pred_fallthru
          _
      $region44: #{hierachy_vae_forward.9} parent=5 // pred_fallthru
        _
      %p345 = scmp.le.s32.totalorder 1, %s24
      %p346 = scmp.lt.s32.totalorder %s24, 9
      %p347 = pnand %p345, %p346
      %p348 = pneg %p347
      // Predicated region
      $region49: #{hierachy_vae_forward.9} parent=5 // pred_check
        _
      $region50: #{hierachy_vae_forward.9} parent=5 // pred_check_branch
        %350 = sbr.rel (%p347) target = $region52
      $region51: #{hierachy_vae_forward.9} parent=5 // pred_region
        %s351 = ssub.s32 %s24, 1
        %s352 = sand.u32 %s37, 1
        %s353 = scalar_lea.sflag [#allocation7], %s352
        %s354 = sand.u32 %s37, 1
        %s355 = smul.addr %s354, 8
        %s356 = scalar_lea.vmem [#allocation6], %s355
        // Predicated region
        $region53: #{hierachy_vae_forward.9} parent=51 // pred_check
          %p357 = pneg %p50
        $region54: #{hierachy_vae_forward.9} parent=51 // pred_check_branch
          %359 = sbr.rel (%p357) target = $region56
        $region55: #{hierachy_vae_forward.9} parent=51 // pred_region
          %360 = dma.done %s353, 128
        $region56: #{hierachy_vae_forward.9} parent=51 // pred_fallthru
          _
        // Predicated region
        $region57: #{hierachy_vae_forward.9} parent=51 // pred_check
          %p361 = pneg %p71
        $region58: #{hierachy_vae_forward.9} parent=51 // pred_check_branch
          %363 = sbr.rel (%p361) target = $region60
        $region59: #{hierachy_vae_forward.9} parent=51 // pred_region
          %364 = dma.done [#allocation10], 128
        $region60: #{hierachy_vae_forward.9} parent=51 // pred_fallthru
          _
        // Predicated region
        $region61: #{hierachy_vae_forward.9} parent=51 // pred_check
          %p365 = pneg %p92
        $region62: #{hierachy_vae_forward.9} parent=51 // pred_check_branch
          %367 = sbr.rel (%p365) target = $region64
        $region63: #{hierachy_vae_forward.9} parent=51 // pred_region
          %368 = dma.done [#allocation10], 512
        $region64: #{hierachy_vae_forward.9} parent=51 // pred_fallthru
          _
        // Predicated region
        $region65: #{hierachy_vae_forward.9} parent=51 // pred_check
          %p369 = pneg %p113
        $region66: #{hierachy_vae_forward.9} parent=51 // pred_check_branch
          %371 = sbr.rel (%p369) target = $region68
        $region67: #{hierachy_vae_forward.9} parent=51 // pred_region
          %372 = dma.done [#allocation13], 512
        $region68: #{hierachy_vae_forward.9} parent=51 // pred_fallthru
          _
        // Predicated region
        $region69: #{hierachy_vae_forward.9} parent=51 // pred_check
          %p373 = pneg %p134
        $region70: #{hierachy_vae_forward.9} parent=51 // pred_check_branch
          %375 = sbr.rel (%p373) target = $region72
        $region71: #{hierachy_vae_forward.9} parent=51 // pred_region
          %376 = dma.done [#allocation13], 512
        $region72: #{hierachy_vae_forward.9} parent=51 // pred_fallthru
          _
        // Predicated region
        $region73: #{hierachy_vae_forward.9} parent=51 // pred_check
          %p377 = pneg %p155
        $region74: #{hierachy_vae_forward.9} parent=51 // pred_check_branch
          %379 = sbr.rel (%p377) target = $region76
        $region75: #{hierachy_vae_forward.9} parent=51 // pred_region
          %380 = dma.done [#allocation16], 16
        $region76: #{hierachy_vae_forward.9} parent=51 // pred_fallthru
          _
        // Predicated region
        $region77: #{hierachy_vae_forward.9} parent=51 // pred_check
          %p381 = pneg %p176
        $region78: #{hierachy_vae_forward.9} parent=51 // pred_check_branch
          %383 = sbr.rel (%p381) target = $region80
        $region79: #{hierachy_vae_forward.9} parent=51 // pred_region
          %384 = dma.done [#allocation16], 512
        $region80: #{hierachy_vae_forward.9} parent=51 // pred_fallthru
          _
        // Predicated region
        $region81: #{hierachy_vae_forward.9} parent=51 // pred_check
          %p385 = pneg %p197
        $region82: #{hierachy_vae_forward.9} parent=51 // pred_check_branch
          %387 = sbr.rel (%p385) target = $region84
        $region83: #{hierachy_vae_forward.9} parent=51 // pred_region
          %388 = dma.done [#allocation19], 16
        $region84: #{hierachy_vae_forward.9} parent=51 // pred_fallthru
          _
        %s389 = sand.u32 %s37, 1
        %s390 = scalar_lea.sflag [#allocation7], %s389
        %s391 = sand.u32 %s37, 1
        %s392 = smul.addr %s391, 8
        %s393 = scalar_lea.vmem [#allocation6], %s392
        %p394 = pneg %p50
        %p395 = pneg %p47
        %p396 = pneg %p71
        %p397 = pneg %p68
        %p398 = pneg %p92
        %p399 = pneg %p89
        %p400 = pneg %p113
        %p401 = pneg %p110
        %p402 = pneg %p134
        %p403 = pneg %p131
        %p404 = pneg %p155
        %p405 = pneg %p152
        %p406 = pneg %p176
        %p407 = pneg %p173
        %p408 = pneg %p197
        %p409 = pneg %p194
        %p410 = pneg %p223
        %p411 = pneg %p220
        %s412 = sand.u32 %s210, 1
        %s413 = scalar_lea.sflag [#allocation8], %s412
        %s414 = sand.u32 %s210, 1
        %s415 = smul.addr %s414, 8
        %s416 = scalar_lea.vmem [#allocation20], %s415
        %p417 = scmp.eq.s32.totalorder %s29, 0
        // Predicated region
        $region85: #{hierachy_vae_forward.9} parent=51 // pred_check
          %p418 = pneg %p417
        $region86: #{hierachy_vae_forward.9} parent=51 // pred_check_branch
          %420 = sbr.rel (%p418) target = $region88
        $region87: #{hierachy_vae_forward.9} parent=51 // pred_region
          %vm421 = vcmask 259072
          %422 = vst.msk [vmem:[#allocation2] sm:$0x3f] %vm421, 0.0
          %423 = vst.msk [vmem:[#allocation3] sm:$0x3f] %vm421, 0.0
          %424 = vst.msk [vmem:[#allocation4] sm:$0x3f] %vm421, 0.0
          %425 = vst.msk [vmem:[#allocation5] sm:$0x3f] %vm421, 0.0
        $region88: #{hierachy_vae_forward.9} parent=51 // pred_fallthru
          _
        %v426 = vld [vmem:[#allocation2] sm:$0x3f]
        %v427 = vld [vmem:[#allocation3] sm:$0x3f]
        %v428 = vld [vmem:[%s356] sm:$0x3f]
        %v429 = vld [vmem:[#allocation9] sm:$0x3f]
        %v430 = vadd.f32 %v428, %v429
        %v431 = vld [vmem:[#allocation11] sm:$0xff]
        %v432 = vld [vmem:[#allocation11 + $0x8] sm:$0xff]
        %v433 = vld [vmem:[#allocation11 + $0x10] sm:$0xff]
        %v434 = vld [vmem:[#allocation11 + $0x18] sm:$0xff]
        %vm435 = vcmask 261120
        %v437 = vsel %vm435, %v426, 0
        %439 = vmatprep.subr.mxu0 0.0
        %440 = vmatpush1.msra.mxu0 %v431
        %441 = vmatprep.subr.mxu0 0.0
        %442 = vmatpush1.msra.mxu0 %v432
        %443 = vmatprep.subr.mxu0 0.0
        %444 = vmatpush1.msra.mxu0 %v433
        %445 = vmatprep.subr.mxu0 0.0
        %446 = vmatpush1.msra.mxu0 %v434
        %447 = vmatprep.subr.mxu0 0.0
        %448 = vmatpush1.msra.mxu0 0.0
        %449 = vmatprep.subr.mxu0 0.0
        %450 = vmatpush1.msra.mxu0 0.0
        %451 = vmatprep.subr.mxu0 0.0
        %452 = vmatpush1.msra.mxu0 0.0
        %453 = vmatprep.subr.mxu0 0.0
        %454 = vmatpush1.msra.mxu0 0.0
        %455 = vmatprep.subr.mxu0 0.0
        %456 = vmatpush1.msra.mxu0 0.0
        %457 = vmatprep.subr.mxu0 0.0
        %458 = vmatpush1.msra.mxu0 0.0
        %459 = vmatprep.subr.mxu0 0.0
        %460 = vmatpush1.msra.mxu0 0.0
        %461 = vmatprep.subr.mxu0 0.0
        %462 = vmatpush1.msra.mxu0 0.0
        %463 = vmatprep.subr.mxu0 0.0
        %464 = vmatpush1.msra.mxu0 0.0
        %465 = vmatprep.subr.mxu0 0.0
        %466 = vmatpush1.msra.mxu0 0.0
        %467 = vmatprep.subr.mxu0 0.0
        %468 = vmatpush1.msra.mxu0 0.0
        %469 = vmatprep.subr.mxu0 0.0
        %470 = vmatpush1.msra.mxu0 0.0
        %471 = vmatprep.subr.mxu0 0.0
        %472 = vmatpush1.msra.mxu0 0.0
        %473 = vmatprep.subr.mxu0 0.0
        %474 = vmatpush1.msra.mxu0 0.0
        %475 = vmatprep.subr.mxu0 0.0
        %476 = vmatpush1.msra.mxu0 0.0
        %477 = vmatprep.subr.mxu0 0.0
        %478 = vmatpush1.msra.mxu0 0.0
        %479 = vmatprep.subr.mxu0 0.0
        %480 = vmatpush1.msra.mxu0 0.0
        %481 = vmatprep.subr.mxu0 0.0
        %482 = vmatpush1.msra.mxu0 0.0
        %483 = vmatprep.subr.mxu0 0.0
        %484 = vmatpush1.msra.mxu0 0.0
        %485 = vmatprep.subr.mxu0 0.0
        %486 = vmatpush1.msra.mxu0 0.0
        %487 = vmatprep.subr.mxu0 0.0
        %488 = vmatpush1.msra.mxu0 0.0
        %489 = vmatprep.subr.mxu0 0.0
        %490 = vmatpush1.msra.mxu0 0.0
        %491 = vmatprep.subr.mxu0 0.0
        %492 = vmatpush1.msra.mxu0 0.0
        %493 = vmatprep.subr.mxu0 0.0
        %494 = vmatpush1.msra.mxu0 0.0
        %495 = vmatprep.subr.mxu0 0.0
        %496 = vmatpush1.msra.mxu0 0.0
        %497 = vmatprep.subr.mxu0 0.0
        %498 = vmatpush1.msra.mxu0 0.0
        %499 = vmatprep.subr.mxu0 0.0
        %500 = vmatpush1.msra.mxu0 0.0
        %501 = vmatprep.subr.mxu0 0.0
        %502 = vmatpush1.msra.mxu0 0.0
        %503 = vmatprep.mubr.f32.mxu0 0.0
        %504 = vmatmul.mubr.f32.gmra.mrb[0].mxu0 %v437
        %v505 = vpop.f32.mrb[0].mxu0
        %v506 = vadd.f32 0.0, %v505
        %v507 = vpop.f32.mrb[0].mxu0
        %508 = vdwg.mxu0
        %v509 = vadd.f32 %v430, %v506
        %v510 = vxor.u32 %v509, 2147483648
        %v511 = vmul.f32 %v510, 1.442695
        %v512 = vpow.pop %v511
        %v513 = vadd.f32 %v512, 1.0
        %v514 = vrcp.pop %v513
        %v515 = vmul.f32 1.0, %v514
        %v516 = vtanh.pop %v509
        %518 = vrot.lane.b32.xlu0 %v427, 32
        %v519 = vpop.permute.xlu0 %518
        %v521 = vmul.f32 %v515, %v519
        %523 = vrot.lane.b32.xlu0 %v516, 64
        %v524 = vpop.permute.xlu0 %523
        %v526 = vmul.f32 %v515, %v524
        %528 = vrot.lane.b32.xlu0 %v526, 32
        %v529 = vpop.permute.xlu0 %528
        %v531 = vadd.f32 %v521, %v529
        %v532 = vtanh.pop %v531
        %534 = vrot.lane.b32.xlu0 %v532, 64
        %v535 = vpop.permute.xlu0 %534
        %v537 = vmul.f32 %v515, %v535
        %539 = vrot.lane.b32.xlu0 %v537, 32
        %v540 = vpop.permute.xlu0 %539
        %vm542 = vcmask 259072
        %543 = vst.msk [vmem:[#allocation2] sm:$0x3f] %vm542, %v540
        %545 = vrot.lane.b32.xlu0 %v531, 96
        %v546 = vpop.permute.xlu0 %545
        %548 = vst.msk [vmem:[#allocation3] sm:$0x3f] %vm542, %v546
        %v549 = vld [vmem:[#allocation4] sm:$0x3f]
        %v550 = vld [vmem:[#allocation5] sm:$0x3f]
        %v551 = vld [vmem:[#allocation12] sm:$0xff]
        %v552 = vld [vmem:[#allocation12 + $0x8] sm:$0xff]
        %v553 = vld [vmem:[#allocation12 + $0x10] sm:$0xff]
        %v554 = vld [vmem:[#allocation12 + $0x18] sm:$0xff]
        %v555 = vld [vmem:[#allocation14] sm:$0xff]
        %v556 = vld [vmem:[#allocation14 + $0x8] sm:$0xff]
        %v557 = vld [vmem:[#allocation14 + $0x10] sm:$0xff]
        %v558 = vld [vmem:[#allocation14 + $0x18] sm:$0xff]
        %v560 = vsel %vm435, %v549, 0
        %562 = vmatprep.subr.mxu0 0.0
        %563 = vmatpush1.msra.mxu0 %v555
        %564 = vmatprep.subr.mxu0 0.0
        %565 = vmatpush1.msra.mxu0 %v556
        %566 = vmatprep.subr.mxu0 0.0
        %567 = vmatpush1.msra.mxu0 %v557
        %568 = vmatprep.subr.mxu0 0.0
        %569 = vmatpush1.msra.mxu0 %v558
        %570 = vmatprep.subr.mxu0 0.0
        %571 = vmatpush1.msra.mxu0 0.0
        %572 = vmatprep.subr.mxu0 0.0
        %573 = vmatpush1.msra.mxu0 0.0
        %574 = vmatprep.subr.mxu0 0.0
        %575 = vmatpush1.msra.mxu0 0.0
        %576 = vmatprep.subr.mxu0 0.0
        %577 = vmatpush1.msra.mxu0 0.0
        %578 = vmatprep.subr.mxu0 0.0
        %579 = vmatpush1.msra.mxu0 0.0
        %580 = vmatprep.subr.mxu0 0.0
        %581 = vmatpush1.msra.mxu0 0.0
        %582 = vmatprep.subr.mxu0 0.0
        %583 = vmatpush1.msra.mxu0 0.0
        %584 = vmatprep.subr.mxu0 0.0
        %585 = vmatpush1.msra.mxu0 0.0
        %586 = vmatprep.subr.mxu0 0.0
        %587 = vmatpush1.msra.mxu0 0.0
        %588 = vmatprep.subr.mxu0 0.0
        %589 = vmatpush1.msra.mxu0 0.0
        %590 = vmatprep.subr.mxu0 0.0
        %591 = vmatpush1.msra.mxu0 0.0
        %592 = vmatprep.subr.mxu0 0.0
        %593 = vmatpush1.msra.mxu0 0.0
        %594 = vmatprep.subr.mxu0 0.0
        %595 = vmatpush1.msra.mxu0 0.0
        %596 = vmatprep.subr.mxu0 0.0
        %597 = vmatpush1.msra.mxu0 0.0
        %598 = vmatprep.subr.mxu0 0.0
        %599 = vmatpush1.msra.mxu0 0.0
        %600 = vmatprep.subr.mxu0 0.0
        %601 = vmatpush1.msra.mxu0 0.0
        %602 = vmatprep.subr.mxu0 0.0
        %603 = vmatpush1.msra.mxu0 0.0
        %604 = vmatprep.subr.mxu0 0.0
        %605 = vmatpush1.msra.mxu0 0.0
        %606 = vmatprep.subr.mxu0 0.0
        %607 = vmatpush1.msra.mxu0 0.0
        %608 = vmatprep.subr.mxu0 0.0
        %609 = vmatpush1.msra.mxu0 0.0
        %610 = vmatprep.subr.mxu0 0.0
        %611 = vmatpush1.msra.mxu0 0.0
        %612 = vmatprep.subr.mxu0 0.0
        %613 = vmatpush1.msra.mxu0 0.0
        %614 = vmatprep.subr.mxu0 0.0
        %615 = vmatpush1.msra.mxu0 0.0
        %616 = vmatprep.subr.mxu0 0.0
        %617 = vmatpush1.msra.mxu0 0.0
        %618 = vmatprep.subr.mxu0 0.0
        %619 = vmatpush1.msra.mxu0 0.0
        %620 = vmatprep.subr.mxu0 0.0
        %621 = vmatpush1.msra.mxu0 0.0
        %622 = vmatprep.subr.mxu0 0.0
        %623 = vmatpush1.msra.mxu0 0.0
        %624 = vmatprep.subr.mxu0 0.0
        %625 = vmatpush1.msra.mxu0 0.0
        %626 = vmatprep.mubr.f32.mxu0 0.0
        %627 = vmatmul.mubr.f32.gmra.mrb[0].mxu0 %v560
        %v628 = vpop.f32.mrb[0].mxu0
        %v629 = vadd.f32 0.0, %v628
        %v630 = vpop.f32.mrb[0].mxu0
        %631 = vdwg.mxu0
        %v632 = vsel %vm435, %v540, 0
        %634 = vmatprep.subr.mxu0 0.0
        %635 = vmatpush1.msra.mxu0 %v551
        %636 = vmatprep.subr.mxu0 0.0
        %637 = vmatpush1.msra.mxu0 %v552
        %638 = vmatprep.subr.mxu0 0.0
        %639 = vmatpush1.msra.mxu0 %v553
        %640 = vmatprep.subr.mxu0 0.0
        %641 = vmatpush1.msra.mxu0 %v554
        %642 = vmatprep.subr.mxu0 0.0
        %643 = vmatpush1.msra.mxu0 0.0
        %644 = vmatprep.subr.mxu0 0.0
        %645 = vmatpush1.msra.mxu0 0.0
        %646 = vmatprep.subr.mxu0 0.0
        %647 = vmatpush1.msra.mxu0 0.0
        %648 = vmatprep.subr.mxu0 0.0
        %649 = vmatpush1.msra.mxu0 0.0
        %650 = vmatprep.subr.mxu0 0.0
        %651 = vmatpush1.msra.mxu0 0.0
        %652 = vmatprep.subr.mxu0 0.0
        %653 = vmatpush1.msra.mxu0 0.0
        %654 = vmatprep.subr.mxu0 0.0
        %655 = vmatpush1.msra.mxu0 0.0
        %656 = vmatprep.subr.mxu0 0.0
        %657 = vmatpush1.msra.mxu0 0.0
        %658 = vmatprep.subr.mxu0 0.0
        %659 = vmatpush1.msra.mxu0 0.0
        %660 = vmatprep.subr.mxu0 0.0
        %661 = vmatpush1.msra.mxu0 0.0
        %662 = vmatprep.subr.mxu0 0.0
        %663 = vmatpush1.msra.mxu0 0.0
        %664 = vmatprep.subr.mxu0 0.0
        %665 = vmatpush1.msra.mxu0 0.0
        %666 = vmatprep.subr.mxu0 0.0
        %667 = vmatpush1.msra.mxu0 0.0
        %668 = vmatprep.subr.mxu0 0.0
        %669 = vmatpush1.msra.mxu0 0.0
        %670 = vmatprep.subr.mxu0 0.0
        %671 = vmatpush1.msra.mxu0 0.0
        %672 = vmatprep.subr.mxu0 0.0
        %673 = vmatpush1.msra.mxu0 0.0
        %674 = vmatprep.subr.mxu0 0.0
        %675 = vmatpush1.msra.mxu0 0.0
        %676 = vmatprep.subr.mxu0 0.0
        %677 = vmatpush1.msra.mxu0 0.0
        %678 = vmatprep.subr.mxu0 0.0
        %679 = vmatpush1.msra.mxu0 0.0
        %680 = vmatprep.subr.mxu0 0.0
        %681 = vmatpush1.msra.mxu0 0.0
        %682 = vmatprep.subr.mxu0 0.0
        %683 = vmatpush1.msra.mxu0 0.0
        %684 = vmatprep.subr.mxu0 0.0
        %685 = vmatpush1.msra.mxu0 0.0
        %686 = vmatprep.subr.mxu0 0.0
        %687 = vmatpush1.msra.mxu0 0.0
        %688 = vmatprep.subr.mxu0 0.0
        %689 = vmatpush1.msra.mxu0 0.0
        %690 = vmatprep.subr.mxu0 0.0
        %691 = vmatpush1.msra.mxu0 0.0
        %692 = vmatprep.subr.mxu0 0.0
        %693 = vmatpush1.msra.mxu0 0.0
        %694 = vmatprep.subr.mxu0 0.0
        %695 = vmatpush1.msra.mxu0 0.0
        %696 = vmatprep.subr.mxu0 0.0
        %697 = vmatpush1.msra.mxu0 0.0
        %698 = vmatprep.mubr.f32.mxu0 0.0
        %699 = vmatmul.mubr.f32.gmra.mrb[0].mxu0 %v632
        %v700 = vpop.f32.mrb[0].mxu0
        %v701 = vadd.f32 %v629, %v700
        %v702 = vpop.f32.mrb[0].mxu0
        %703 = vdwg.mxu0
        %v704 = vld [vmem:[#allocation15] sm:$0x1]
        %v706 = vlaneseq
        %v707 = vshrl.u32 %v706, 7
        %v708 = vsub.s32 0, %v707
        %v709 = vrot.slane %v704, %v708
        %v711 = vadd.f32 %v701, %v709
        %v712 = vxor.u32 %v711, 2147483648
        %v713 = vmul.f32 %v712, 1.442695
        %v714 = vpow.pop %v713
        %v715 = vadd.f32 %v714, 1.0
        %v716 = vrcp.pop %v715
        %v717 = vmul.f32 1.0, %v716
        %v718 = vtanh.pop %v711
        %720 = vrot.lane.b32.xlu0 %v550, 32
        %v721 = vpop.permute.xlu0 %720
        %v723 = vmul.f32 %v717, %v721
        %725 = vrot.lane.b32.xlu0 %v718, 64
        %v726 = vpop.permute.xlu0 %725
        %v728 = vmul.f32 %v717, %v726
        %730 = vrot.lane.b32.xlu0 %v728, 32
        %v731 = vpop.permute.xlu0 %730
        %v733 = vadd.f32 %v723, %v731
        %v734 = vtanh.pop %v733
        %736 = vrot.lane.b32.xlu0 %v734, 64
        %v737 = vpop.permute.xlu0 %736
        %v739 = vmul.f32 %v717, %v737
        %741 = vrot.lane.b32.xlu0 %v739, 32
        %v742 = vpop.permute.xlu0 %741
        %744 = vst.msk [vmem:[#allocation4] sm:$0x3f] %vm542, %v742
        %746 = vrot.lane.b32.xlu0 %v733, 96
        %v747 = vpop.permute.xlu0 %746
        %749 = vst.msk [vmem:[#allocation5] sm:$0x3f] %vm542, %v747
        %v750 = vld [vmem:[#allocation17] sm:$0xff]
        %v751 = vld [vmem:[#allocation17 + $0x8] sm:$0xff]
        %v752 = vld [vmem:[#allocation17 + $0x10] sm:$0xff]
        %v753 = vld [vmem:[#allocation17 + $0x18] sm:$0xff]
        %v754 = vld [vmem:[#allocation18] sm:$0x1]
        %v756 = vlaneseq
        %v757 = vshrl.u32 %v756, 7
        %v758 = vsub.s32 0, %v757
        %v759 = vrot.slane %v754, %v758
        %v761 = vsel %vm435, %v742, 0
        %763 = vmatprep.subr.mxu0 0.0
        %764 = vmatpush1.msra.mxu0 %v750
        %765 = vmatprep.subr.mxu0 0.0
        %766 = vmatpush1.msra.mxu0 %v751
        %767 = vmatprep.subr.mxu0 0.0
        %768 = vmatpush1.msra.mxu0 %v752
        %769 = vmatprep.subr.mxu0 0.0
        %770 = vmatpush1.msra.mxu0 %v753
        %771 = vmatprep.subr.mxu0 0.0
        %772 = vmatpush1.msra.mxu0 0.0
        %773 = vmatprep.subr.mxu0 0.0
        %774 = vmatpush1.msra.mxu0 0.0
        %775 = vmatprep.subr.mxu0 0.0
        %776 = vmatpush1.msra.mxu0 0.0
        %777 = vmatprep.subr.mxu0 0.0
        %778 = vmatpush1.msra.mxu0 0.0
        %779 = vmatprep.subr.mxu0 0.0
        %780 = vmatpush1.msra.mxu0 0.0
        %781 = vmatprep.subr.mxu0 0.0
        %782 = vmatpush1.msra.mxu0 0.0
        %783 = vmatprep.subr.mxu0 0.0
        %784 = vmatpush1.msra.mxu0 0.0
        %785 = vmatprep.subr.mxu0 0.0
        %786 = vmatpush1.msra.mxu0 0.0
        %787 = vmatprep.subr.mxu0 0.0
        %788 = vmatpush1.msra.mxu0 0.0
        %789 = vmatprep.subr.mxu0 0.0
        %790 = vmatpush1.msra.mxu0 0.0
        %791 = vmatprep.subr.mxu0 0.0
        %792 = vmatpush1.msra.mxu0 0.0
        %793 = vmatprep.subr.mxu0 0.0
        %794 = vmatpush1.msra.mxu0 0.0
        %795 = vmatprep.subr.mxu0 0.0
        %796 = vmatpush1.msra.mxu0 0.0
        %797 = vmatprep.subr.mxu0 0.0
        %798 = vmatpush1.msra.mxu0 0.0
        %799 = vmatprep.subr.mxu0 0.0
        %800 = vmatpush1.msra.mxu0 0.0
        %801 = vmatprep.subr.mxu0 0.0
        %802 = vmatpush1.msra.mxu0 0.0
        %803 = vmatprep.subr.mxu0 0.0
        %804 = vmatpush1.msra.mxu0 0.0
        %805 = vmatprep.subr.mxu0 0.0
        %806 = vmatpush1.msra.mxu0 0.0
        %807 = vmatprep.subr.mxu0 0.0
        %808 = vmatpush1.msra.mxu0 0.0
        %809 = vmatprep.subr.mxu0 0.0
        %810 = vmatpush1.msra.mxu0 0.0
        %811 = vmatprep.subr.mxu0 0.0
        %812 = vmatpush1.msra.mxu0 0.0
        %813 = vmatprep.subr.mxu0 0.0
        %814 = vmatpush1.msra.mxu0 0.0
        %815 = vmatprep.subr.mxu0 0.0
        %816 = vmatpush1.msra.mxu0 0.0
        %817 = vmatprep.subr.mxu0 0.0
        %818 = vmatpush1.msra.mxu0 0.0
        %819 = vmatprep.subr.mxu0 0.0
        %820 = vmatpush1.msra.mxu0 0.0
        %821 = vmatprep.subr.mxu0 0.0
        %822 = vmatpush1.msra.mxu0 0.0
        %823 = vmatprep.subr.mxu0 0.0
        %824 = vmatpush1.msra.mxu0 0.0
        %825 = vmatprep.subr.mxu0 0.0
        %826 = vmatpush1.msra.mxu0 0.0
        %827 = vmatprep.mubr.f32.mxu0 0.0
        %828 = vmatmul.mubr.f32.gmra.mrb[0].mxu0 %v761
        %v829 = vpop.f32.mrb[0].mxu0
        %v830 = vadd.f32 %v759, %v829
        %v831 = vpop.f32.mrb[0].mxu0
        %832 = vdwg.mxu0
        %vm833 = vcmask 521216
        %834 = vst.msk [vmem:[%s416] sm:$0x3f] %vm833, %v830
        %s835 = sand.u32 %s210, 1
        %s836 = scalar_lea.sflag [#allocation8], %s835
        %s837 = sand.u32 %s210, 1
        %s838 = smul.addr %s837, 8
        %s839 = scalar_lea.vmem [#allocation20], %s838
        // Predicated region
        $region89: #{hierachy_vae_forward.9} parent=51 // pred_check
          %p840 = pneg %p220
        $region90: #{hierachy_vae_forward.9} parent=51 // pred_check_branch
          %842 = sbr.rel (%p840) target = $region92
        $region91: #{hierachy_vae_forward.9} parent=51 // pred_region
          %s844 = ssub.s32 128, 128
          %845 = vsyncadd %s836, %s844
          %s846 = smul.addr %s29, 128
          %s847 = scalar_lea.hbm %s8, %s846
          %s849 = sshll.u32 %s839, 4
          %s850 = int_to_ptr.vmem [resolvable:$true] %s849
          %852 = dma.vmem_to_hbm [thread:$0]  %s850, 128, %s847, %s836
        $region92: #{hierachy_vae_forward.9} parent=51 // pred_fallthru
          _
      $region52: #{hierachy_vae_forward.9} parent=5 // pred_fallthru
        _
      %p853 = scmp.le.s32.totalorder 2, %s24
      // Predicated region
      $region93: #{hierachy_vae_forward.9} parent=5 // pred_check
        %p854 = pneg %p853
      $region94: #{hierachy_vae_forward.9} parent=5 // pred_check_branch
        %856 = sbr.rel (%p854) target = $region96
      $region95: #{hierachy_vae_forward.9} parent=5 // pred_region
        %s857 = ssub.s32 %s24, 2
        // Predicated region
        $region97: #{hierachy_vae_forward.9} parent=95 // pred_check
          %p858 = pneg %p226
        $region98: #{hierachy_vae_forward.9} parent=95 // pred_check_branch
          %860 = sbr.rel (%p858) target = $region100
        $region99: #{hierachy_vae_forward.9} parent=95 // pred_region
          %s861 = sand.u32 %s211, 1
          %s862 = scalar_lea.sflag [#allocation8], %s861
          %s863 = sand.u32 %s211, 1
          %s864 = smul.addr %s863, 8
          %s865 = scalar_lea.vmem [#allocation20], %s864
          %866 = dma.done %s862, 128
        $region100: #{hierachy_vae_forward.9} parent=95 // pred_fallthru
          _
      $region96: #{hierachy_vae_forward.9} parent=5 // pred_fallthru
        _
    $region6: #{hierachy_vae_forward.9} parent=1 // loop_footer
      %s28 = sadd.s32 1, %s24
    $region7: #{hierachy_vae_forward.9} parent=1 // loop_footer_branch
      %23 = sbr.rel target = $region3
    $region8: #{hierachy_vae_forward.9} parent=1 // loop_exit
      _
    %867 = vsyncpa [#allocation7], 1
    %s868 = scalar_lea.sflag [#allocation7], 1
    %869 = vsyncpa %s868, 1
    %870 = vsyncpa [#allocation10], 1
    %871 = vsyncpa [#allocation13], 1
    %872 = vsyncpa [#allocation16], 1
    %873 = vsyncpa [#allocation19], 1
    %874 = vsyncpa [#allocation8], 1
    %s875 = scalar_lea.sflag [#allocation8], 1
    %876 = vsyncpa %s875, 1

</llo_original>
